<compile_context>
chip_gen: v5e
topology: v5e:2x2
jax: 0.10.0
libtpu: 0.0.40
codegen_flags: <defaults>
</compile_context>

<pallas_src>
import jax
import jax.numpy as jnp
import numpy as np
from jax import lax
from jax.experimental import pallas as pl
from jax.experimental.pallas import tpu as pltpu

INPUT_SIZE = 300
IPAD = 384     # input feature dim zero-padded to 3*128 (clean MXU K tiles)
HIDDEN = 60    # gru_len / hidden_size of the PyTorch module
GATE = 128     # each gate gets its own full 128-lane block (cols HIDDEN..127 are zero)
HPAD = 128     # padded hidden width carried through the recurrence (== GATE)
BPAD = 8       # batch padded to a full sublane group


def _bigru_kernel(x_ref, wih_ref, bih_ref, bhh_ref, whh_hbm, out_ref, hn_ref,
                  whh_vmem, dma_sem):
    # x_ref:    (T*BPAD, IPAD)     f32 VMEM  time-major, batch padded to 8, features to 384
    # wih_ref:  (IPAD, 2*3*GATE)   f32 VMEM  [dir0 r|z|n | dir1 r|z|n], lane-padded
    # bih_ref:  (1, 2*3*GATE)      f32 VMEM
    # bhh_ref:  (2, 1, 3*GATE)     f32 VMEM
    # whh_hbm:  (2, HPAD, 3*GATE)  f32 HBM (pl.ANY) -> manually DMA'd into whh_vmem
    # out_ref:  (T, BPAD, 2*GATE)  f32 VMEM  lanes 0:128 fwd h, 128:256 bwd h (lane-dense)
    # hn_ref:   (2, BPAD, GATE)    f32 VMEM
    # whh_vmem: VMEM scratch mirroring whh_hbm; dma_sem: DMA semaphore
    T = out_ref.shape[0]
    G = GATE
    G3 = 3 * G

    # Kick off the recurrent-weight fetch so it overlaps the big gi matmul below.
    whh_cp = pltpu.make_async_copy(whh_hbm, whh_vmem, dma_sem)
    whh_cp.start()

    # ---- Hoisted input projection: ONE batched MXU matmul produces gi for every
    # timestep and both directions (off the serial critical path).
    gi_all = jnp.dot(x_ref[...], wih_ref[...],
                     preferred_element_type=jnp.float32) + bih_ref[...]
    # gi_all: (T*BPAD, 2*3*G); cols [0:3G) = forward gates, [3G:6G) = backward gates.

    # Pre-broadcast recurrent biases once (JAX does not CSE broadcast_in_dim).
    bhh_f = jnp.broadcast_to(bhh_ref[0], (BPAD, G3))
    bhh_b = jnp.broadcast_to(bhh_ref[1], (BPAD, G3))

    # Recurrent weights are needed starting at step 0: wait for the DMA now and
    # hoist the (HPAD, 3G) loads out of the unrolled loop.
    whh_cp.wait()
    whh_f = whh_vmem[0]
    whh_b = whh_vmem[1]

    def cell(gi, h, whhT, bhh):
        # gi/gh: (BPAD, 3G); gates live in disjoint 128-lane-aligned blocks [r | z | n].
        gh = jnp.dot(h, whhT, preferred_element_type=jnp.float32) + bhh
        r = jax.nn.sigmoid(gi[:, 0:G] + gh[:, 0:G])
        z = jax.nn.sigmoid(gi[:, G:2 * G] + gh[:, G:2 * G])
        n = jnp.tanh(gi[:, 2 * G:3 * G] + r * gh[:, 2 * G:3 * G])
        # Padded lanes stay exactly zero: gi/gh pad = 0 -> r=z=0.5, n=0, h_pad -> 0.5*0.
        return (1.0 - z) * n + z * h

    h_f = jnp.zeros((BPAD, HPAD), jnp.float32)
    h_b = jnp.zeros((BPAD, HPAD), jnp.float32)

    # ---- Fused fwd/bwd recurrence, fully unrolled (T is static and small).
    # TODO(synk): if a bundle dump shows the per-step (HPAD,3G) weight re-streaming
    # saturating the vld slot, switch to weight-stationary pltpu.matmul_push_rhs
    # (one direction per MXU) instead of jnp.dot here.
    for i in range(T):
        tf = i
        tb = T - 1 - i
        # Sublane-aligned (multiples of 8) and lane-aligned (0 / 3*128) static slices.
        gi_f = gi_all[tf * BPAD:(tf + 1) * BPAD, 0:G3]
        gi_b = gi_all[tb * BPAD:(tb + 1) * BPAD, G3:2 * G3]
        h_f = cell(gi_f, h_f, whh_f, bhh_f)
        h_b = cell(gi_b, h_b, whh_b, bhh_b)
        # Lane-dense, unmasked full-128-lane stores.
        out_ref[tf, :, 0:G] = h_f
        out_ref[tb, :, G:2 * G] = h_b

    hn_ref[0] = h_f
    hn_ref[1] = h_b


def gru_layer_pallas(x, packed_params):
    """x: (T, B, INPUT_SIZE) f32. Returns (output (T,B,2H), h_n (2,B,H)) like nn.GRU."""
    T, B, I = x.shape
    wih, bih, whh, bhh = packed_params

    # Pad batch -> BPAD (sublane-aligned per-step slices) and features -> IPAD.
    x_pad = jnp.zeros((T, BPAD, IPAD), jnp.float32)
    x_pad = x_pad.at[:, :B, :I].set(x.astype(jnp.float32))
    x_flat = x_pad.reshape(T * BPAD, IPAD)  # trivial row-major reshape

    vmem = pl.BlockSpec(memory_space=pltpu.MemorySpace.VMEM)
    out_pad, hn_pad = pl.pallas_call(
        _bigru_kernel,
        out_shape=(
            jax.ShapeDtypeStruct((T, BPAD, 2 * GATE), jnp.float32),
            jax.ShapeDtypeStruct((2, BPAD, GATE), jnp.float32),
        ),
        in_specs=[vmem, vmem, vmem, vmem,
                  pl.BlockSpec(memory_space=pl.ANY)],       # whh: manual DMA
        out_specs=(vmem, vmem),
        scratch_shapes=[
            pltpu.VMEM((2, HPAD, 3 * GATE), jnp.float32),    # whh landing buffer
            pltpu.SemaphoreType.DMA,
        ],
    )(x_flat, wih, bih, bhh, whh)

    # Narrow (<128-lane) slicing / concat is done outside the kernel with plain XLA
    # ops so the kernel only ever issues full-vreg stores.
    output = jnp.concatenate(
        [out_pad[:, :B, :HIDDEN], out_pad[:, :B, GATE:GATE + HIDDEN]], axis=-1)
    h_n = hn_pad[:, :B, :HIDDEN]
    return output, h_n


def init_gru_params(key, input_size=INPUT_SIZE, hidden=HIDDEN):
    """Raw PyTorch-layout params: U(-1/sqrt(H), 1/sqrt(H)), gate order [r, z, n]."""
    bound = 1.0 / np.sqrt(hidden)
    ks = jax.random.split(key, 4)
    w_ih = jax.random.uniform(ks[0], (2, 3 * hidden, input_size), jnp.float32, -bound, bound)
    w_hh = jax.random.uniform(ks[1], (2, 3 * hidden, hidden), jnp.float32, -bound, bound)
    b_ih = jax.random.uniform(ks[2], (2, 3 * hidden), jnp.float32, -bound, bound)
    b_hh = jax.random.uniform(ks[3], (2, 3 * hidden), jnp.float32, -bound, bound)
    return (w_ih, w_hh, b_ih, b_hh)


def pack_gru_params(raw, hidden=HIDDEN):
    """Repack PyTorch-layout weights into the kernel's lane-padded layout.

    Each gate gets its own 128-lane block (zeros in cols hidden..127), both
    directions' input weights are concatenated so one matmul produces all gi,
    the input K dim is zero-padded to IPAD=384, and the recurrent K dim to HPAD=128.
    """
    w_ih, w_hh, b_ih, b_hh = [np.asarray(p, np.float32) for p in raw]
    I = w_ih.shape[-1]
    G = GATE
    wih = np.zeros((IPAD, 2 * 3 * G), np.float32)
    bih = np.zeros((1, 2 * 3 * G), np.float32)
    whh = np.zeros((2, HPAD, 3 * G), np.float32)
    bhh = np.zeros((2, 1, 3 * G), np.float32)
    for d in range(2):
        for g in range(3):
            rows = slice(g * hidden, (g + 1) * hidden)
            dcol = d * 3 * G + g * G
            wih[:I, dcol:dcol + hidden] = w_ih[d, rows, :].T
            bih[0, dcol:dcol + hidden] = b_ih[d, rows]
            whh[d, :hidden, g * G:g * G + hidden] = w_hh[d, rows, :].T
            bhh[d, 0, g * G:g * G + hidden] = b_hh[d, rows]
    return tuple(jnp.asarray(a) for a in (wih, bih, whh, bhh))


def gru_layer_reference(x, raw_params):
    """Pure-JAX reference (lax.scan) with PyTorch nn.GRU semantics."""
    w_ih, w_hh, b_ih, b_hh = raw_params
    H = HIDDEN
    T, B, _ = x.shape

    def cell(h, x_t, d):
        gi = x_t @ w_ih[d].T + b_ih[d]
        gh = h @ w_hh[d].T + b_hh[d]
        r = jax.nn.sigmoid(gi[:, :H] + gh[:, :H])
        z = jax.nn.sigmoid(gi[:, H:2 * H] + gh[:, H:2 * H])
        n = jnp.tanh(gi[:, 2 * H:] + r * gh[:, 2 * H:])
        h_new = (1.0 - z) * n + z * h
        return h_new, h_new

    h0 = jnp.zeros((B, H), jnp.float32)
    h_f, out_f = lax.scan(lambda h, xt: cell(h, xt, 0), h0, x)
    h_b, out_b_rev = lax.scan(lambda h, xt: cell(h, xt, 1), h0, x[::-1])
    out_b = out_b_rev[::-1]
    output = jnp.concatenate([out_f, out_b], axis=-1)
    h_n = jnp.stack([h_f, h_b], axis=0)
    return output, h_n


if __name__ == "__main__":
    key = jax.random.PRNGKey(0)
    k_param, k_x = jax.random.split(key)

    T, B = 8, 2  # small seq / batch; input_size=300, hidden=60 fixed by the module
    x = jax.random.normal(k_x, (T, B, INPUT_SIZE), dtype=jnp.float32)
    raw_params = init_gru_params(k_param)
    packed = pack_gru_params(raw_params)

    out, h_n = gru_layer_pallas(x, packed)
    out = jax.block_until_ready(out)
    h_n = jax.block_until_ready(h_n)

    ref_out, ref_hn = gru_layer_reference(x, raw_params)
    np.testing.assert_allclose(np.asarray(out), np.asarray(ref_out), rtol=2e-5, atol=2e-5)
    np.testing.assert_allclose(np.asarray(h_n), np.asarray(ref_hn), rtol=2e-5, atol=2e-5)

    assert out.shape == (T, B, 2 * HIDDEN) and h_n.shape == (2, B, HIDDEN)
    print("KERNEL_OK")
</pallas_src>

<mosaic_0001>
module attributes {stable_mosaic.version = 11 : i64} {
  func.func @_bigru_kernel(%arg0: memref<64x384xf32, #tpu.memory_space<vmem>>, %arg1: memref<384x768xf32, #tpu.memory_space<vmem>>, %arg2: memref<1x768xf32, #tpu.memory_space<vmem>>, %arg3: memref<2x1x384xf32, #tpu.memory_space<vmem>>, %arg4: memref<2x128x384xf32, #tpu.memory_space<any>>, %arg5: memref<8x8x256xf32, #tpu.memory_space<vmem>>, %arg6: memref<2x8x128xf32, #tpu.memory_space<vmem>>, %arg7: memref<2x128x384xf32, #tpu.memory_space<vmem>>, %arg8: memref<!tpu.dma_semaphore, #tpu.memory_space<semaphore_mem>>) attributes {dimension_semantics = [], scalar_prefetch = 0 : i64, scratch_operands = 2 : i64, tpu.core_type = #tpu.core_type<tc>} {
    tpu.enqueue_dma source(%arg4 : memref<2x128x384xf32, #tpu.memory_space<any>>) target(%arg7 : memref<2x128x384xf32, #tpu.memory_space<vmem>>) target_semaphore(%arg8 : memref<!tpu.dma_semaphore, #tpu.memory_space<semaphore_mem>>)
    %c0 = arith.constant 0 : index
    %c0_0 = arith.constant 0 : index
    %0 = vector.load %arg0[%c0, %c0_0] : memref<64x384xf32, #tpu.memory_space<vmem>>, vector<64x384xf32>
    %c0_1 = arith.constant 0 : index
    %c0_2 = arith.constant 0 : index
    %1 = vector.load %arg1[%c0_1, %c0_2] : memref<384x768xf32, #tpu.memory_space<vmem>>, vector<384x768xf32>
    %cst = arith.constant dense<0.000000e+00> : vector<64x768xf32>
    %2 = tpu.matmul %0, %1, %cst {dimension_numbers = #tpu.dot_dimension_numbers<[1], [0], [0], [1], [0, 0, 1, 1], [], []>} : vector<64x384xf32>, vector<384x768xf32>, vector<64x768xf32> -> vector<64x768xf32>
    %c0_3 = arith.constant 0 : index
    %c0_4 = arith.constant 0 : index
    %3 = vector.load %arg2[%c0_3, %c0_4] : memref<1x768xf32, #tpu.memory_space<vmem>>, vector<1x768xf32>
    %4 = vector.broadcast %3 : vector<1x768xf32> to vector<64x768xf32>
    %5 = arith.addf %2, %4 : vector<64x768xf32>
    %c0_5 = arith.constant 0 : index
    %c0_6 = arith.constant 0 : index
    %c0_7 = arith.constant 0 : index
    %6 = vector.load %arg3[%c0_5, %c0_6, %c0_7] : memref<2x1x384xf32, #tpu.memory_space<vmem>>, vector<1x1x384xf32>
    %7 = vector.shape_cast %6 : vector<1x1x384xf32> to vector<1x384xf32>
    %8 = vector.shape_cast %7 : vector<1x384xf32> to vector<1x384xf32>
    %9 = vector.broadcast %8 : vector<1x384xf32> to vector<8x384xf32>
    %c1 = arith.constant 1 : index
    %c0_8 = arith.constant 0 : index
    %c0_9 = arith.constant 0 : index
    %10 = vector.load %arg3[%c1, %c0_8, %c0_9] : memref<2x1x384xf32, #tpu.memory_space<vmem>>, vector<1x1x384xf32>
    %11 = vector.shape_cast %10 : vector<1x1x384xf32> to vector<1x384xf32>
    %12 = vector.shape_cast %11 : vector<1x384xf32> to vector<1x384xf32>
    %13 = vector.broadcast %12 : vector<1x384xf32> to vector<8x384xf32>
    tpu.wait_dma2 semaphore(%arg8 : memref<!tpu.dma_semaphore, #tpu.memory_space<semaphore_mem>>) src(%arg4 : memref<2x128x384xf32, #tpu.memory_space<any>>) dst(%arg7 : memref<2x128x384xf32, #tpu.memory_space<vmem>>)
    %c0_10 = arith.constant 0 : index
    %c0_11 = arith.constant 0 : index
    %c0_12 = arith.constant 0 : index
    %14 = vector.load %arg7[%c0_10, %c0_11, %c0_12] : memref<2x128x384xf32, #tpu.memory_space<vmem>>, vector<1x128x384xf32>
    %15 = vector.shape_cast %14 : vector<1x128x384xf32> to vector<128x384xf32>
    %c1_13 = arith.constant 1 : index
    %c0_14 = arith.constant 0 : index
    %c0_15 = arith.constant 0 : index
    %16 = vector.load %arg7[%c1_13, %c0_14, %c0_15] : memref<2x128x384xf32, #tpu.memory_space<vmem>>, vector<1x128x384xf32>
    %17 = vector.shape_cast %16 : vector<1x128x384xf32> to vector<128x384xf32>
    %cst_16 = arith.constant 0.000000e+00 : f32
    %18 = vector.broadcast %cst_16 : f32 to vector<8x128xf32>
    %cst_17 = arith.constant 0.000000e+00 : f32
    %19 = vector.broadcast %cst_17 : f32 to vector<8x128xf32>
    %20 = vector.extract_strided_slice %5 {offsets = [0, 0], sizes = [8, 384], strides = [1, 1]} : vector<64x768xf32> to vector<8x384xf32>
    %21 = vector.extract_strided_slice %5 {offsets = [56, 384], sizes = [8, 384], strides = [1, 1]} : vector<64x768xf32> to vector<8x384xf32>
    %cst_18 = arith.constant dense<0.000000e+00> : vector<8x384xf32>
    %22 = tpu.matmul %18, %15, %cst_18 {dimension_numbers = #tpu.dot_dimension_numbers<[1], [0], [0], [1], [0, 0, 1, 1], [], []>} : vector<8x128xf32>, vector<128x384xf32>, vector<8x384xf32> -> vector<8x384xf32>
    %23 = arith.addf %22, %9 : vector<8x384xf32>
    %24 = vector.extract_strided_slice %20 {offsets = [0, 0], sizes = [8, 128], strides = [1, 1]} : vector<8x384xf32> to vector<8x128xf32>
    %25 = vector.extract_strided_slice %23 {offsets = [0, 0], sizes = [8, 128], strides = [1, 1]} : vector<8x384xf32> to vector<8x128xf32>
    %26 = arith.addf %24, %25 : vector<8x128xf32>
    %27 = arith.negf %26 : vector<8x128xf32>
    %28 = math.exp %27 : vector<8x128xf32>
    %cst_19 = arith.constant 1.000000e+00 : f32
    %29 = vector.broadcast %cst_19 : f32 to vector<8x128xf32>
    %30 = arith.addf %29, %28 : vector<8x128xf32>
    %31 = arith.divf %29, %30 : vector<8x128xf32>
    %32 = vector.extract_strided_slice %20 {offsets = [0, 128], sizes = [8, 128], strides = [1, 1]} : vector<8x384xf32> to vector<8x128xf32>
    %33 = vector.extract_strided_slice %23 {offsets = [0, 128], sizes = [8, 128], strides = [1, 1]} : vector<8x384xf32> to vector<8x128xf32>
    %34 = arith.addf %32, %33 : vector<8x128xf32>
    %35 = arith.negf %34 : vector<8x128xf32>
    %36 = math.exp %35 : vector<8x128xf32>
    %cst_20 = arith.constant 1.000000e+00 : f32
    %37 = vector.broadcast %cst_20 : f32 to vector<8x128xf32>
    %38 = arith.addf %37, %36 : vector<8x128xf32>
    %39 = arith.divf %37, %38 : vector<8x128xf32>
    %40 = vector.extract_strided_slice %20 {offsets = [0, 256], sizes = [8, 128], strides = [1, 1]} : vector<8x384xf32> to vector<8x128xf32>
    %41 = vector.extract_strided_slice %23 {offsets = [0, 256], sizes = [8, 128], strides = [1, 1]} : vector<8x384xf32> to vector<8x128xf32>
    %42 = arith.mulf %31, %41 : vector<8x128xf32>
    %43 = arith.addf %40, %42 : vector<8x128xf32>
    %44 = math.tanh %43 : vector<8x128xf32>
    %cst_21 = arith.constant 1.000000e+00 : f32
    %45 = vector.broadcast %cst_21 : f32 to vector<8x128xf32>
    %46 = arith.subf %45, %39 : vector<8x128xf32>
    %47 = arith.mulf %46, %44 : vector<8x128xf32>
    %48 = arith.mulf %39, %18 : vector<8x128xf32>
    %49 = arith.addf %47, %48 : vector<8x128xf32>
    %cst_22 = arith.constant dense<0.000000e+00> : vector<8x384xf32>
    %50 = tpu.matmul %19, %17, %cst_22 {dimension_numbers = #tpu.dot_dimension_numbers<[1], [0], [0], [1], [0, 0, 1, 1], [], []>} : vector<8x128xf32>, vector<128x384xf32>, vector<8x384xf32> -> vector<8x384xf32>
    %51 = arith.addf %50, %13 : vector<8x384xf32>
    %52 = vector.extract_strided_slice %21 {offsets = [0, 0], sizes = [8, 128], strides = [1, 1]} : vector<8x384xf32> to vector<8x128xf32>
    %53 = vector.extract_strided_slice %51 {offsets = [0, 0], sizes = [8, 128], strides = [1, 1]} : vector<8x384xf32> to vector<8x128xf32>
    %54 = arith.addf %52, %53 : vector<8x128xf32>
    %55 = arith.negf %54 : vector<8x128xf32>
    %56 = math.exp %55 : vector<8x128xf32>
    %cst_23 = arith.constant 1.000000e+00 : f32
    %57 = vector.broadcast %cst_23 : f32 to vector<8x128xf32>
    %58 = arith.addf %57, %56 : vector<8x128xf32>
    %59 = arith.divf %57, %58 : vector<8x128xf32>
    %60 = vector.extract_strided_slice %21 {offsets = [0, 128], sizes = [8, 128], strides = [1, 1]} : vector<8x384xf32> to vector<8x128xf32>
    %61 = vector.extract_strided_slice %51 {offsets = [0, 128], sizes = [8, 128], strides = [1, 1]} : vector<8x384xf32> to vector<8x128xf32>
    %62 = arith.addf %60, %61 : vector<8x128xf32>
    %63 = arith.negf %62 : vector<8x128xf32>
    %64 = math.exp %63 : vector<8x128xf32>
    %cst_24 = arith.constant 1.000000e+00 : f32
    %65 = vector.broadcast %cst_24 : f32 to vector<8x128xf32>
    %66 = arith.addf %65, %64 : vector<8x128xf32>
    %67 = arith.divf %65, %66 : vector<8x128xf32>
    %68 = vector.extract_strided_slice %21 {offsets = [0, 256], sizes = [8, 128], strides = [1, 1]} : vector<8x384xf32> to vector<8x128xf32>
    %69 = vector.extract_strided_slice %51 {offsets = [0, 256], sizes = [8, 128], strides = [1, 1]} : vector<8x384xf32> to vector<8x128xf32>
    %70 = arith.mulf %59, %69 : vector<8x128xf32>
    %71 = arith.addf %68, %70 : vector<8x128xf32>
    %72 = math.tanh %71 : vector<8x128xf32>
    %cst_25 = arith.constant 1.000000e+00 : f32
    %73 = vector.broadcast %cst_25 : f32 to vector<8x128xf32>
    %74 = arith.subf %73, %67 : vector<8x128xf32>
    %75 = arith.mulf %74, %72 : vector<8x128xf32>
    %76 = arith.mulf %67, %19 : vector<8x128xf32>
    %77 = arith.addf %75, %76 : vector<8x128xf32>
    %c0_26 = arith.constant 0 : index
    %c0_27 = arith.constant 0 : index
    %c0_28 = arith.constant 0 : index
    %78 = vector.load %arg5[%c0_26, %c0_27, %c0_28] : memref<8x8x256xf32, #tpu.memory_space<vmem>>, vector<1x8x128xf32>
    %79 = vector.shape_cast %78 : vector<1x8x128xf32> to vector<8x128xf32>
    %80 = vector.shape_cast %49 : vector<8x128xf32> to vector<1x8x128xf32>
    tpu.vector_store %arg5[%c0_26, %c0_27, %c0_28], %80 {strides = array<i32>} : memref<8x8x256xf32, #tpu.memory_space<vmem>>, vector<1x8x128xf32>,
    %c7 = arith.constant 7 : index
    %c0_29 = arith.constant 0 : index
    %c128 = arith.constant 128 : index
    %81 = vector.load %arg5[%c7, %c0_29, %c128] : memref<8x8x256xf32, #tpu.memory_space<vmem>>, vector<1x8x128xf32>
    %82 = vector.shape_cast %81 : vector<1x8x128xf32> to vector<8x128xf32>
    %83 = vector.shape_cast %77 : vector<8x128xf32> to vector<1x8x128xf32>
    tpu.vector_store %arg5[%c7, %c0_29, %c128], %83 {strides = array<i32>} : memref<8x8x256xf32, #tpu.memory_space<vmem>>, vector<1x8x128xf32>,
    %84 = vector.extract_strided_slice %5 {offsets = [8, 0], sizes = [8, 384], strides = [1, 1]} : vector<64x768xf32> to vector<8x384xf32>
    %85 = vector.extract_strided_slice %5 {offsets = [48, 384], sizes = [8, 384], strides = [1, 1]} : vector<64x768xf32> to vector<8x384xf32>
    %cst_30 = arith.constant dense<0.000000e+00> : vector<8x384xf32>
    %86 = tpu.matmul %49, %15, %cst_30 {dimension_numbers = #tpu.dot_dimension_numbers<[1], [0], [0], [1], [0, 0, 1, 1], [], []>} : vector<8x128xf32>, vector<128x384xf32>, vector<8x384xf32> -> vector<8x384xf32>
    %87 = arith.addf %86, %9 : vector<8x384xf32>
    %88 = vector.extract_strided_slice %84 {offsets = [0, 0], sizes = [8, 128], strides = [1, 1]} : vector<8x384xf32> to vector<8x128xf32>
    %89 = vector.extract_strided_slice %87 {offsets = [0, 0], sizes = [8, 128], strides = [1, 1]} : vector<8x384xf32> to vector<8x128xf32>
    %90 = arith.addf %88, %89 : vector<8x128xf32>
    %91 = arith.negf %90 : vector<8x128xf32>
    %92 = math.exp %91 : vector<8x128xf32>
    %cst_31 = arith.constant 1.000000e+00 : f32
    %93 = vector.broadcast %cst_31 : f32 to vector<8x128xf32>
    %94 = arith.addf %93, %92 : vector<8x128xf32>
    %95 = arith.divf %93, %94 : vector<8x128xf32>
    %96 = vector.extract_strided_slice %84 {offsets = [0, 128], sizes = [8, 128], strides = [1, 1]} : vector<8x384xf32> to vector<8x128xf32>
    %97 = vector.extract_strided_slice %87 {offsets = [0, 128], sizes = [8, 128], strides = [1, 1]} : vector<8x384xf32> to vector<8x128xf32>
    %98 = arith.addf %96, %97 : vector<8x128xf32>
    %99 = arith.negf %98 : vector<8x128xf32>
    %100 = math.exp %99 : vector<8x128xf32>
    %cst_32 = arith.constant 1.000000e+00 : f32
    %101 = vector.broadcast %cst_32 : f32 to vector<8x128xf32>
    %102 = arith.addf %101, %100 : vector<8x128xf32>
    %103 = arith.divf %101, %102 : vector<8x128xf32>
    %104 = vector.extract_strided_slice %84 {offsets = [0, 256], sizes = [8, 128], strides = [1, 1]} : vector<8x384xf32> to vector<8x128xf32>
    %105 = vector.extract_strided_slice %87 {offsets = [0, 256], sizes = [8, 128], strides = [1, 1]} : vector<8x384xf32> to vector<8x128xf32>
    %106 = arith.mulf %95, %105 : vector<8x128xf32>
    %107 = arith.addf %104, %106 : vector<8x128xf32>
    %108 = math.tanh %107 : vector<8x128xf32>
    %cst_33 = arith.constant 1.000000e+00 : f32
    %109 = vector.broadcast %cst_33 : f32 to vector<8x128xf32>
    %110 = arith.subf %109, %103 : vector<8x128xf32>
    %111 = arith.mulf %110, %108 : vector<8x128xf32>
    %112 = arith.mulf %103, %49 : vector<8x128xf32>
    %113 = arith.addf %111, %112 : vector<8x128xf32>
    %cst_34 = arith.constant dense<0.000000e+00> : vector<8x384xf32>
    %114 = tpu.matmul %77, %17, %cst_34 {dimension_numbers = #tpu.dot_dimension_numbers<[1], [0], [0], [1], [0, 0, 1, 1], [], []>} : vector<8x128xf32>, vector<128x384xf32>, vector<8x384xf32> -> vector<8x384xf32>
    %115 = arith.addf %114, %13 : vector<8x384xf32>
    %116 = vector.extract_strided_slice %85 {offsets = [0, 0], sizes = [8, 128], strides = [1, 1]} : vector<8x384xf32> to vector<8x128xf32>
    %117 = vector.extract_strided_slice %115 {offsets = [0, 0], sizes = [8, 128], strides = [1, 1]} : vector<8x384xf32> to vector<8x128xf32>
    %118 = arith.addf %116, %117 : vector<8x128xf32>
    %119 = arith.negf %118 : vector<8x128xf32>
    %120 = math.exp %119 : vector<8x128xf32>
    %cst_35 = arith.constant 1.000000e+00 : f32
    %121 = vector.broadcast %cst_35 : f32 to vector<8x128xf32>
    %122 = arith.addf %121, %120 : vector<8x128xf32>
    %123 = arith.divf %121, %122 : vector<8x128xf32>
    %124 = vector.extract_strided_slice %85 {offsets = [0, 128], sizes = [8, 128], strides = [1, 1]} : vector<8x384xf32> to vector<8x128xf32>
    %125 = vector.extract_strided_slice %115 {offsets = [0, 128], sizes = [8, 128], strides = [1, 1]} : vector<8x384xf32> to vector<8x128xf32>
    %126 = arith.addf %124, %125 : vector<8x128xf32>
    %127 = arith.negf %126 : vector<8x128xf32>
    %128 = math.exp %127 : vector<8x128xf32>
    %cst_36 = arith.constant 1.000000e+00 : f32
    %129 = vector.broadcast %cst_36 : f32 to vector<8x128xf32>
    %130 = arith.addf %129, %128 : vector<8x128xf32>
    %131 = arith.divf %129, %130 : vector<8x128xf32>
    %132 = vector.extract_strided_slice %85 {offsets = [0, 256], sizes = [8, 128], strides = [1, 1]} : vector<8x384xf32> to vector<8x128xf32>
    %133 = vector.extract_strided_slice %115 {offsets = [0, 256], sizes = [8, 128], strides = [1, 1]} : vector<8x384xf32> to vector<8x128xf32>
    %134 = arith.mulf %123, %133 : vector<8x128xf32>
    %135 = arith.addf %132, %134 : vector<8x128xf32>
    %136 = math.tanh %135 : vector<8x128xf32>
    %cst_37 = arith.constant 1.000000e+00 : f32
    %137 = vector.broadcast %cst_37 : f32 to vector<8x128xf32>
    %138 = arith.subf %137, %131 : vector<8x128xf32>
    %139 = arith.mulf %138, %136 : vector<8x128xf32>
    %140 = arith.mulf %131, %77 : vector<8x128xf32>
    %141 = arith.addf %139, %140 : vector<8x128xf32>
    %c1_38 = arith.constant 1 : index
    %c0_39 = arith.constant 0 : index
    %c0_40 = arith.constant 0 : index
    %142 = vector.load %arg5[%c1_38, %c0_39, %c0_40] : memref<8x8x256xf32, #tpu.memory_space<vmem>>, vector<1x8x128xf32>
    %143 = vector.shape_cast %142 : vector<1x8x128xf32> to vector<8x128xf32>
    %144 = vector.shape_cast %113 : vector<8x128xf32> to vector<1x8x128xf32>
    tpu.vector_store %arg5[%c1_38, %c0_39, %c0_40], %144 {strides = array<i32>} : memref<8x8x256xf32, #tpu.memory_space<vmem>>, vector<1x8x128xf32>,
    %c6 = arith.constant 6 : index
    %c0_41 = arith.constant 0 : index
    %c128_42 = arith.constant 128 : index
    %145 = vector.load %arg5[%c6, %c0_41, %c128_42] : memref<8x8x256xf32, #tpu.memory_space<vmem>>, vector<1x8x128xf32>
    %146 = vector.shape_cast %145 : vector<1x8x128xf32> to vector<8x128xf32>
    %147 = vector.shape_cast %141 : vector<8x128xf32> to vector<1x8x128xf32>
    tpu.vector_store %arg5[%c6, %c0_41, %c128_42], %147 {strides = array<i32>} : memref<8x8x256xf32, #tpu.memory_space<vmem>>, vector<1x8x128xf32>,
    %148 = vector.extract_strided_slice %5 {offsets = [16, 0], sizes = [8, 384], strides = [1, 1]} : vector<64x768xf32> to vector<8x384xf32>
    %149 = vector.extract_strided_slice %5 {offsets = [40, 384], sizes = [8, 384], strides = [1, 1]} : vector<64x768xf32> to vector<8x384xf32>
    %cst_43 = arith.constant dense<0.000000e+00> : vector<8x384xf32>
    %150 = tpu.matmul %113, %15, %cst_43 {dimension_numbers = #tpu.dot_dimension_numbers<[1], [0], [0], [1], [0, 0, 1, 1], [], []>} : vector<8x128xf32>, vector<128x384xf32>, vector<8x384xf32> -> vector<8x384xf32>
    %151 = arith.addf %150, %9 : vector<8x384xf32>
    %152 = vector.extract_strided_slice %148 {offsets = [0, 0], sizes = [8, 128], strides = [1, 1]} : vector<8x384xf32> to vector<8x128xf32>
    %153 = vector.extract_strided_slice %151 {offsets = [0, 0], sizes = [8, 128], strides = [1, 1]} : vector<8x384xf32> to vector<8x128xf32>
    %154 = arith.addf %152, %153 : vector<8x128xf32>
    %155 = arith.negf %154 : vector<8x128xf32>
    %156 = math.exp %155 : vector<8x128xf32>
    %cst_44 = arith.constant 1.000000e+00 : f32
    %157 = vector.broadcast %cst_44 : f32 to vector<8x128xf32>
    %158 = arith.addf %157, %156 : vector<8x128xf32>
    %159 = arith.divf %157, %158 : vector<8x128xf32>
    %160 = vector.extract_strided_slice %148 {offsets = [0, 128], sizes = [8, 128], strides = [1, 1]} : vector<8x384xf32> to vector<8x128xf32>
    %161 = vector.extract_strided_slice %151 {offsets = [0, 128], sizes = [8, 128], strides = [1, 1]} : vector<8x384xf32> to vector<8x128xf32>
    %162 = arith.addf %160, %161 : vector<8x128xf32>
    %163 = arith.negf %162 : vector<8x128xf32>
    %164 = math.exp %163 : vector<8x128xf32>
    %cst_45 = arith.constant 1.000000e+00 : f32
    %165 = vector.broadcast %cst_45 : f32 to vector<8x128xf32>
    %166 = arith.addf %165, %164 : vector<8x128xf32>
    %167 = arith.divf %165, %166 : vector<8x128xf32>
    %168 = vector.extract_strided_slice %148 {offsets = [0, 256], sizes = [8, 128], strides = [1, 1]} : vector<8x384xf32> to vector<8x128xf32>
    %169 = vector.extract_strided_slice %151 {offsets = [0, 256], sizes = [8, 128], strides = [1, 1]} : vector<8x384xf32> to vector<8x128xf32>
    %170 = arith.mulf %159, %169 : vector<8x128xf32>
    %171 = arith.addf %168, %170 : vector<8x128xf32>
    %172 = math.tanh %171 : vector<8x128xf32>
    %cst_46 = arith.constant 1.000000e+00 : f32
    %173 = vector.broadcast %cst_46 : f32 to vector<8x128xf32>
    %174 = arith.subf %173, %167 : vector<8x128xf32>
    %175 = arith.mulf %174, %172 : vector<8x128xf32>
    %176 = arith.mulf %167, %113 : vector<8x128xf32>
    %177 = arith.addf %175, %176 : vector<8x128xf32>
    %cst_47 = arith.constant dense<0.000000e+00> : vector<8x384xf32>
    %178 = tpu.matmul %141, %17, %cst_47 {dimension_numbers = #tpu.dot_dimension_numbers<[1], [0], [0], [1], [0, 0, 1, 1], [], []>} : vector<8x128xf32>, vector<128x384xf32>, vector<8x384xf32> -> vector<8x384xf32>
    %179 = arith.addf %178, %13 : vector<8x384xf32>
    %180 = vector.extract_strided_slice %149 {offsets = [0, 0], sizes = [8, 128], strides = [1, 1]} : vector<8x384xf32> to vector<8x128xf32>
    %181 = vector.extract_strided_slice %179 {offsets = [0, 0], sizes = [8, 128], strides = [1, 1]} : vector<8x384xf32> to vector<8x128xf32>
    %182 = arith.addf %180, %181 : vector<8x128xf32>
    %183 = arith.negf %182 : vector<8x128xf32>
    %184 = math.exp %183 : vector<8x128xf32>
    %cst_48 = arith.constant 1.000000e+00 : f32
    %185 = vector.broadcast %cst_48 : f32 to vector<8x128xf32>
    %186 = arith.addf %185, %184 : vector<8x128xf32>
    %187 = arith.divf %185, %186 : vector<8x128xf32>
    %188 = vector.extract_strided_slice %149 {offsets = [0, 128], sizes = [8, 128], strides = [1, 1]} : vector<8x384xf32> to vector<8x128xf32>
    %189 = vector.extract_strided_slice %179 {offsets = [0, 128], sizes = [8, 128], strides = [1, 1]} : vector<8x384xf32> to vector<8x128xf32>
    %190 = arith.addf %188, %189 : vector<8x128xf32>
    %191 = arith.negf %190 : vector<8x128xf32>
    %192 = math.exp %191 : vector<8x128xf32>
    %cst_49 = arith.constant 1.000000e+00 : f32
    %193 = vector.broadcast %cst_49 : f32 to vector<8x128xf32>
    %194 = arith.addf %193, %192 : vector<8x128xf32>
    %195 = arith.divf %193, %194 : vector<8x128xf32>
    %196 = vector.extract_strided_slice %149 {offsets = [0, 256], sizes = [8, 128], strides = [1, 1]} : vector<8x384xf32> to vector<8x128xf32>
    %197 = vector.extract_strided_slice %179 {offsets = [0, 256], sizes = [8, 128], strides = [1, 1]} : vector<8x384xf32> to vector<8x128xf32>
    %198 = arith.mulf %187, %197 : vector<8x128xf32>
    %199 = arith.addf %196, %198 : vector<8x128xf32>
    %200 = math.tanh %199 : vector<8x128xf32>
    %cst_50 = arith.constant 1.000000e+00 : f32
    %201 = vector.broadcast %cst_50 : f32 to vector<8x128xf32>
    %202 = arith.subf %201, %195 : vector<8x128xf32>
    %203 = arith.mulf %202, %200 : vector<8x128xf32>
    %204 = arith.mulf %195, %141 : vector<8x128xf32>
    %205 = arith.addf %203, %204 : vector<8x128xf32>
    %c2 = arith.constant 2 : index
    %c0_51 = arith.constant 0 : index
    %c0_52 = arith.constant 0 : index
    %206 = vector.load %arg5[%c2, %c0_51, %c0_52] : memref<8x8x256xf32, #tpu.memory_space<vmem>>, vector<1x8x128xf32>
    %207 = vector.shape_cast %206 : vector<1x8x128xf32> to vector<8x128xf32>
    %208 = vector.shape_cast %177 : vector<8x128xf32> to vector<1x8x128xf32>
    tpu.vector_store %arg5[%c2, %c0_51, %c0_52], %208 {strides = array<i32>} : memref<8x8x256xf32, #tpu.memory_space<vmem>>, vector<1x8x128xf32>,
    %c5 = arith.constant 5 : index
    %c0_53 = arith.constant 0 : index
    %c128_54 = arith.constant 128 : index
    %209 = vector.load %arg5[%c5, %c0_53, %c128_54] : memref<8x8x256xf32, #tpu.memory_space<vmem>>, vector<1x8x128xf32>
    %210 = vector.shape_cast %209 : vector<1x8x128xf32> to vector<8x128xf32>
    %211 = vector.shape_cast %205 : vector<8x128xf32> to vector<1x8x128xf32>
    tpu.vector_store %arg5[%c5, %c0_53, %c128_54], %211 {strides = array<i32>} : memref<8x8x256xf32, #tpu.memory_space<vmem>>, vector<1x8x128xf32>,
    %212 = vector.extract_strided_slice %5 {offsets = [24, 0], sizes = [8, 384], strides = [1, 1]} : vector<64x768xf32> to vector<8x384xf32>
    %213 = vector.extract_strided_slice %5 {offsets = [32, 384], sizes = [8, 384], strides = [1, 1]} : vector<64x768xf32> to vector<8x384xf32>
    %cst_55 = arith.constant dense<0.000000e+00> : vector<8x384xf32>
    %214 = tpu.matmul %177, %15, %cst_55 {dimension_numbers = #tpu.dot_dimension_numbers<[1], [0], [0], [1], [0, 0, 1, 1], [], []>} : vector<8x128xf32>, vector<128x384xf32>, vector<8x384xf32> -> vector<8x384xf32>
    %215 = arith.addf %214, %9 : vector<8x384xf32>
    %216 = vector.extract_strided_slice %212 {offsets = [0, 0], sizes = [8, 128], strides = [1, 1]} : vector<8x384xf32> to vector<8x128xf32>
    %217 = vector.extract_strided_slice %215 {offsets = [0, 0], sizes = [8, 128], strides = [1, 1]} : vector<8x384xf32> to vector<8x128xf32>
    %218 = arith.addf %216, %217 : vector<8x128xf32>
    %219 = arith.negf %218 : vector<8x128xf32>
    %220 = math.exp %219 : vector<8x128xf32>
    %cst_56 = arith.constant 1.000000e+00 : f32
    %221 = vector.broadcast %cst_56 : f32 to vector<8x128xf32>
    %222 = arith.addf %221, %220 : vector<8x128xf32>
    %223 = arith.divf %221, %222 : vector<8x128xf32>
    %224 = vector.extract_strided_slice %212 {offsets = [0, 128], sizes = [8, 128], strides = [1, 1]} : vector<8x384xf32> to vector<8x128xf32>
    %225 = vector.extract_strided_slice %215 {offsets = [0, 128], sizes = [8, 128], strides = [1, 1]} : vector<8x384xf32> to vector<8x128xf32>
    %226 = arith.addf %224, %225 : vector<8x128xf32>
    %227 = arith.negf %226 : vector<8x128xf32>
    %228 = math.exp %227 : vector<8x128xf32>
    %cst_57 = arith.constant 1.000000e+00 : f32
    %229 = vector.broadcast %cst_57 : f32 to vector<8x128xf32>
    %230 = arith.addf %229, %228 : vector<8x128xf32>
    %231 = arith.divf %229, %230 : vector<8x128xf32>
    %232 = vector.extract_strided_slice %212 {offsets = [0, 256], sizes = [8, 128], strides = [1, 1]} : vector<8x384xf32> to vector<8x128xf32>
    %233 = vector.extract_strided_slice %215 {offsets = [0, 256], sizes = [8, 128], strides = [1, 1]} : vector<8x384xf32> to vector<8x128xf32>
    %234 = arith.mulf %223, %233 : vector<8x128xf32>
    %235 = arith.addf %232, %234 : vector<8x128xf32>
    %236 = math.tanh %235 : vector<8x128xf32>
    %cst_58 = arith.constant 1.000000e+00 : f32
    %237 = vector.broadcast %cst_58 : f32 to vector<8x128xf32>
    %238 = arith.subf %237, %231 : vector<8x128xf32>
    %239 = arith.mulf %238, %236 : vector<8x128xf32>
    %240 = arith.mulf %231, %177 : vector<8x128xf32>
    %241 = arith.addf %239, %240 : vector<8x128xf32>
    %cst_59 = arith.constant dense<0.000000e+00> : vector<8x384xf32>
    %242 = tpu.matmul %205, %17, %cst_59 {dimension_numbers = #tpu.dot_dimension_numbers<[1], [0], [0], [1], [0, 0, 1, 1], [], []>} : vector<8x128xf32>, vector<128x384xf32>, vector<8x384xf32> -> vector<8x384xf32>
    %243 = arith.addf %242, %13 : vector<8x384xf32>
    %244 = vector.extract_strided_slice %213 {offsets = [0, 0], sizes = [8, 128], strides = [1, 1]} : vector<8x384xf32> to vector<8x128xf32>
    %245 = vector.extract_strided_slice %243 {offsets = [0, 0], sizes = [8, 128], strides = [1, 1]} : vector<8x384xf32> to vector<8x128xf32>
    %246 = arith.addf %244, %245 : vector<8x128xf32>
    %247 = arith.negf %246 : vector<8x128xf32>
    %248 = math.exp %247 : vector<8x128xf32>
    %cst_60 = arith.constant 1.000000e+00 : f32
    %249 = vector.broadcast %cst_60 : f32 to vector<8x128xf32>
    %250 = arith.addf %249, %248 : vector<8x128xf32>
    %251 = arith.divf %249, %250 : vector<8x128xf32>
    %252 = vector.extract_strided_slice %213 {offsets = [0, 128], sizes = [8, 128], strides = [1, 1]} : vector<8x384xf32> to vector<8x128xf32>
    %253 = vector.extract_strided_slice %243 {offsets = [0, 128], sizes = [8, 128], strides = [1, 1]} : vector<8x384xf32> to vector<8x128xf32>
    %254 = arith.addf %252, %253 : vector<8x128xf32>
    %255 = arith.negf %254 : vector<8x128xf32>
    %256 = math.exp %255 : vector<8x128xf32>
    %cst_61 = arith.constant 1.000000e+00 : f32
    %257 = vector.broadcast %cst_61 : f32 to vector<8x128xf32>
    %258 = arith.addf %257, %256 : vector<8x128xf32>
    %259 = arith.divf %257, %258 : vector<8x128xf32>
    %260 = vector.extract_strided_slice %213 {offsets = [0, 256], sizes = [8, 128], strides = [1, 1]} : vector<8x384xf32> to vector<8x128xf32>
    %261 = vector.extract_strided_slice %243 {offsets = [0, 256], sizes = [8, 128], strides = [1, 1]} : vector<8x384xf32> to vector<8x128xf32>
    %262 = arith.mulf %251, %261 : vector<8x128xf32>
    %263 = arith.addf %260, %262 : vector<8x128xf32>
    %264 = math.tanh %263 : vector<8x128xf32>
    %cst_62 = arith.constant 1.000000e+00 : f32
    %265 = vector.broadcast %cst_62 : f32 to vector<8x128xf32>
    %266 = arith.subf %265, %259 : vector<8x128xf32>
    %267 = arith.mulf %266, %264 : vector<8x128xf32>
    %268 = arith.mulf %259, %205 : vector<8x128xf32>
    %269 = arith.addf %267, %268 : vector<8x128xf32>
    %c3 = arith.constant 3 : index
    %c0_63 = arith.constant 0 : index
    %c0_64 = arith.constant 0 : index
    %270 = vector.load %arg5[%c3, %c0_63, %c0_64] : memref<8x8x256xf32, #tpu.memory_space<vmem>>, vector<1x8x128xf32>
    %271 = vector.shape_cast %270 : vector<1x8x128xf32> to vector<8x128xf32>
    %272 = vector.shape_cast %241 : vector<8x128xf32> to vector<1x8x128xf32>
    tpu.vector_store %arg5[%c3, %c0_63, %c0_64], %272 {strides = array<i32>} : memref<8x8x256xf32, #tpu.memory_space<vmem>>, vector<1x8x128xf32>,
    %c4 = arith.constant 4 : index
    %c0_65 = arith.constant 0 : index
    %c128_66 = arith.constant 128 : index
    %273 = vector.load %arg5[%c4, %c0_65, %c128_66] : memref<8x8x256xf32, #tpu.memory_space<vmem>>, vector<1x8x128xf32>
    %274 = vector.shape_cast %273 : vector<1x8x128xf32> to vector<8x128xf32>
    %275 = vector.shape_cast %269 : vector<8x128xf32> to vector<1x8x128xf32>
    tpu.vector_store %arg5[%c4, %c0_65, %c128_66], %275 {strides = array<i32>} : memref<8x8x256xf32, #tpu.memory_space<vmem>>, vector<1x8x128xf32>,
    %276 = vector.extract_strided_slice %5 {offsets = [32, 0], sizes = [8, 384], strides = [1, 1]} : vector<64x768xf32> to vector<8x384xf32>
    %277 = vector.extract_strided_slice %5 {offsets = [24, 384], sizes = [8, 384], strides = [1, 1]} : vector<64x768xf32> to vector<8x384xf32>
    %cst_67 = arith.constant dense<0.000000e+00> : vector<8x384xf32>
    %278 = tpu.matmul %241, %15, %cst_67 {dimension_numbers = #tpu.dot_dimension_numbers<[1], [0], [0], [1], [0, 0, 1, 1], [], []>} : vector<8x128xf32>, vector<128x384xf32>, vector<8x384xf32> -> vector<8x384xf32>
    %279 = arith.addf %278, %9 : vector<8x384xf32>
    %280 = vector.extract_strided_slice %276 {offsets = [0, 0], sizes = [8, 128], strides = [1, 1]} : vector<8x384xf32> to vector<8x128xf32>
    %281 = vector.extract_strided_slice %279 {offsets = [0, 0], sizes = [8, 128], strides = [1, 1]} : vector<8x384xf32> to vector<8x128xf32>
    %282 = arith.addf %280, %281 : vector<8x128xf32>
    %283 = arith.negf %282 : vector<8x128xf32>
    %284 = math.exp %283 : vector<8x128xf32>
    %cst_68 = arith.constant 1.000000e+00 : f32
    %285 = vector.broadcast %cst_68 : f32 to vector<8x128xf32>
    %286 = arith.addf %285, %284 : vector<8x128xf32>
    %287 = arith.divf %285, %286 : vector<8x128xf32>
    %288 = vector.extract_strided_slice %276 {offsets = [0, 128], sizes = [8, 128], strides = [1, 1]} : vector<8x384xf32> to vector<8x128xf32>
    %289 = vector.extract_strided_slice %279 {offsets = [0, 128], sizes = [8, 128], strides = [1, 1]} : vector<8x384xf32> to vector<8x128xf32>
    %290 = arith.addf %288, %289 : vector<8x128xf32>
    %291 = arith.negf %290 : vector<8x128xf32>
    %292 = math.exp %291 : vector<8x128xf32>
    %cst_69 = arith.constant 1.000000e+00 : f32
    %293 = vector.broadcast %cst_69 : f32 to vector<8x128xf32>
    %294 = arith.addf %293, %292 : vector<8x128xf32>
    %295 = arith.divf %293, %294 : vector<8x128xf32>
    %296 = vector.extract_strided_slice %276 {offsets = [0, 256], sizes = [8, 128], strides = [1, 1]} : vector<8x384xf32> to vector<8x128xf32>
    %297 = vector.extract_strided_slice %279 {offsets = [0, 256], sizes = [8, 128], strides = [1, 1]} : vector<8x384xf32> to vector<8x128xf32>
    %298 = arith.mulf %287, %297 : vector<8x128xf32>
    %299 = arith.addf %296, %298 : vector<8x128xf32>
    %300 = math.tanh %299 : vector<8x128xf32>
    %cst_70 = arith.constant 1.000000e+00 : f32
    %301 = vector.broadcast %cst_70 : f32 to vector<8x128xf32>
    %302 = arith.subf %301, %295 : vector<8x128xf32>
    %303 = arith.mulf %302, %300 : vector<8x128xf32>
    %304 = arith.mulf %295, %241 : vector<8x128xf32>
    %305 = arith.addf %303, %304 : vector<8x128xf32>
    %cst_71 = arith.constant dense<0.000000e+00> : vector<8x384xf32>
    %306 = tpu.matmul %269, %17, %cst_71 {dimension_numbers = #tpu.dot_dimension_numbers<[1], [0], [0], [1], [0, 0, 1, 1], [], []>} : vector<8x128xf32>, vector<128x384xf32>, vector<8x384xf32> -> vector<8x384xf32>
    %307 = arith.addf %306, %13 : vector<8x384xf32>
    %308 = vector.extract_strided_slice %277 {offsets = [0, 0], sizes = [8, 128], strides = [1, 1]} : vector<8x384xf32> to vector<8x128xf32>
    %309 = vector.extract_strided_slice %307 {offsets = [0, 0], sizes = [8, 128], strides = [1, 1]} : vector<8x384xf32> to vector<8x128xf32>
    %310 = arith.addf %308, %309 : vector<8x128xf32>
    %311 = arith.negf %310 : vector<8x128xf32>
    %312 = math.exp %311 : vector<8x128xf32>
    %cst_72 = arith.constant 1.000000e+00 : f32
    %313 = vector.broadcast %cst_72 : f32 to vector<8x128xf32>
    %314 = arith.addf %313, %312 : vector<8x128xf32>
    %315 = arith.divf %313, %314 : vector<8x128xf32>
    %316 = vector.extract_strided_slice %277 {offsets = [0, 128], sizes = [8, 128], strides = [1, 1]} : vector<8x384xf32> to vector<8x128xf32>
    %317 = vector.extract_strided_slice %307 {offsets = [0, 128], sizes = [8, 128], strides = [1, 1]} : vector<8x384xf32> to vector<8x128xf32>
    %318 = arith.addf %316, %317 : vector<8x128xf32>
    %319 = arith.negf %318 : vector<8x128xf32>
    %320 = math.exp %319 : vector<8x128xf32>
    %cst_73 = arith.constant 1.000000e+00 : f32
    %321 = vector.broadcast %cst_73 : f32 to vector<8x128xf32>
    %322 = arith.addf %321, %320 : vector<8x128xf32>
    %323 = arith.divf %321, %322 : vector<8x128xf32>
    %324 = vector.extract_strided_slice %277 {offsets = [0, 256], sizes = [8, 128], strides = [1, 1]} : vector<8x384xf32> to vector<8x128xf32>
    %325 = vector.extract_strided_slice %307 {offsets = [0, 256], sizes = [8, 128], strides = [1, 1]} : vector<8x384xf32> to vector<8x128xf32>
    %326 = arith.mulf %315, %325 : vector<8x128xf32>
    %327 = arith.addf %324, %326 : vector<8x128xf32>
    %328 = math.tanh %327 : vector<8x128xf32>
    %cst_74 = arith.constant 1.000000e+00 : f32
    %329 = vector.broadcast %cst_74 : f32 to vector<8x128xf32>
    %330 = arith.subf %329, %323 : vector<8x128xf32>
    %331 = arith.mulf %330, %328 : vector<8x128xf32>
    %332 = arith.mulf %323, %269 : vector<8x128xf32>
    %333 = arith.addf %331, %332 : vector<8x128xf32>
    %c4_75 = arith.constant 4 : index
    %c0_76 = arith.constant 0 : index
    %c0_77 = arith.constant 0 : index
    %334 = vector.load %arg5[%c4_75, %c0_76, %c0_77] : memref<8x8x256xf32, #tpu.memory_space<vmem>>, vector<1x8x128xf32>
    %335 = vector.shape_cast %334 : vector<1x8x128xf32> to vector<8x128xf32>
    %336 = vector.shape_cast %305 : vector<8x128xf32> to vector<1x8x128xf32>
    tpu.vector_store %arg5[%c4_75, %c0_76, %c0_77], %336 {strides = array<i32>} : memref<8x8x256xf32, #tpu.memory_space<vmem>>, vector<1x8x128xf32>,
    %c3_78 = arith.constant 3 : index
    %c0_79 = arith.constant 0 : index
    %c128_80 = arith.constant 128 : index
    %337 = vector.load %arg5[%c3_78, %c0_79, %c128_80] : memref<8x8x256xf32, #tpu.memory_space<vmem>>, vector<1x8x128xf32>
    %338 = vector.shape_cast %337 : vector<1x8x128xf32> to vector<8x128xf32>
    %339 = vector.shape_cast %333 : vector<8x128xf32> to vector<1x8x128xf32>
    tpu.vector_store %arg5[%c3_78, %c0_79, %c128_80], %339 {strides = array<i32>} : memref<8x8x256xf32, #tpu.memory_space<vmem>>, vector<1x8x128xf32>,
    %340 = vector.extract_strided_slice %5 {offsets = [40, 0], sizes = [8, 384], strides = [1, 1]} : vector<64x768xf32> to vector<8x384xf32>
    %341 = vector.extract_strided_slice %5 {offsets = [16, 384], sizes = [8, 384], strides = [1, 1]} : vector<64x768xf32> to vector<8x384xf32>
    %cst_81 = arith.constant dense<0.000000e+00> : vector<8x384xf32>
    %342 = tpu.matmul %305, %15, %cst_81 {dimension_numbers = #tpu.dot_dimension_numbers<[1], [0], [0], [1], [0, 0, 1, 1], [], []>} : vector<8x128xf32>, vector<128x384xf32>, vector<8x384xf32> -> vector<8x384xf32>
    %343 = arith.addf %342, %9 : vector<8x384xf32>
    %344 = vector.extract_strided_slice %340 {offsets = [0, 0], sizes = [8, 128], strides = [1, 1]} : vector<8x384xf32> to vector<8x128xf32>
    %345 = vector.extract_strided_slice %343 {offsets = [0, 0], sizes = [8, 128], strides = [1, 1]} : vector<8x384xf32> to vector<8x128xf32>
    %346 = arith.addf %344, %345 : vector<8x128xf32>
    %347 = arith.negf %346 : vector<8x128xf32>
    %348 = math.exp %347 : vector<8x128xf32>
    %cst_82 = arith.constant 1.000000e+00 : f32
    %349 = vector.broadcast %cst_82 : f32 to vector<8x128xf32>
    %350 = arith.addf %349, %348 : vector<8x128xf32>
    %351 = arith.divf %349, %350 : vector<8x128xf32>
    %352 = vector.extract_strided_slice %340 {offsets = [0, 128], sizes = [8, 128], strides = [1, 1]} : vector<8x384xf32> to vector<8x128xf32>
    %353 = vector.extract_strided_slice %343 {offsets = [0, 128], sizes = [8, 128], strides = [1, 1]} : vector<8x384xf32> to vector<8x128xf32>
    %354 = arith.addf %352, %353 : vector<8x128xf32>
    %355 = arith.negf %354 : vector<8x128xf32>
    %356 = math.exp %355 : vector<8x128xf32>
    %cst_83 = arith.constant 1.000000e+00 : f32
    %357 = vector.broadcast %cst_83 : f32 to vector<8x128xf32>
    %358 = arith.addf %357, %356 : vector<8x128xf32>
    %359 = arith.divf %357, %358 : vector<8x128xf32>
    %360 = vector.extract_strided_slice %340 {offsets = [0, 256], sizes = [8, 128], strides = [1, 1]} : vector<8x384xf32> to vector<8x128xf32>
    %361 = vector.extract_strided_slice %343 {offsets = [0, 256], sizes = [8, 128], strides = [1, 1]} : vector<8x384xf32> to vector<8x128xf32>
    %362 = arith.mulf %351, %361 : vector<8x128xf32>
    %363 = arith.addf %360, %362 : vector<8x128xf32>
    %364 = math.tanh %363 : vector<8x128xf32>
    %cst_84 = arith.constant 1.000000e+00 : f32
    %365 = vector.broadcast %cst_84 : f32 to vector<8x128xf32>
    %366 = arith.subf %365, %359 : vector<8x128xf32>
    %367 = arith.mulf %366, %364 : vector<8x128xf32>
    %368 = arith.mulf %359, %305 : vector<8x128xf32>
    %369 = arith.addf %367, %368 : vector<8x128xf32>
    %cst_85 = arith.constant dense<0.000000e+00> : vector<8x384xf32>
    %370 = tpu.matmul %333, %17, %cst_85 {dimension_numbers = #tpu.dot_dimension_numbers<[1], [0], [0], [1], [0, 0, 1, 1], [], []>} : vector<8x128xf32>, vector<128x384xf32>, vector<8x384xf32> -> vector<8x384xf32>
    %371 = arith.addf %370, %13 : vector<8x384xf32>
    %372 = vector.extract_strided_slice %341 {offsets = [0, 0], sizes = [8, 128], strides = [1, 1]} : vector<8x384xf32> to vector<8x128xf32>
    %373 = vector.extract_strided_slice %371 {offsets = [0, 0], sizes = [8, 128], strides = [1, 1]} : vector<8x384xf32> to vector<8x128xf32>
    %374 = arith.addf %372, %373 : vector<8x128xf32>
    %375 = arith.negf %374 : vector<8x128xf32>
    %376 = math.exp %375 : vector<8x128xf32>
    %cst_86 = arith.constant 1.000000e+00 : f32
    %377 = vector.broadcast %cst_86 : f32 to vector<8x128xf32>
    %378 = arith.addf %377, %376 : vector<8x128xf32>
    %379 = arith.divf %377, %378 : vector<8x128xf32>
    %380 = vector.extract_strided_slice %341 {offsets = [0, 128], sizes = [8, 128], strides = [1, 1]} : vector<8x384xf32> to vector<8x128xf32>
    %381 = vector.extract_strided_slice %371 {offsets = [0, 128], sizes = [8, 128], strides = [1, 1]} : vector<8x384xf32> to vector<8x128xf32>
    %382 = arith.addf %380, %381 : vector<8x128xf32>
    %383 = arith.negf %382 : vector<8x128xf32>
    %384 = math.exp %383 : vector<8x128xf32>
    %cst_87 = arith.constant 1.000000e+00 : f32
    %385 = vector.broadcast %cst_87 : f32 to vector<8x128xf32>
    %386 = arith.addf %385, %384 : vector<8x128xf32>
    %387 = arith.divf %385, %386 : vector<8x128xf32>
    %388 = vector.extract_strided_slice %341 {offsets = [0, 256], sizes = [8, 128], strides = [1, 1]} : vector<8x384xf32> to vector<8x128xf32>
    %389 = vector.extract_strided_slice %371 {offsets = [0, 256], sizes = [8, 128], strides = [1, 1]} : vector<8x384xf32> to vector<8x128xf32>
    %390 = arith.mulf %379, %389 : vector<8x128xf32>
    %391 = arith.addf %388, %390 : vector<8x128xf32>
    %392 = math.tanh %391 : vector<8x128xf32>
    %cst_88 = arith.constant 1.000000e+00 : f32
    %393 = vector.broadcast %cst_88 : f32 to vector<8x128xf32>
    %394 = arith.subf %393, %387 : vector<8x128xf32>
    %395 = arith.mulf %394, %392 : vector<8x128xf32>
    %396 = arith.mulf %387, %333 : vector<8x128xf32>
    %397 = arith.addf %395, %396 : vector<8x128xf32>
    %c5_89 = arith.constant 5 : index
    %c0_90 = arith.constant 0 : index
    %c0_91 = arith.constant 0 : index
    %398 = vector.load %arg5[%c5_89, %c0_90, %c0_91] : memref<8x8x256xf32, #tpu.memory_space<vmem>>, vector<1x8x128xf32>
    %399 = vector.shape_cast %398 : vector<1x8x128xf32> to vector<8x128xf32>
    %400 = vector.shape_cast %369 : vector<8x128xf32> to vector<1x8x128xf32>
    tpu.vector_store %arg5[%c5_89, %c0_90, %c0_91], %400 {strides = array<i32>} : memref<8x8x256xf32, #tpu.memory_space<vmem>>, vector<1x8x128xf32>,
    %c2_92 = arith.constant 2 : index
    %c0_93 = arith.constant 0 : index
    %c128_94 = arith.constant 128 : index
    %401 = vector.load %arg5[%c2_92, %c0_93, %c128_94] : memref<8x8x256xf32, #tpu.memory_space<vmem>>, vector<1x8x128xf32>
    %402 = vector.shape_cast %401 : vector<1x8x128xf32> to vector<8x128xf32>
    %403 = vector.shape_cast %397 : vector<8x128xf32> to vector<1x8x128xf32>
    tpu.vector_store %arg5[%c2_92, %c0_93, %c128_94], %403 {strides = array<i32>} : memref<8x8x256xf32, #tpu.memory_space<vmem>>, vector<1x8x128xf32>,
    %404 = vector.extract_strided_slice %5 {offsets = [48, 0], sizes = [8, 384], strides = [1, 1]} : vector<64x768xf32> to vector<8x384xf32>
    %405 = vector.extract_strided_slice %5 {offsets = [8, 384], sizes = [8, 384], strides = [1, 1]} : vector<64x768xf32> to vector<8x384xf32>
    %cst_95 = arith.constant dense<0.000000e+00> : vector<8x384xf32>
    %406 = tpu.matmul %369, %15, %cst_95 {dimension_numbers = #tpu.dot_dimension_numbers<[1], [0], [0], [1], [0, 0, 1, 1], [], []>} : vector<8x128xf32>, vector<128x384xf32>, vector<8x384xf32> -> vector<8x384xf32>
    %407 = arith.addf %406, %9 : vector<8x384xf32>
    %408 = vector.extract_strided_slice %404 {offsets = [0, 0], sizes = [8, 128], strides = [1, 1]} : vector<8x384xf32> to vector<8x128xf32>
    %409 = vector.extract_strided_slice %407 {offsets = [0, 0], sizes = [8, 128], strides = [1, 1]} : vector<8x384xf32> to vector<8x128xf32>
    %410 = arith.addf %408, %409 : vector<8x128xf32>
    %411 = arith.negf %410 : vector<8x128xf32>
    %412 = math.exp %411 : vector<8x128xf32>
    %cst_96 = arith.constant 1.000000e+00 : f32
    %413 = vector.broadcast %cst_96 : f32 to vector<8x128xf32>
    %414 = arith.addf %413, %412 : vector<8x128xf32>
    %415 = arith.divf %413, %414 : vector<8x128xf32>
    %416 = vector.extract_strided_slice %404 {offsets = [0, 128], sizes = [8, 128], strides = [1, 1]} : vector<8x384xf32> to vector<8x128xf32>
    %417 = vector.extract_strided_slice %407 {offsets = [0, 128], sizes = [8, 128], strides = [1, 1]} : vector<8x384xf32> to vector<8x128xf32>
    %418 = arith.addf %416, %417 : vector<8x128xf32>
    %419 = arith.negf %418 : vector<8x128xf32>
    %420 = math.exp %419 : vector<8x128xf32>
    %cst_97 = arith.constant 1.000000e+00 : f32
    %421 = vector.broadcast %cst_97 : f32 to vector<8x128xf32>
    %422 = arith.addf %421, %420 : vector<8x128xf32>
    %423 = arith.divf %421, %422 : vector<8x128xf32>
    %424 = vector.extract_strided_slice %404 {offsets = [0, 256], sizes = [8, 128], strides = [1, 1]} : vector<8x384xf32> to vector<8x128xf32>
    %425 = vector.extract_strided_slice %407 {offsets = [0, 256], sizes = [8, 128], strides = [1, 1]} : vector<8x384xf32> to vector<8x128xf32>
    %426 = arith.mulf %415, %425 : vector<8x128xf32>
    %427 = arith.addf %424, %426 : vector<8x128xf32>
    %428 = math.tanh %427 : vector<8x128xf32>
    %cst_98 = arith.constant 1.000000e+00 : f32
    %429 = vector.broadcast %cst_98 : f32 to vector<8x128xf32>
    %430 = arith.subf %429, %423 : vector<8x128xf32>
    %431 = arith.mulf %430, %428 : vector<8x128xf32>
    %432 = arith.mulf %423, %369 : vector<8x128xf32>
    %433 = arith.addf %431, %432 : vector<8x128xf32>
    %cst_99 = arith.constant dense<0.000000e+00> : vector<8x384xf32>
    %434 = tpu.matmul %397, %17, %cst_99 {dimension_numbers = #tpu.dot_dimension_numbers<[1], [0], [0], [1], [0, 0, 1, 1], [], []>} : vector<8x128xf32>, vector<128x384xf32>, vector<8x384xf32> -> vector<8x384xf32>
    %435 = arith.addf %434, %13 : vector<8x384xf32>
    %436 = vector.extract_strided_slice %405 {offsets = [0, 0], sizes = [8, 128], strides = [1, 1]} : vector<8x384xf32> to vector<8x128xf32>
    %437 = vector.extract_strided_slice %435 {offsets = [0, 0], sizes = [8, 128], strides = [1, 1]} : vector<8x384xf32> to vector<8x128xf32>
    %438 = arith.addf %436, %437 : vector<8x128xf32>
    %439 = arith.negf %438 : vector<8x128xf32>
    %440 = math.exp %439 : vector<8x128xf32>
    %cst_100 = arith.constant 1.000000e+00 : f32
    %441 = vector.broadcast %cst_100 : f32 to vector<8x128xf32>
    %442 = arith.addf %441, %440 : vector<8x128xf32>
    %443 = arith.divf %441, %442 : vector<8x128xf32>
    %444 = vector.extract_strided_slice %405 {offsets = [0, 128], sizes = [8, 128], strides = [1, 1]} : vector<8x384xf32> to vector<8x128xf32>
    %445 = vector.extract_strided_slice %435 {offsets = [0, 128], sizes = [8, 128], strides = [1, 1]} : vector<8x384xf32> to vector<8x128xf32>
    %446 = arith.addf %444, %445 : vector<8x128xf32>
    %447 = arith.negf %446 : vector<8x128xf32>
    %448 = math.exp %447 : vector<8x128xf32>
    %cst_101 = arith.constant 1.000000e+00 : f32
    %449 = vector.broadcast %cst_101 : f32 to vector<8x128xf32>
    %450 = arith.addf %449, %448 : vector<8x128xf32>
    %451 = arith.divf %449, %450 : vector<8x128xf32>
    %452 = vector.extract_strided_slice %405 {offsets = [0, 256], sizes = [8, 128], strides = [1, 1]} : vector<8x384xf32> to vector<8x128xf32>
    %453 = vector.extract_strided_slice %435 {offsets = [0, 256], sizes = [8, 128], strides = [1, 1]} : vector<8x384xf32> to vector<8x128xf32>
    %454 = arith.mulf %443, %453 : vector<8x128xf32>
    %455 = arith.addf %452, %454 : vector<8x128xf32>
    %456 = math.tanh %455 : vector<8x128xf32>
    %cst_102 = arith.constant 1.000000e+00 : f32
    %457 = vector.broadcast %cst_102 : f32 to vector<8x128xf32>
    %458 = arith.subf %457, %451 : vector<8x128xf32>
    %459 = arith.mulf %458, %456 : vector<8x128xf32>
    %460 = arith.mulf %451, %397 : vector<8x128xf32>
    %461 = arith.addf %459, %460 : vector<8x128xf32>
    %c6_103 = arith.constant 6 : index
    %c0_104 = arith.constant 0 : index
    %c0_105 = arith.constant 0 : index
    %462 = vector.load %arg5[%c6_103, %c0_104, %c0_105] : memref<8x8x256xf32, #tpu.memory_space<vmem>>, vector<1x8x128xf32>
    %463 = vector.shape_cast %462 : vector<1x8x128xf32> to vector<8x128xf32>
    %464 = vector.shape_cast %433 : vector<8x128xf32> to vector<1x8x128xf32>
    tpu.vector_store %arg5[%c6_103, %c0_104, %c0_105], %464 {strides = array<i32>} : memref<8x8x256xf32, #tpu.memory_space<vmem>>, vector<1x8x128xf32>,
    %c1_106 = arith.constant 1 : index
    %c0_107 = arith.constant 0 : index
    %c128_108 = arith.constant 128 : index
    %465 = vector.load %arg5[%c1_106, %c0_107, %c128_108] : memref<8x8x256xf32, #tpu.memory_space<vmem>>, vector<1x8x128xf32>
    %466 = vector.shape_cast %465 : vector<1x8x128xf32> to vector<8x128xf32>
    %467 = vector.shape_cast %461 : vector<8x128xf32> to vector<1x8x128xf32>
    tpu.vector_store %arg5[%c1_106, %c0_107, %c128_108], %467 {strides = array<i32>} : memref<8x8x256xf32, #tpu.memory_space<vmem>>, vector<1x8x128xf32>,
    %468 = vector.extract_strided_slice %5 {offsets = [56, 0], sizes = [8, 384], strides = [1, 1]} : vector<64x768xf32> to vector<8x384xf32>
    %469 = vector.extract_strided_slice %5 {offsets = [0, 384], sizes = [8, 384], strides = [1, 1]} : vector<64x768xf32> to vector<8x384xf32>
    %cst_109 = arith.constant dense<0.000000e+00> : vector<8x384xf32>
    %470 = tpu.matmul %433, %15, %cst_109 {dimension_numbers = #tpu.dot_dimension_numbers<[1], [0], [0], [1], [0, 0, 1, 1], [], []>} : vector<8x128xf32>, vector<128x384xf32>, vector<8x384xf32> -> vector<8x384xf32>
    %471 = arith.addf %470, %9 : vector<8x384xf32>
    %472 = vector.extract_strided_slice %468 {offsets = [0, 0], sizes = [8, 128], strides = [1, 1]} : vector<8x384xf32> to vector<8x128xf32>
    %473 = vector.extract_strided_slice %471 {offsets = [0, 0], sizes = [8, 128], strides = [1, 1]} : vector<8x384xf32> to vector<8x128xf32>
    %474 = arith.addf %472, %473 : vector<8x128xf32>
    %475 = arith.negf %474 : vector<8x128xf32>
    %476 = math.exp %475 : vector<8x128xf32>
    %cst_110 = arith.constant 1.000000e+00 : f32
    %477 = vector.broadcast %cst_110 : f32 to vector<8x128xf32>
    %478 = arith.addf %477, %476 : vector<8x128xf32>
    %479 = arith.divf %477, %478 : vector<8x128xf32>
    %480 = vector.extract_strided_slice %468 {offsets = [0, 128], sizes = [8, 128], strides = [1, 1]} : vector<8x384xf32> to vector<8x128xf32>
    %481 = vector.extract_strided_slice %471 {offsets = [0, 128], sizes = [8, 128], strides = [1, 1]} : vector<8x384xf32> to vector<8x128xf32>
    %482 = arith.addf %480, %481 : vector<8x128xf32>
    %483 = arith.negf %482 : vector<8x128xf32>
    %484 = math.exp %483 : vector<8x128xf32>
    %cst_111 = arith.constant 1.000000e+00 : f32
    %485 = vector.broadcast %cst_111 : f32 to vector<8x128xf32>
    %486 = arith.addf %485, %484 : vector<8x128xf32>
    %487 = arith.divf %485, %486 : vector<8x128xf32>
    %488 = vector.extract_strided_slice %468 {offsets = [0, 256], sizes = [8, 128], strides = [1, 1]} : vector<8x384xf32> to vector<8x128xf32>
    %489 = vector.extract_strided_slice %471 {offsets = [0, 256], sizes = [8, 128], strides = [1, 1]} : vector<8x384xf32> to vector<8x128xf32>
    %490 = arith.mulf %479, %489 : vector<8x128xf32>
    %491 = arith.addf %488, %490 : vector<8x128xf32>
    %492 = math.tanh %491 : vector<8x128xf32>
    %cst_112 = arith.constant 1.000000e+00 : f32
    %493 = vector.broadcast %cst_112 : f32 to vector<8x128xf32>
    %494 = arith.subf %493, %487 : vector<8x128xf32>
    %495 = arith.mulf %494, %492 : vector<8x128xf32>
    %496 = arith.mulf %487, %433 : vector<8x128xf32>
    %497 = arith.addf %495, %496 : vector<8x128xf32>
    %cst_113 = arith.constant dense<0.000000e+00> : vector<8x384xf32>
    %498 = tpu.matmul %461, %17, %cst_113 {dimension_numbers = #tpu.dot_dimension_numbers<[1], [0], [0], [1], [0, 0, 1, 1], [], []>} : vector<8x128xf32>, vector<128x384xf32>, vector<8x384xf32> -> vector<8x384xf32>
    %499 = arith.addf %498, %13 : vector<8x384xf32>
    %500 = vector.extract_strided_slice %469 {offsets = [0, 0], sizes = [8, 128], strides = [1, 1]} : vector<8x384xf32> to vector<8x128xf32>
    %501 = vector.extract_strided_slice %499 {offsets = [0, 0], sizes = [8, 128], strides = [1, 1]} : vector<8x384xf32> to vector<8x128xf32>
    %502 = arith.addf %500, %501 : vector<8x128xf32>
    %503 = arith.negf %502 : vector<8x128xf32>
    %504 = math.exp %503 : vector<8x128xf32>
    %cst_114 = arith.constant 1.000000e+00 : f32
    %505 = vector.broadcast %cst_114 : f32 to vector<8x128xf32>
    %506 = arith.addf %505, %504 : vector<8x128xf32>
    %507 = arith.divf %505, %506 : vector<8x128xf32>
    %508 = vector.extract_strided_slice %469 {offsets = [0, 128], sizes = [8, 128], strides = [1, 1]} : vector<8x384xf32> to vector<8x128xf32>
    %509 = vector.extract_strided_slice %499 {offsets = [0, 128], sizes = [8, 128], strides = [1, 1]} : vector<8x384xf32> to vector<8x128xf32>
    %510 = arith.addf %508, %509 : vector<8x128xf32>
    %511 = arith.negf %510 : vector<8x128xf32>
    %512 = math.exp %511 : vector<8x128xf32>
    %cst_115 = arith.constant 1.000000e+00 : f32
    %513 = vector.broadcast %cst_115 : f32 to vector<8x128xf32>
    %514 = arith.addf %513, %512 : vector<8x128xf32>
    %515 = arith.divf %513, %514 : vector<8x128xf32>
    %516 = vector.extract_strided_slice %469 {offsets = [0, 256], sizes = [8, 128], strides = [1, 1]} : vector<8x384xf32> to vector<8x128xf32>
    %517 = vector.extract_strided_slice %499 {offsets = [0, 256], sizes = [8, 128], strides = [1, 1]} : vector<8x384xf32> to vector<8x128xf32>
    %518 = arith.mulf %507, %517 : vector<8x128xf32>
    %519 = arith.addf %516, %518 : vector<8x128xf32>
    %520 = math.tanh %519 : vector<8x128xf32>
    %cst_116 = arith.constant 1.000000e+00 : f32
    %521 = vector.broadcast %cst_116 : f32 to vector<8x128xf32>
    %522 = arith.subf %521, %515 : vector<8x128xf32>
    %523 = arith.mulf %522, %520 : vector<8x128xf32>
    %524 = arith.mulf %515, %461 : vector<8x128xf32>
    %525 = arith.addf %523, %524 : vector<8x128xf32>
    %c7_117 = arith.constant 7 : index
    %c0_118 = arith.constant 0 : index
    %c0_119 = arith.constant 0 : index
    %526 = vector.load %arg5[%c7_117, %c0_118, %c0_119] : memref<8x8x256xf32, #tpu.memory_space<vmem>>, vector<1x8x128xf32>
    %527 = vector.shape_cast %526 : vector<1x8x128xf32> to vector<8x128xf32>
    %528 = vector.shape_cast %497 : vector<8x128xf32> to vector<1x8x128xf32>
    tpu.vector_store %arg5[%c7_117, %c0_118, %c0_119], %528 {strides = array<i32>} : memref<8x8x256xf32, #tpu.memory_space<vmem>>, vector<1x8x128xf32>,
    %c0_120 = arith.constant 0 : index
    %c0_121 = arith.constant 0 : index
    %c128_122 = arith.constant 128 : index
    %529 = vector.load %arg5[%c0_120, %c0_121, %c128_122] : memref<8x8x256xf32, #tpu.memory_space<vmem>>, vector<1x8x128xf32>
    %530 = vector.shape_cast %529 : vector<1x8x128xf32> to vector<8x128xf32>
    %531 = vector.shape_cast %525 : vector<8x128xf32> to vector<1x8x128xf32>
    tpu.vector_store %arg5[%c0_120, %c0_121, %c128_122], %531 {strides = array<i32>} : memref<8x8x256xf32, #tpu.memory_space<vmem>>, vector<1x8x128xf32>,
    %c0_123 = arith.constant 0 : index
    %c0_124 = arith.constant 0 : index
    %c0_125 = arith.constant 0 : index
    %532 = vector.load %arg6[%c0_123, %c0_124, %c0_125] : memref<2x8x128xf32, #tpu.memory_space<vmem>>, vector<1x8x128xf32>
    %533 = vector.shape_cast %532 : vector<1x8x128xf32> to vector<8x128xf32>
    %534 = vector.shape_cast %497 : vector<8x128xf32> to vector<1x8x128xf32>
    tpu.vector_store %arg6[%c0_123, %c0_124, %c0_125], %534 {strides = array<i32>} : memref<2x8x128xf32, #tpu.memory_space<vmem>>, vector<1x8x128xf32>,
    %c1_126 = arith.constant 1 : index
    %c0_127 = arith.constant 0 : index
    %c0_128 = arith.constant 0 : index
    %535 = vector.load %arg6[%c1_126, %c0_127, %c0_128] : memref<2x8x128xf32, #tpu.memory_space<vmem>>, vector<1x8x128xf32>
    %536 = vector.shape_cast %535 : vector<1x8x128xf32> to vector<8x128xf32>
    %537 = vector.shape_cast %525 : vector<8x128xf32> to vector<1x8x128xf32>
    tpu.vector_store %arg6[%c1_126, %c0_127, %c0_128], %537 {strides = array<i32>} : memref<2x8x128xf32, #tpu.memory_space<vmem>>, vector<1x8x128xf32>,
    return
  }
}

</mosaic_0001>

<llo_original>
// kernel: tpu_custom_call.1
$region0: #{tpu_custom_call.1}
  #allocation0 [shape = 'u32[]', space=smem, size = 0x4, offset = 0x4, fixed_abs, tag = 'smem constant byte address 0x4 - core index']
  #allocation1 [shape = 'u32[72,128]{1,0:T(1,128)}', space=vmem, size = 0x9000, scoped, tag = 'internal scratch']
  #allocation2 [shape = 'f32[2,128,384]{2,1,0:T(8,128)}', space=vmem, size = 0x60000, scoped, tag = 'scratch operand']
  #allocation3 [shape = 's32[1]{0}', space=sflag, size = 0x4, scoped, tag = 'scratch operand']
  #allocation15 [shape = 's32[]', space=sflag, size = 0x4, offset = 0, fixed_abs, tag = 'sflag constant byte address 0x0 - dummy sync flag']
  #allocation16 [shape = 's32[]', space=sflag, size = 0x4, offset = 0, fixed_abs, tag = 'sflag constant byte address 0x0 - dummy sync flag']
  #allocation17 [shape = 'u32[]', space=smem, size = 0x4, offset = 0x44, fixed_abs, tag = 'smem constant byte address 0x44 - assertion arg 0']
  #allocation18 [shape = 'u32[]', space=smem, size = 0x4, offset = 0x48, fixed_abs, tag = 'smem constant byte address 0x48 - assertion arg 1']
  %s0 = inlined_call_operand.hbm [shape: f32[64,384], index: 0, kind: input, shape index: {}]
  %s1 = inlined_call_operand.hbm [shape: f32[384,768], index: 1, kind: input, shape index: {}]
  %s2 = inlined_call_operand.hbm [shape: f32[1,768], index: 2, kind: input, shape index: {}]
  %s3 = inlined_call_operand.hbm [shape: f32[2,1,384], index: 3, kind: input, shape index: {}]
  %s4 = inlined_call_operand.hbm [shape: f32[2,128,384], index: 4, kind: input, shape index: {}]
  %s5 = inlined_call_operand.hbm [shape: f32[8,8,256], index: 5, kind: output, shape index: {0}]
  %s6 = inlined_call_operand.hbm [shape: f32[2,8,128], index: 6, kind: output, shape index: {1}]
  %7 = xla_tuple %s5, %s6
  %s8 = sld [smem:[#allocation0]]
  $region54: #{tpu_custom_call.1} parent=0
    _
  %s10 = ssub.s32 1, %s8
  %s11 = scalar_select 0, %s10, %s8
  $region1: #{tpu_custom_call.1} parent=0
    #allocation4 [shape = 'u8[98304]{0}', space=vmem, size = 0x18000, scoped, tag = 'input window, operand 0, single buffered']
    #allocation5 [shape = 's32[1]{0}', space=sflag, size = 0x4, scoped, tag = 'scoped memory for tpu_custom_call.1']
    #allocation6 [shape = 's32[1]{0}', space=sflag, size = 0x4, scoped, tag = 'scoped memory for tpu_custom_call.1']
    #allocation7 [shape = 'u8[1179648]{0}', space=vmem, size = 0x120000, scoped, tag = 'input window, operand 1, single buffered']
    #allocation8 [shape = 's32[1]{0}', space=sflag, size = 0x4, scoped, tag = 'scoped memory for tpu_custom_call.1']
    #allocation9 [shape = 'u8[3072]{0}', space=vmem, size = 0xc00, scoped, tag = 'input window, operand 2, single buffered']
    #allocation10 [shape = 'u8[3072]{0}', space=vmem, size = 0xc00, scoped, tag = 'input window, operand 3, single buffered']
    #allocation11 [shape = 's32[1]{0}', space=sflag, size = 0x4, scoped, tag = 'scoped memory for tpu_custom_call.1']
    #allocation12 [shape = 'u8[65536]{0}', space=vmem, size = 0x10000, scoped, tag = 'output window, operand 0, single buffered']
    #allocation13 [shape = 'u8[8192]{0}', space=vmem, size = 0x2000, scoped, tag = 'output window, operand 1, single buffered']
    #allocation14 [shape = 's32[1]{0}', space=sflag, size = 0x4, scoped, tag = 'scoped memory for tpu_custom_call.1']
    %12 = vsyncpa [#allocation5], 0
    %13 = vsyncpa [#allocation8], 0
    %14 = vsyncpa [#allocation11], 0
    %15 = vsyncpa [#allocation6], 0
    %16 = vsyncpa [#allocation14], 0
    // Predicated region
    $region2: #{tpu_custom_call.1} parent=1 // pred_check
      _
    $region3: #{tpu_custom_call.1} parent=1 // pred_check_branch
      %18 = sbr.rel (0) target = $region5
    $region4: #{tpu_custom_call.1} parent=1 // pred_region
      %20 = vsyncadd [#allocation5], 0
      %s21 = sshll.u32 %s0, 4
      %s22 = int_to_ptr.hbm [resolvable:$true] %s21
      %s23 = sshll.u32 [#allocation4], 4
      %s24 = int_to_ptr.vmem [resolvable:$true] %s23
      %29 = dma.hbm_to_vmem [thread:$0]  %s22, 3072, %s24, [#allocation5], 384, 384, 24
    $region5: #{tpu_custom_call.1} parent=1 // pred_fallthru
      _
    // Predicated region
    $region6: #{tpu_custom_call.1} parent=1 // pred_check
      _
    $region7: #{tpu_custom_call.1} parent=1 // pred_check_branch
      %31 = sbr.rel (0) target = $region9
    $region8: #{tpu_custom_call.1} parent=1 // pred_region
      %33 = vsyncadd [#allocation8], 0
      %s34 = sshll.u32 %s1, 4
      %s35 = int_to_ptr.hbm [resolvable:$true] %s34
      %s36 = sshll.u32 [#allocation7], 4
      %s37 = int_to_ptr.vmem [resolvable:$true] %s36
      %42 = dma.hbm_to_vmem [thread:$0]  %s35, 36864, %s37, [#allocation8], 768, 768, 48
    $region9: #{tpu_custom_call.1} parent=1 // pred_fallthru
      _
    // Predicated region
    $region10: #{tpu_custom_call.1} parent=1 // pred_check
      _
    $region11: #{tpu_custom_call.1} parent=1 // pred_check_branch
      %44 = sbr.rel (0) target = $region13
    $region12: #{tpu_custom_call.1} parent=1 // pred_region
      %46 = vsyncadd [#allocation8], 0
      %s48 = sshll.u32 %s2, 4
      %s49 = int_to_ptr.hbm [resolvable:$true] %s48
      %s50 = sshll.u32 [#allocation9], 4
      %s51 = int_to_ptr.vmem [resolvable:$true] %s50
      %53 = dma.hbm_to_vmem [thread:$0]  %s49, 96, %s51, [#allocation8]
    $region13: #{tpu_custom_call.1} parent=1 // pred_fallthru
      _
    // Predicated region
    $region14: #{tpu_custom_call.1} parent=1 // pred_check
      _
    $region15: #{tpu_custom_call.1} parent=1 // pred_check_branch
      %55 = sbr.rel (0) target = $region17
    $region16: #{tpu_custom_call.1} parent=1 // pred_region
      %57 = vsyncadd [#allocation11], 0
      %s58 = sshll.u32 %s3, 4
      %s59 = int_to_ptr.hbm [resolvable:$true] %s58
      %s60 = sshll.u32 [#allocation10], 4
      %s61 = int_to_ptr.vmem [resolvable:$true] %s60
      %66 = dma.hbm_to_vmem [thread:$0]  %s59, 96, %s61, [#allocation11], 48, 48, 3
    $region17: #{tpu_custom_call.1} parent=1 // pred_fallthru
      _
    // Predicated region
    $region18: #{tpu_custom_call.1} parent=1 // pred_check
      _
    $region19: #{tpu_custom_call.1} parent=1 // pred_check_branch
      %68 = sbr.rel (0) target = $region21
    $region20: #{tpu_custom_call.1} parent=1 // pred_region
      %70 = dma.done [#allocation5], 3072
    $region21: #{tpu_custom_call.1} parent=1 // pred_fallthru
      _
    // Predicated region
    $region22: #{tpu_custom_call.1} parent=1 // pred_check
      _
    $region23: #{tpu_custom_call.1} parent=1 // pred_check_branch
      %72 = sbr.rel (0) target = $region25
    $region24: #{tpu_custom_call.1} parent=1 // pred_region
      %74 = dma.done [#allocation8], 36864
    $region25: #{tpu_custom_call.1} parent=1 // pred_fallthru
      _
    // Predicated region
    $region26: #{tpu_custom_call.1} parent=1 // pred_check
      _
    $region27: #{tpu_custom_call.1} parent=1 // pred_check_branch
      %76 = sbr.rel (0) target = $region29
    $region28: #{tpu_custom_call.1} parent=1 // pred_region
      %78 = dma.done [#allocation8], 96
    $region29: #{tpu_custom_call.1} parent=1 // pred_fallthru
      _
    // Predicated region
    $region30: #{tpu_custom_call.1} parent=1 // pred_check
      _
    $region31: #{tpu_custom_call.1} parent=1 // pred_check_branch
      %80 = sbr.rel (0) target = $region33
    $region32: #{tpu_custom_call.1} parent=1 // pred_region
      %82 = dma.done [#allocation11], 96
    $region33: #{tpu_custom_call.1} parent=1 // pred_fallthru
      _
    // Predicated region
    $region34: #{tpu_custom_call.1} parent=1 // pred_check
      _
    $region35: #{tpu_custom_call.1} parent=1 // pred_check_branch
      %84 = sbr.rel target = $region37
    $region36: #{tpu_custom_call.1} parent=1 // pred_region
      %85 = sst [smem:[#allocation17]] [#allocation16]
      %86 = sst [smem:[#allocation18]] [#allocation15]
    $region37: #{tpu_custom_call.1} parent=1 // pred_fallthru
      _
    %88 = shalt.err (0)
    %s90 = sshll.u32 %s4, 4
    %s91 = int_to_ptr.hbm [resolvable:$true] %s90
    %s92 = sshll.u32 [#allocation2], 4
    %s93 = int_to_ptr.vmem [resolvable:$true] %s92
    %95 = dma.hbm_to_vmem [thread:$0]  %s91, 12288, %s93, [#allocation3]
    %v96 = vld [vmem:[#allocation4] sm:$0xff]
    %v97 = vld [vmem:[#allocation4 + $0x8] sm:$0xff]
    %v98 = vld [vmem:[#allocation4 + $0x10] sm:$0xff]
    %v99 = vld [vmem:[#allocation4 + $0x18] sm:$0xff]
    %v100 = vld [vmem:[#allocation4 + $0x20] sm:$0xff]
    %v101 = vld [vmem:[#allocation4 + $0x28] sm:$0xff]
    %v102 = vld [vmem:[#allocation4 + $0x30] sm:$0xff]
    %v103 = vld [vmem:[#allocation4 + $0x38] sm:$0xff]
    %v104 = vld [vmem:[#allocation4 + $0x40] sm:$0xff]
    %v105 = vld [vmem:[#allocation4 + $0x48] sm:$0xff]
    %v106 = vld [vmem:[#allocation4 + $0x50] sm:$0xff]
    %v107 = vld [vmem:[#allocation4 + $0x58] sm:$0xff]
    %v108 = vld [vmem:[#allocation4 + $0x60] sm:$0xff]
    %v109 = vld [vmem:[#allocation4 + $0x68] sm:$0xff]
    %v110 = vld [vmem:[#allocation4 + $0x70] sm:$0xff]
    %v111 = vld [vmem:[#allocation4 + $0x78] sm:$0xff]
    %v112 = vld [vmem:[#allocation4 + $0x80] sm:$0xff]
    %v113 = vld [vmem:[#allocation4 + $0x88] sm:$0xff]
    %v114 = vld [vmem:[#allocation4 + $0x90] sm:$0xff]
    %v115 = vld [vmem:[#allocation4 + $0x98] sm:$0xff]
    %v116 = vld [vmem:[#allocation4 + $0xa0] sm:$0xff]
    %v117 = vld [vmem:[#allocation4 + $0xa8] sm:$0xff]
    %v118 = vld [vmem:[#allocation4 + $0xb0] sm:$0xff]
    %v119 = vld [vmem:[#allocation4 + $0xb8] sm:$0xff]
    %v120 = vld [vmem:[#allocation7] sm:$0xff]
    %v121 = vld [vmem:[#allocation7 + $0x8] sm:$0xff]
    %v122 = vld [vmem:[#allocation7 + $0x10] sm:$0xff]
    %v123 = vld [vmem:[#allocation7 + $0x18] sm:$0xff]
    %v124 = vld [vmem:[#allocation7 + $0x20] sm:$0xff]
    %v125 = vld [vmem:[#allocation7 + $0x28] sm:$0xff]
    %v126 = vld [vmem:[#allocation7 + $0x30] sm:$0xff]
    %v127 = vld [vmem:[#allocation7 + $0x38] sm:$0xff]
    %v128 = vld [vmem:[#allocation7 + $0x40] sm:$0xff]
    %v129 = vld [vmem:[#allocation7 + $0x48] sm:$0xff]
    %v130 = vld [vmem:[#allocation7 + $0x50] sm:$0xff]
    %v131 = vld [vmem:[#allocation7 + $0x58] sm:$0xff]
    %v132 = vld [vmem:[#allocation7 + $0x60] sm:$0xff]
    %v133 = vld [vmem:[#allocation7 + $0x68] sm:$0xff]
    %v134 = vld [vmem:[#allocation7 + $0x70] sm:$0xff]
    %v135 = vld [vmem:[#allocation7 + $0x78] sm:$0xff]
    %v136 = vld [vmem:[#allocation7 + $0x80] sm:$0xff]
    %v137 = vld [vmem:[#allocation7 + $0x88] sm:$0xff]
    %v138 = vld [vmem:[#allocation7 + $0x90] sm:$0xff]
    %v139 = vld [vmem:[#allocation7 + $0x98] sm:$0xff]
    %v140 = vld [vmem:[#allocation7 + $0xa0] sm:$0xff]
    %v141 = vld [vmem:[#allocation7 + $0xa8] sm:$0xff]
    %v142 = vld [vmem:[#allocation7 + $0xb0] sm:$0xff]
    %v143 = vld [vmem:[#allocation7 + $0xb8] sm:$0xff]
    %v144 = vld [vmem:[#allocation7 + $0xc0] sm:$0xff]
    %v145 = vld [vmem:[#allocation7 + $0xc8] sm:$0xff]
    %v146 = vld [vmem:[#allocation7 + $0xd0] sm:$0xff]
    %v147 = vld [vmem:[#allocation7 + $0xd8] sm:$0xff]
    %v148 = vld [vmem:[#allocation7 + $0xe0] sm:$0xff]
    %v149 = vld [vmem:[#allocation7 + $0xe8] sm:$0xff]
    %v150 = vld [vmem:[#allocation7 + $0xf0] sm:$0xff]
    %v151 = vld [vmem:[#allocation7 + $0xf8] sm:$0xff]
    %v152 = vld [vmem:[#allocation7 + $0x100] sm:$0xff]
    %v153 = vld [vmem:[#allocation7 + $0x108] sm:$0xff]
    %v154 = vld [vmem:[#allocation7 + $0x110] sm:$0xff]
    %v155 = vld [vmem:[#allocation7 + $0x118] sm:$0xff]
    %v156 = vld [vmem:[#allocation7 + $0x120] sm:$0xff]
    %v157 = vld [vmem:[#allocation7 + $0x128] sm:$0xff]
    %v158 = vld [vmem:[#allocation7 + $0x130] sm:$0xff]
    %v159 = vld [vmem:[#allocation7 + $0x138] sm:$0xff]
    %v160 = vld [vmem:[#allocation7 + $0x140] sm:$0xff]
    %v161 = vld [vmem:[#allocation7 + $0x148] sm:$0xff]
    %v162 = vld [vmem:[#allocation7 + $0x150] sm:$0xff]
    %v163 = vld [vmem:[#allocation7 + $0x158] sm:$0xff]
    %v164 = vld [vmem:[#allocation7 + $0x160] sm:$0xff]
    %v165 = vld [vmem:[#allocation7 + $0x168] sm:$0xff]
    %v166 = vld [vmem:[#allocation7 + $0x170] sm:$0xff]
    %v167 = vld [vmem:[#allocation7 + $0x178] sm:$0xff]
    %v168 = vld [vmem:[#allocation7 + $0x180] sm:$0xff]
    %v169 = vld [vmem:[#allocation7 + $0x188] sm:$0xff]
    %v170 = vld [vmem:[#allocation7 + $0x190] sm:$0xff]
    %v171 = vld [vmem:[#allocation7 + $0x198] sm:$0xff]
    %v172 = vld [vmem:[#allocation7 + $0x1a0] sm:$0xff]
    %v173 = vld [vmem:[#allocation7 + $0x1a8] sm:$0xff]
    %v174 = vld [vmem:[#allocation7 + $0x1b0] sm:$0xff]
    %v175 = vld [vmem:[#allocation7 + $0x1b8] sm:$0xff]
    %v176 = vld [vmem:[#allocation7 + $0x1c0] sm:$0xff]
    %v177 = vld [vmem:[#allocation7 + $0x1c8] sm:$0xff]
    %v178 = vld [vmem:[#allocation7 + $0x1d0] sm:$0xff]
    %v179 = vld [vmem:[#allocation7 + $0x1d8] sm:$0xff]
    %v180 = vld [vmem:[#allocation7 + $0x1e0] sm:$0xff]
    %v181 = vld [vmem:[#allocation7 + $0x1e8] sm:$0xff]
    %v182 = vld [vmem:[#allocation7 + $0x1f0] sm:$0xff]
    %v183 = vld [vmem:[#allocation7 + $0x1f8] sm:$0xff]
    %v184 = vld [vmem:[#allocation7 + $0x200] sm:$0xff]
    %v185 = vld [vmem:[#allocation7 + $0x208] sm:$0xff]
    %v186 = vld [vmem:[#allocation7 + $0x210] sm:$0xff]
    %v187 = vld [vmem:[#allocation7 + $0x218] sm:$0xff]
    %v188 = vld [vmem:[#allocation7 + $0x220] sm:$0xff]
    %v189 = vld [vmem:[#allocation7 + $0x228] sm:$0xff]
    %v190 = vld [vmem:[#allocation7 + $0x230] sm:$0xff]
    %v191 = vld [vmem:[#allocation7 + $0x238] sm:$0xff]
    %v192 = vld [vmem:[#allocation7 + $0x240] sm:$0xff]
    %v193 = vld [vmem:[#allocation7 + $0x248] sm:$0xff]
    %v194 = vld [vmem:[#allocation7 + $0x250] sm:$0xff]
    %v195 = vld [vmem:[#allocation7 + $0x258] sm:$0xff]
    %v196 = vld [vmem:[#allocation7 + $0x260] sm:$0xff]
    %v197 = vld [vmem:[#allocation7 + $0x268] sm:$0xff]
    %v198 = vld [vmem:[#allocation7 + $0x270] sm:$0xff]
    %v199 = vld [vmem:[#allocation7 + $0x278] sm:$0xff]
    %v200 = vld [vmem:[#allocation7 + $0x280] sm:$0xff]
    %v201 = vld [vmem:[#allocation7 + $0x288] sm:$0xff]
    %v202 = vld [vmem:[#allocation7 + $0x290] sm:$0xff]
    %v203 = vld [vmem:[#allocation7 + $0x298] sm:$0xff]
    %v204 = vld [vmem:[#allocation7 + $0x2a0] sm:$0xff]
    %v205 = vld [vmem:[#allocation7 + $0x2a8] sm:$0xff]
    %v206 = vld [vmem:[#allocation7 + $0x2b0] sm:$0xff]
    %v207 = vld [vmem:[#allocation7 + $0x2b8] sm:$0xff]
    %v208 = vld [vmem:[#allocation7 + $0x2c0] sm:$0xff]
    %v209 = vld [vmem:[#allocation7 + $0x2c8] sm:$0xff]
    %v210 = vld [vmem:[#allocation7 + $0x2d0] sm:$0xff]
    %v211 = vld [vmem:[#allocation7 + $0x2d8] sm:$0xff]
    %v212 = vld [vmem:[#allocation7 + $0x2e0] sm:$0xff]
    %v213 = vld [vmem:[#allocation7 + $0x2e8] sm:$0xff]
    %v214 = vld [vmem:[#allocation7 + $0x2f0] sm:$0xff]
    %v215 = vld [vmem:[#allocation7 + $0x2f8] sm:$0xff]
    %v216 = vld [vmem:[#allocation7 + $0x300] sm:$0xff]
    %v217 = vld [vmem:[#allocation7 + $0x308] sm:$0xff]
    %v218 = vld [vmem:[#allocation7 + $0x310] sm:$0xff]
    %v219 = vld [vmem:[#allocation7 + $0x318] sm:$0xff]
    %v220 = vld [vmem:[#allocation7 + $0x320] sm:$0xff]
    %v221 = vld [vmem:[#allocation7 + $0x328] sm:$0xff]
    %v222 = vld [vmem:[#allocation7 + $0x330] sm:$0xff]
    %v223 = vld [vmem:[#allocation7 + $0x338] sm:$0xff]
    %v224 = vld [vmem:[#allocation7 + $0x340] sm:$0xff]
    %v225 = vld [vmem:[#allocation7 + $0x348] sm:$0xff]
    %v226 = vld [vmem:[#allocation7 + $0x350] sm:$0xff]
    %v227 = vld [vmem:[#allocation7 + $0x358] sm:$0xff]
    %v228 = vld [vmem:[#allocation7 + $0x360] sm:$0xff]
    %v229 = vld [vmem:[#allocation7 + $0x368] sm:$0xff]
    %v230 = vld [vmem:[#allocation7 + $0x370] sm:$0xff]
    %v231 = vld [vmem:[#allocation7 + $0x378] sm:$0xff]
    %v232 = vld [vmem:[#allocation7 + $0x380] sm:$0xff]
    %v233 = vld [vmem:[#allocation7 + $0x388] sm:$0xff]
    %v234 = vld [vmem:[#allocation7 + $0x390] sm:$0xff]
    %v235 = vld [vmem:[#allocation7 + $0x398] sm:$0xff]
    %v236 = vld [vmem:[#allocation7 + $0x3a0] sm:$0xff]
    %v237 = vld [vmem:[#allocation7 + $0x3a8] sm:$0xff]
    %v238 = vld [vmem:[#allocation7 + $0x3b0] sm:$0xff]
    %v239 = vld [vmem:[#allocation7 + $0x3b8] sm:$0xff]
    %v240 = vld [vmem:[#allocation7 + $0x3c0] sm:$0xff]
    %v241 = vld [vmem:[#allocation7 + $0x3c8] sm:$0xff]
    %v242 = vld [vmem:[#allocation7 + $0x3d0] sm:$0xff]
    %v243 = vld [vmem:[#allocation7 + $0x3d8] sm:$0xff]
    %v244 = vld [vmem:[#allocation7 + $0x3e0] sm:$0xff]
    %v245 = vld [vmem:[#allocation7 + $0x3e8] sm:$0xff]
    %v246 = vld [vmem:[#allocation7 + $0x3f0] sm:$0xff]
    %v247 = vld [vmem:[#allocation7 + $0x3f8] sm:$0xff]
    %v248 = vld [vmem:[#allocation7 + $0x400] sm:$0xff]
    %v249 = vld [vmem:[#allocation7 + $0x408] sm:$0xff]
    %v250 = vld [vmem:[#allocation7 + $0x410] sm:$0xff]
    %v251 = vld [vmem:[#allocation7 + $0x418] sm:$0xff]
    %v252 = vld [vmem:[#allocation7 + $0x420] sm:$0xff]
    %v253 = vld [vmem:[#allocation7 + $0x428] sm:$0xff]
    %v254 = vld [vmem:[#allocation7 + $0x430] sm:$0xff]
    %v255 = vld [vmem:[#allocation7 + $0x438] sm:$0xff]
    %v256 = vld [vmem:[#allocation7 + $0x440] sm:$0xff]
    %v257 = vld [vmem:[#allocation7 + $0x448] sm:$0xff]
    %v258 = vld [vmem:[#allocation7 + $0x450] sm:$0xff]
    %v259 = vld [vmem:[#allocation7 + $0x458] sm:$0xff]
    %v260 = vld [vmem:[#allocation7 + $0x460] sm:$0xff]
    %v261 = vld [vmem:[#allocation7 + $0x468] sm:$0xff]
    %v262 = vld [vmem:[#allocation7 + $0x470] sm:$0xff]
    %v263 = vld [vmem:[#allocation7 + $0x478] sm:$0xff]
    %v264 = vld [vmem:[#allocation7 + $0x480] sm:$0xff]
    %v265 = vld [vmem:[#allocation7 + $0x488] sm:$0xff]
    %v266 = vld [vmem:[#allocation7 + $0x490] sm:$0xff]
    %v267 = vld [vmem:[#allocation7 + $0x498] sm:$0xff]
    %v268 = vld [vmem:[#allocation7 + $0x4a0] sm:$0xff]
    %v269 = vld [vmem:[#allocation7 + $0x4a8] sm:$0xff]
    %v270 = vld [vmem:[#allocation7 + $0x4b0] sm:$0xff]
    %v271 = vld [vmem:[#allocation7 + $0x4b8] sm:$0xff]
    %v272 = vld [vmem:[#allocation7 + $0x4c0] sm:$0xff]
    %v273 = vld [vmem:[#allocation7 + $0x4c8] sm:$0xff]
    %v274 = vld [vmem:[#allocation7 + $0x4d0] sm:$0xff]
    %v275 = vld [vmem:[#allocation7 + $0x4d8] sm:$0xff]
    %v276 = vld [vmem:[#allocation7 + $0x4e0] sm:$0xff]
    %v277 = vld [vmem:[#allocation7 + $0x4e8] sm:$0xff]
    %v278 = vld [vmem:[#allocation7 + $0x4f0] sm:$0xff]
    %v279 = vld [vmem:[#allocation7 + $0x4f8] sm:$0xff]
    %v280 = vld [vmem:[#allocation7 + $0x500] sm:$0xff]
    %v281 = vld [vmem:[#allocation7 + $0x508] sm:$0xff]
    %v282 = vld [vmem:[#allocation7 + $0x510] sm:$0xff]
    %v283 = vld [vmem:[#allocation7 + $0x518] sm:$0xff]
    %v284 = vld [vmem:[#allocation7 + $0x520] sm:$0xff]
    %v285 = vld [vmem:[#allocation7 + $0x528] sm:$0xff]
    %v286 = vld [vmem:[#allocation7 + $0x530] sm:$0xff]
    %v287 = vld [vmem:[#allocation7 + $0x538] sm:$0xff]
    %v288 = vld [vmem:[#allocation7 + $0x540] sm:$0xff]
    %v289 = vld [vmem:[#allocation7 + $0x548] sm:$0xff]
    %v290 = vld [vmem:[#allocation7 + $0x550] sm:$0xff]
    %v291 = vld [vmem:[#allocation7 + $0x558] sm:$0xff]
    %v292 = vld [vmem:[#allocation7 + $0x560] sm:$0xff]
    %v293 = vld [vmem:[#allocation7 + $0x568] sm:$0xff]
    %v294 = vld [vmem:[#allocation7 + $0x570] sm:$0xff]
    %v295 = vld [vmem:[#allocation7 + $0x578] sm:$0xff]
    %v296 = vld [vmem:[#allocation7 + $0x580] sm:$0xff]
    %v297 = vld [vmem:[#allocation7 + $0x588] sm:$0xff]
    %v298 = vld [vmem:[#allocation7 + $0x590] sm:$0xff]
    %v299 = vld [vmem:[#allocation7 + $0x598] sm:$0xff]
    %v300 = vld [vmem:[#allocation7 + $0x5a0] sm:$0xff]
    %v301 = vld [vmem:[#allocation7 + $0x5a8] sm:$0xff]
    %v302 = vld [vmem:[#allocation7 + $0x5b0] sm:$0xff]
    %v303 = vld [vmem:[#allocation7 + $0x5b8] sm:$0xff]
    %v304 = vld [vmem:[#allocation7 + $0x5c0] sm:$0xff]
    %v305 = vld [vmem:[#allocation7 + $0x5c8] sm:$0xff]
    %v306 = vld [vmem:[#allocation7 + $0x5d0] sm:$0xff]
    %v307 = vld [vmem:[#allocation7 + $0x5d8] sm:$0xff]
    %v308 = vld [vmem:[#allocation7 + $0x5e0] sm:$0xff]
    %v309 = vld [vmem:[#allocation7 + $0x5e8] sm:$0xff]
    %v310 = vld [vmem:[#allocation7 + $0x5f0] sm:$0xff]
    %v311 = vld [vmem:[#allocation7 + $0x5f8] sm:$0xff]
    %v312 = vld [vmem:[#allocation7 + $0x600] sm:$0xff]
    %v313 = vld [vmem:[#allocation7 + $0x608] sm:$0xff]
    %v314 = vld [vmem:[#allocation7 + $0x610] sm:$0xff]
    %v315 = vld [vmem:[#allocation7 + $0x618] sm:$0xff]
    %v316 = vld [vmem:[#allocation7 + $0x620] sm:$0xff]
    %v317 = vld [vmem:[#allocation7 + $0x628] sm:$0xff]
    %v318 = vld [vmem:[#allocation7 + $0x630] sm:$0xff]
    %v319 = vld [vmem:[#allocation7 + $0x638] sm:$0xff]
    %v320 = vld [vmem:[#allocation7 + $0x640] sm:$0xff]
    %v321 = vld [vmem:[#allocation7 + $0x648] sm:$0xff]
    %v322 = vld [vmem:[#allocation7 + $0x650] sm:$0xff]
    %v323 = vld [vmem:[#allocation7 + $0x658] sm:$0xff]
    %v324 = vld [vmem:[#allocation7 + $0x660] sm:$0xff]
    %v325 = vld [vmem:[#allocation7 + $0x668] sm:$0xff]
    %v326 = vld [vmem:[#allocation7 + $0x670] sm:$0xff]
    %v327 = vld [vmem:[#allocation7 + $0x678] sm:$0xff]
    %v328 = vld [vmem:[#allocation7 + $0x680] sm:$0xff]
    %v329 = vld [vmem:[#allocation7 + $0x688] sm:$0xff]
    %v330 = vld [vmem:[#allocation7 + $0x690] sm:$0xff]
    %v331 = vld [vmem:[#allocation7 + $0x698] sm:$0xff]
    %v332 = vld [vmem:[#allocation7 + $0x6a0] sm:$0xff]
    %v333 = vld [vmem:[#allocation7 + $0x6a8] sm:$0xff]
    %v334 = vld [vmem:[#allocation7 + $0x6b0] sm:$0xff]
    %v335 = vld [vmem:[#allocation7 + $0x6b8] sm:$0xff]
    %v336 = vld [vmem:[#allocation7 + $0x6c0] sm:$0xff]
    %v337 = vld [vmem:[#allocation7 + $0x6c8] sm:$0xff]
    %v338 = vld [vmem:[#allocation7 + $0x6d0] sm:$0xff]
    %v339 = vld [vmem:[#allocation7 + $0x6d8] sm:$0xff]
    %v340 = vld [vmem:[#allocation7 + $0x6e0] sm:$0xff]
    %v341 = vld [vmem:[#allocation7 + $0x6e8] sm:$0xff]
    %v342 = vld [vmem:[#allocation7 + $0x6f0] sm:$0xff]
    %v343 = vld [vmem:[#allocation7 + $0x6f8] sm:$0xff]
    %v344 = vld [vmem:[#allocation7 + $0x700] sm:$0xff]
    %v345 = vld [vmem:[#allocation7 + $0x708] sm:$0xff]
    %v346 = vld [vmem:[#allocation7 + $0x710] sm:$0xff]
    %v347 = vld [vmem:[#allocation7 + $0x718] sm:$0xff]
    %v348 = vld [vmem:[#allocation7 + $0x720] sm:$0xff]
    %v349 = vld [vmem:[#allocation7 + $0x728] sm:$0xff]
    %v350 = vld [vmem:[#allocation7 + $0x730] sm:$0xff]
    %v351 = vld [vmem:[#allocation7 + $0x738] sm:$0xff]
    %v352 = vld [vmem:[#allocation7 + $0x740] sm:$0xff]
    %v353 = vld [vmem:[#allocation7 + $0x748] sm:$0xff]
    %v354 = vld [vmem:[#allocation7 + $0x750] sm:$0xff]
    %v355 = vld [vmem:[#allocation7 + $0x758] sm:$0xff]
    %v356 = vld [vmem:[#allocation7 + $0x760] sm:$0xff]
    %v357 = vld [vmem:[#allocation7 + $0x768] sm:$0xff]
    %v358 = vld [vmem:[#allocation7 + $0x770] sm:$0xff]
    %v359 = vld [vmem:[#allocation7 + $0x778] sm:$0xff]
    %v360 = vld [vmem:[#allocation7 + $0x780] sm:$0xff]
    %v361 = vld [vmem:[#allocation7 + $0x788] sm:$0xff]
    %v362 = vld [vmem:[#allocation7 + $0x790] sm:$0xff]
    %v363 = vld [vmem:[#allocation7 + $0x798] sm:$0xff]
    %v364 = vld [vmem:[#allocation7 + $0x7a0] sm:$0xff]
    %v365 = vld [vmem:[#allocation7 + $0x7a8] sm:$0xff]
    %v366 = vld [vmem:[#allocation7 + $0x7b0] sm:$0xff]
    %v367 = vld [vmem:[#allocation7 + $0x7b8] sm:$0xff]
    %v368 = vld [vmem:[#allocation7 + $0x7c0] sm:$0xff]
    %v369 = vld [vmem:[#allocation7 + $0x7c8] sm:$0xff]
    %v370 = vld [vmem:[#allocation7 + $0x7d0] sm:$0xff]
    %v371 = vld [vmem:[#allocation7 + $0x7d8] sm:$0xff]
    %v372 = vld [vmem:[#allocation7 + $0x7e0] sm:$0xff]
    %v373 = vld [vmem:[#allocation7 + $0x7e8] sm:$0xff]
    %v374 = vld [vmem:[#allocation7 + $0x7f0] sm:$0xff]
    %v375 = vld [vmem:[#allocation7 + $0x7f8] sm:$0xff]
    %v376 = vld [vmem:[#allocation7 + $0x800] sm:$0xff]
    %v377 = vld [vmem:[#allocation7 + $0x808] sm:$0xff]
    %v378 = vld [vmem:[#allocation7 + $0x810] sm:$0xff]
    %v379 = vld [vmem:[#allocation7 + $0x818] sm:$0xff]
    %v380 = vld [vmem:[#allocation7 + $0x820] sm:$0xff]
    %v381 = vld [vmem:[#allocation7 + $0x828] sm:$0xff]
    %v382 = vld [vmem:[#allocation7 + $0x830] sm:$0xff]
    %v383 = vld [vmem:[#allocation7 + $0x838] sm:$0xff]
    %v384 = vld [vmem:[#allocation7 + $0x840] sm:$0xff]
    %v385 = vld [vmem:[#allocation7 + $0x848] sm:$0xff]
    %v386 = vld [vmem:[#allocation7 + $0x850] sm:$0xff]
    %v387 = vld [vmem:[#allocation7 + $0x858] sm:$0xff]
    %v388 = vld [vmem:[#allocation7 + $0x860] sm:$0xff]
    %v389 = vld [vmem:[#allocation7 + $0x868] sm:$0xff]
    %v390 = vld [vmem:[#allocation7 + $0x870] sm:$0xff]
    %v391 = vld [vmem:[#allocation7 + $0x878] sm:$0xff]
    %v392 = vld [vmem:[#allocation7 + $0x880] sm:$0xff]
    %v393 = vld [vmem:[#allocation7 + $0x888] sm:$0xff]
    %v394 = vld [vmem:[#allocation7 + $0x890] sm:$0xff]
    %v395 = vld [vmem:[#allocation7 + $0x898] sm:$0xff]
    %v396 = vld [vmem:[#allocation7 + $0x8a0] sm:$0xff]
    %v397 = vld [vmem:[#allocation7 + $0x8a8] sm:$0xff]
    %v398 = vld [vmem:[#allocation7 + $0x8b0] sm:$0xff]
    %v399 = vld [vmem:[#allocation7 + $0x8b8] sm:$0xff]
    %v400 = vld [vmem:[#allocation7 + $0x8c0] sm:$0xff]
    %v401 = vld [vmem:[#allocation7 + $0x8c8] sm:$0xff]
    %v402 = vld [vmem:[#allocation7 + $0x8d0] sm:$0xff]
    %v403 = vld [vmem:[#allocation7 + $0x8d8] sm:$0xff]
    %v404 = vld [vmem:[#allocation7 + $0x8e0] sm:$0xff]
    %v405 = vld [vmem:[#allocation7 + $0x8e8] sm:$0xff]
    %v406 = vld [vmem:[#allocation7 + $0x8f0] sm:$0xff]
    %v407 = vld [vmem:[#allocation7 + $0x8f8] sm:$0xff]
    %v408 = vld [vmem:[#allocation9] sm:$0x3f]
    %v410 = vperm.slane %v408, 0
    %v411 = vperm.slane %v408, 1
    %v412 = vperm.slane %v408, 2
    %v413 = vperm.slane %v408, 3
    %v414 = vperm.slane %v408, 4
    %v415 = vperm.slane %v408, 5
    %422 = vmatpush.msra.mxu0 %v210
    %423 = vmatpush.msra.mxu0 %v204
    %424 = vmatpush.msra.mxu0 %v198
    %425 = vmatpush.msra.mxu0 %v192
    %426 = vmatpush.msra.mxu0 %v186
    %427 = vmatpush.msra.mxu0 %v180
    %428 = vmatpush.msra.mxu0 %v174
    %429 = vmatpush.msra.mxu0 %v168
    %430 = vmatpush.msra.mxu0 %v162
    %431 = vmatpush.msra.mxu0 %v156
    %432 = vmatpush.msra.mxu0 %v150
    %433 = vmatpush.msra.mxu0 %v144
    %434 = vmatpush.msra.mxu0 %v138
    %435 = vmatpush.msra.mxu0 %v132
    %436 = vmatpush.msra.mxu0 %v126
    %437 = vmatpush.msra.mxu0 %v120
    %438 = vmatmul.f32.gmra.mxu0 %v96
    %v439 = vpop.f32.mrf.mxu0
    %v440 = vadd.f32 %v410, %v439
    %441 = vmatmul.f32.gmra.mxu0 %v99
    %v442 = vpop.f32.mrf.mxu0
    %v443 = vadd.f32 %v410, %v442
    %444 = vmatmul.f32.gmra.mxu0 %v102
    %v445 = vpop.f32.mrf.mxu0
    %v446 = vadd.f32 %v410, %v445
    %447 = vmatmul.f32.gmra.mxu0 %v105
    %v448 = vpop.f32.mrf.mxu0
    %v449 = vadd.f32 %v410, %v448
    %450 = vmatmul.f32.gmra.mxu0 %v108
    %v451 = vpop.f32.mrf.mxu0
    %v452 = vadd.f32 %v410, %v451
    %453 = vmatmul.f32.gmra.mxu0 %v111
    %v454 = vpop.f32.mrf.mxu0
    %v455 = vadd.f32 %v410, %v454
    %456 = vmatmul.f32.gmra.mxu0 %v114
    %v457 = vpop.f32.mrf.mxu0
    %v458 = vadd.f32 %v410, %v457
    %459 = vmatmul.f32.gmra.mxu0 %v117
    %v460 = vpop.f32.mrf.mxu0
    %v461 = vadd.f32 %v410, %v460
    %462 = vdwg.mxu0
    %463 = vmatpush.msra.mxu0 %v306
    %464 = vmatpush.msra.mxu0 %v300
    %465 = vmatpush.msra.mxu0 %v294
    %466 = vmatpush.msra.mxu0 %v288
    %467 = vmatpush.msra.mxu0 %v282
    %468 = vmatpush.msra.mxu0 %v276
    %469 = vmatpush.msra.mxu0 %v270
    %470 = vmatpush.msra.mxu0 %v264
    %471 = vmatpush.msra.mxu0 %v258
    %472 = vmatpush.msra.mxu0 %v252
    %473 = vmatpush.msra.mxu0 %v246
    %474 = vmatpush.msra.mxu0 %v240
    %475 = vmatpush.msra.mxu0 %v234
    %476 = vmatpush.msra.mxu0 %v228
    %477 = vmatpush.msra.mxu0 %v222
    %478 = vmatpush.msra.mxu0 %v216
    %479 = vmatmul.f32.gmra.mxu0 %v97
    %v480 = vpop.f32.mrf.mxu0
    %v481 = vadd.f32 %v440, %v480
    %482 = vmatmul.f32.gmra.mxu0 %v100
    %v483 = vpop.f32.mrf.mxu0
    %v484 = vadd.f32 %v443, %v483
    %485 = vmatmul.f32.gmra.mxu0 %v103
    %v486 = vpop.f32.mrf.mxu0
    %v487 = vadd.f32 %v446, %v486
    %488 = vmatmul.f32.gmra.mxu0 %v106
    %v489 = vpop.f32.mrf.mxu0
    %v490 = vadd.f32 %v449, %v489
    %491 = vmatmul.f32.gmra.mxu0 %v109
    %v492 = vpop.f32.mrf.mxu0
    %v493 = vadd.f32 %v452, %v492
    %494 = vmatmul.f32.gmra.mxu0 %v112
    %v495 = vpop.f32.mrf.mxu0
    %v496 = vadd.f32 %v455, %v495
    %497 = vmatmul.f32.gmra.mxu0 %v115
    %v498 = vpop.f32.mrf.mxu0
    %v499 = vadd.f32 %v458, %v498
    %500 = vmatmul.f32.gmra.mxu0 %v118
    %v501 = vpop.f32.mrf.mxu0
    %v502 = vadd.f32 %v461, %v501
    %503 = vdwg.mxu0
    %504 = vmatpush.msra.mxu0 %v402
    %505 = vmatpush.msra.mxu0 %v396
    %506 = vmatpush.msra.mxu0 %v390
    %507 = vmatpush.msra.mxu0 %v384
    %508 = vmatpush.msra.mxu0 %v378
    %509 = vmatpush.msra.mxu0 %v372
    %510 = vmatpush.msra.mxu0 %v366
    %511 = vmatpush.msra.mxu0 %v360
    %512 = vmatpush.msra.mxu0 %v354
    %513 = vmatpush.msra.mxu0 %v348
    %514 = vmatpush.msra.mxu0 %v342
    %515 = vmatpush.msra.mxu0 %v336
    %516 = vmatpush.msra.mxu0 %v330
    %517 = vmatpush.msra.mxu0 %v324
    %518 = vmatpush.msra.mxu0 %v318
    %519 = vmatpush.msra.mxu0 %v312
    %520 = vmatmul.f32.gmra.mxu0 %v98
    %v521 = vpop.f32.mrf.mxu0
    %v522 = vadd.f32 %v481, %v521
    %523 = vmatmul.f32.gmra.mxu0 %v101
    %v524 = vpop.f32.mrf.mxu0
    %v525 = vadd.f32 %v484, %v524
    %526 = vmatmul.f32.gmra.mxu0 %v104
    %v527 = vpop.f32.mrf.mxu0
    %v528 = vadd.f32 %v487, %v527
    %529 = vmatmul.f32.gmra.mxu0 %v107
    %v530 = vpop.f32.mrf.mxu0
    %v531 = vadd.f32 %v490, %v530
    %532 = vmatmul.f32.gmra.mxu0 %v110
    %v533 = vpop.f32.mrf.mxu0
    %v534 = vadd.f32 %v493, %v533
    %535 = vmatmul.f32.gmra.mxu0 %v113
    %v536 = vpop.f32.mrf.mxu0
    %v537 = vadd.f32 %v496, %v536
    %538 = vmatmul.f32.gmra.mxu0 %v116
    %v539 = vpop.f32.mrf.mxu0
    %v540 = vadd.f32 %v499, %v539
    %541 = vmatmul.f32.gmra.mxu0 %v119
    %v542 = vpop.f32.mrf.mxu0
    %v543 = vadd.f32 %v502, %v542
    %544 = vdwg.mxu0
    %545 = vmatpush.msra.mxu0 %v211
    %546 = vmatpush.msra.mxu0 %v205
    %547 = vmatpush.msra.mxu0 %v199
    %548 = vmatpush.msra.mxu0 %v193
    %549 = vmatpush.msra.mxu0 %v187
    %550 = vmatpush.msra.mxu0 %v181
    %551 = vmatpush.msra.mxu0 %v175
    %552 = vmatpush.msra.mxu0 %v169
    %553 = vmatpush.msra.mxu0 %v163
    %554 = vmatpush.msra.mxu0 %v157
    %555 = vmatpush.msra.mxu0 %v151
    %556 = vmatpush.msra.mxu0 %v145
    %557 = vmatpush.msra.mxu0 %v139
    %558 = vmatpush.msra.mxu0 %v133
    %559 = vmatpush.msra.mxu0 %v127
    %560 = vmatpush.msra.mxu0 %v121
    %561 = vmatmul.f32.gmra.mxu0 %v96
    %v562 = vpop.f32.mrf.mxu0
    %v563 = vadd.f32 %v411, %v562
    %564 = vmatmul.f32.gmra.mxu0 %v99
    %v565 = vpop.f32.mrf.mxu0
    %v566 = vadd.f32 %v411, %v565
    %567 = vmatmul.f32.gmra.mxu0 %v102
    %v568 = vpop.f32.mrf.mxu0
    %v569 = vadd.f32 %v411, %v568
    %570 = vmatmul.f32.gmra.mxu0 %v105
    %v571 = vpop.f32.mrf.mxu0
    %v572 = vadd.f32 %v411, %v571
    %573 = vmatmul.f32.gmra.mxu0 %v108
    %v574 = vpop.f32.mrf.mxu0
    %v575 = vadd.f32 %v411, %v574
    %576 = vmatmul.f32.gmra.mxu0 %v111
    %v577 = vpop.f32.mrf.mxu0
    %v578 = vadd.f32 %v411, %v577
    %579 = vmatmul.f32.gmra.mxu0 %v114
    %v580 = vpop.f32.mrf.mxu0
    %v581 = vadd.f32 %v411, %v580
    %582 = vmatmul.f32.gmra.mxu0 %v117
    %v583 = vpop.f32.mrf.mxu0
    %v584 = vadd.f32 %v411, %v583
    %585 = vdwg.mxu0
    %586 = vmatpush.msra.mxu0 %v307
    %587 = vmatpush.msra.mxu0 %v301
    %588 = vmatpush.msra.mxu0 %v295
    %589 = vmatpush.msra.mxu0 %v289
    %590 = vmatpush.msra.mxu0 %v283
    %591 = vmatpush.msra.mxu0 %v277
    %592 = vmatpush.msra.mxu0 %v271
    %593 = vmatpush.msra.mxu0 %v265
    %594 = vmatpush.msra.mxu0 %v259
    %595 = vmatpush.msra.mxu0 %v253
    %596 = vmatpush.msra.mxu0 %v247
    %597 = vmatpush.msra.mxu0 %v241
    %598 = vmatpush.msra.mxu0 %v235
    %599 = vmatpush.msra.mxu0 %v229
    %600 = vmatpush.msra.mxu0 %v223
    %601 = vmatpush.msra.mxu0 %v217
    %602 = vmatmul.f32.gmra.mxu0 %v97
    %v603 = vpop.f32.mrf.mxu0
    %v604 = vadd.f32 %v563, %v603
    %605 = vmatmul.f32.gmra.mxu0 %v100
    %v606 = vpop.f32.mrf.mxu0
    %v607 = vadd.f32 %v566, %v606
    %608 = vmatmul.f32.gmra.mxu0 %v103
    %v609 = vpop.f32.mrf.mxu0
    %v610 = vadd.f32 %v569, %v609
    %611 = vmatmul.f32.gmra.mxu0 %v106
    %v612 = vpop.f32.mrf.mxu0
    %v613 = vadd.f32 %v572, %v612
    %614 = vmatmul.f32.gmra.mxu0 %v109
    %v615 = vpop.f32.mrf.mxu0
    %v616 = vadd.f32 %v575, %v615
    %617 = vmatmul.f32.gmra.mxu0 %v112
    %v618 = vpop.f32.mrf.mxu0
    %v619 = vadd.f32 %v578, %v618
    %620 = vmatmul.f32.gmra.mxu0 %v115
    %v621 = vpop.f32.mrf.mxu0
    %v622 = vadd.f32 %v581, %v621
    %623 = vmatmul.f32.gmra.mxu0 %v118
    %v624 = vpop.f32.mrf.mxu0
    %v625 = vadd.f32 %v584, %v624
    %626 = vdwg.mxu0
    %627 = vmatpush.msra.mxu0 %v403
    %628 = vmatpush.msra.mxu0 %v397
    %629 = vmatpush.msra.mxu0 %v391
    %630 = vmatpush.msra.mxu0 %v385
    %631 = vmatpush.msra.mxu0 %v379
    %632 = vmatpush.msra.mxu0 %v373
    %633 = vmatpush.msra.mxu0 %v367
    %634 = vmatpush.msra.mxu0 %v361
    %635 = vmatpush.msra.mxu0 %v355
    %636 = vmatpush.msra.mxu0 %v349
    %637 = vmatpush.msra.mxu0 %v343
    %638 = vmatpush.msra.mxu0 %v337
    %639 = vmatpush.msra.mxu0 %v331
    %640 = vmatpush.msra.mxu0 %v325
    %641 = vmatpush.msra.mxu0 %v319
    %642 = vmatpush.msra.mxu0 %v313
    %643 = vmatmul.f32.gmra.mxu0 %v98
    %v644 = vpop.f32.mrf.mxu0
    %v645 = vadd.f32 %v604, %v644
    %646 = vmatmul.f32.gmra.mxu0 %v101
    %v647 = vpop.f32.mrf.mxu0
    %v648 = vadd.f32 %v607, %v647
    %649 = vmatmul.f32.gmra.mxu0 %v104
    %v650 = vpop.f32.mrf.mxu0
    %v651 = vadd.f32 %v610, %v650
    %652 = vmatmul.f32.gmra.mxu0 %v107
    %v653 = vpop.f32.mrf.mxu0
    %v654 = vadd.f32 %v613, %v653
    %655 = vmatmul.f32.gmra.mxu0 %v110
    %v656 = vpop.f32.mrf.mxu0
    %v657 = vadd.f32 %v616, %v656
    %658 = vmatmul.f32.gmra.mxu0 %v113
    %v659 = vpop.f32.mrf.mxu0
    %v660 = vadd.f32 %v619, %v659
    %661 = vmatmul.f32.gmra.mxu0 %v116
    %v662 = vpop.f32.mrf.mxu0
    %v663 = vadd.f32 %v622, %v662
    %664 = vmatmul.f32.gmra.mxu0 %v119
    %v665 = vpop.f32.mrf.mxu0
    %v666 = vadd.f32 %v625, %v665
    %667 = vdwg.mxu0
    %668 = vmatpush.msra.mxu0 %v212
    %669 = vmatpush.msra.mxu0 %v206
    %670 = vmatpush.msra.mxu0 %v200
    %671 = vmatpush.msra.mxu0 %v194
    %672 = vmatpush.msra.mxu0 %v188
    %673 = vmatpush.msra.mxu0 %v182
    %674 = vmatpush.msra.mxu0 %v176
    %675 = vmatpush.msra.mxu0 %v170
    %676 = vmatpush.msra.mxu0 %v164
    %677 = vmatpush.msra.mxu0 %v158
    %678 = vmatpush.msra.mxu0 %v152
    %679 = vmatpush.msra.mxu0 %v146
    %680 = vmatpush.msra.mxu0 %v140
    %681 = vmatpush.msra.mxu0 %v134
    %682 = vmatpush.msra.mxu0 %v128
    %683 = vmatpush.msra.mxu0 %v122
    %684 = vmatmul.f32.gmra.mxu0 %v96
    %v685 = vpop.f32.mrf.mxu0
    %v686 = vadd.f32 %v412, %v685
    %687 = vmatmul.f32.gmra.mxu0 %v99
    %v688 = vpop.f32.mrf.mxu0
    %v689 = vadd.f32 %v412, %v688
    %690 = vmatmul.f32.gmra.mxu0 %v102
    %v691 = vpop.f32.mrf.mxu0
    %v692 = vadd.f32 %v412, %v691
    %693 = vmatmul.f32.gmra.mxu0 %v105
    %v694 = vpop.f32.mrf.mxu0
    %v695 = vadd.f32 %v412, %v694
    %696 = vmatmul.f32.gmra.mxu0 %v108
    %v697 = vpop.f32.mrf.mxu0
    %v698 = vadd.f32 %v412, %v697
    %699 = vmatmul.f32.gmra.mxu0 %v111
    %v700 = vpop.f32.mrf.mxu0
    %v701 = vadd.f32 %v412, %v700
    %702 = vmatmul.f32.gmra.mxu0 %v114
    %v703 = vpop.f32.mrf.mxu0
    %v704 = vadd.f32 %v412, %v703
    %705 = vmatmul.f32.gmra.mxu0 %v117
    %v706 = vpop.f32.mrf.mxu0
    %v707 = vadd.f32 %v412, %v706
    %708 = vdwg.mxu0
    %709 = vmatpush.msra.mxu0 %v308
    %710 = vmatpush.msra.mxu0 %v302
    %711 = vmatpush.msra.mxu0 %v296
    %712 = vmatpush.msra.mxu0 %v290
    %713 = vmatpush.msra.mxu0 %v284
    %714 = vmatpush.msra.mxu0 %v278
    %715 = vmatpush.msra.mxu0 %v272
    %716 = vmatpush.msra.mxu0 %v266
    %717 = vmatpush.msra.mxu0 %v260
    %718 = vmatpush.msra.mxu0 %v254
    %719 = vmatpush.msra.mxu0 %v248
    %720 = vmatpush.msra.mxu0 %v242
    %721 = vmatpush.msra.mxu0 %v236
    %722 = vmatpush.msra.mxu0 %v230
    %723 = vmatpush.msra.mxu0 %v224
    %724 = vmatpush.msra.mxu0 %v218
    %725 = vmatmul.f32.gmra.mxu0 %v97
    %v726 = vpop.f32.mrf.mxu0
    %v727 = vadd.f32 %v686, %v726
    %728 = vmatmul.f32.gmra.mxu0 %v100
    %v729 = vpop.f32.mrf.mxu0
    %v730 = vadd.f32 %v689, %v729
    %731 = vmatmul.f32.gmra.mxu0 %v103
    %v732 = vpop.f32.mrf.mxu0
    %v733 = vadd.f32 %v692, %v732
    %734 = vmatmul.f32.gmra.mxu0 %v106
    %v735 = vpop.f32.mrf.mxu0
    %v736 = vadd.f32 %v695, %v735
    %737 = vmatmul.f32.gmra.mxu0 %v109
    %v738 = vpop.f32.mrf.mxu0
    %v739 = vadd.f32 %v698, %v738
    %740 = vmatmul.f32.gmra.mxu0 %v112
    %v741 = vpop.f32.mrf.mxu0
    %v742 = vadd.f32 %v701, %v741
    %743 = vmatmul.f32.gmra.mxu0 %v115
    %v744 = vpop.f32.mrf.mxu0
    %v745 = vadd.f32 %v704, %v744
    %746 = vmatmul.f32.gmra.mxu0 %v118
    %v747 = vpop.f32.mrf.mxu0
    %v748 = vadd.f32 %v707, %v747
    %749 = vdwg.mxu0
    %750 = vmatpush.msra.mxu0 %v404
    %751 = vmatpush.msra.mxu0 %v398
    %752 = vmatpush.msra.mxu0 %v392
    %753 = vmatpush.msra.mxu0 %v386
    %754 = vmatpush.msra.mxu0 %v380
    %755 = vmatpush.msra.mxu0 %v374
    %756 = vmatpush.msra.mxu0 %v368
    %757 = vmatpush.msra.mxu0 %v362
    %758 = vmatpush.msra.mxu0 %v356
    %759 = vmatpush.msra.mxu0 %v350
    %760 = vmatpush.msra.mxu0 %v344
    %761 = vmatpush.msra.mxu0 %v338
    %762 = vmatpush.msra.mxu0 %v332
    %763 = vmatpush.msra.mxu0 %v326
    %764 = vmatpush.msra.mxu0 %v320
    %765 = vmatpush.msra.mxu0 %v314
    %766 = vmatmul.f32.gmra.mxu0 %v98
    %v767 = vpop.f32.mrf.mxu0
    %v768 = vadd.f32 %v727, %v767
    %769 = vmatmul.f32.gmra.mxu0 %v101
    %v770 = vpop.f32.mrf.mxu0
    %v771 = vadd.f32 %v730, %v770
    %772 = vmatmul.f32.gmra.mxu0 %v104
    %v773 = vpop.f32.mrf.mxu0
    %v774 = vadd.f32 %v733, %v773
    %775 = vmatmul.f32.gmra.mxu0 %v107
    %v776 = vpop.f32.mrf.mxu0
    %v777 = vadd.f32 %v736, %v776
    %778 = vmatmul.f32.gmra.mxu0 %v110
    %v779 = vpop.f32.mrf.mxu0
    %v780 = vadd.f32 %v739, %v779
    %781 = vmatmul.f32.gmra.mxu0 %v113
    %v782 = vpop.f32.mrf.mxu0
    %v783 = vadd.f32 %v742, %v782
    %784 = vmatmul.f32.gmra.mxu0 %v116
    %v785 = vpop.f32.mrf.mxu0
    %v786 = vadd.f32 %v745, %v785
    %787 = vmatmul.f32.gmra.mxu0 %v119
    %v788 = vpop.f32.mrf.mxu0
    %v789 = vadd.f32 %v748, %v788
    %790 = vdwg.mxu0
    %791 = vmatpush.msra.mxu0 %v213
    %792 = vmatpush.msra.mxu0 %v207
    %793 = vmatpush.msra.mxu0 %v201
    %794 = vmatpush.msra.mxu0 %v195
    %795 = vmatpush.msra.mxu0 %v189
    %796 = vmatpush.msra.mxu0 %v183
    %797 = vmatpush.msra.mxu0 %v177
    %798 = vmatpush.msra.mxu0 %v171
    %799 = vmatpush.msra.mxu0 %v165
    %800 = vmatpush.msra.mxu0 %v159
    %801 = vmatpush.msra.mxu0 %v153
    %802 = vmatpush.msra.mxu0 %v147
    %803 = vmatpush.msra.mxu0 %v141
    %804 = vmatpush.msra.mxu0 %v135
    %805 = vmatpush.msra.mxu0 %v129
    %806 = vmatpush.msra.mxu0 %v123
    %807 = vmatmul.f32.gmra.mxu0 %v96
    %v808 = vpop.f32.mrf.mxu0
    %v809 = vadd.f32 %v413, %v808
    %810 = vmatmul.f32.gmra.mxu0 %v99
    %v811 = vpop.f32.mrf.mxu0
    %v812 = vadd.f32 %v413, %v811
    %813 = vmatmul.f32.gmra.mxu0 %v102
    %v814 = vpop.f32.mrf.mxu0
    %v815 = vadd.f32 %v413, %v814
    %816 = vmatmul.f32.gmra.mxu0 %v105
    %v817 = vpop.f32.mrf.mxu0
    %v818 = vadd.f32 %v413, %v817
    %819 = vmatmul.f32.gmra.mxu0 %v108
    %v820 = vpop.f32.mrf.mxu0
    %v821 = vadd.f32 %v413, %v820
    %822 = vmatmul.f32.gmra.mxu0 %v111
    %v823 = vpop.f32.mrf.mxu0
    %v824 = vadd.f32 %v413, %v823
    %825 = vmatmul.f32.gmra.mxu0 %v114
    %v826 = vpop.f32.mrf.mxu0
    %v827 = vadd.f32 %v413, %v826
    %828 = vmatmul.f32.gmra.mxu0 %v117
    %v829 = vpop.f32.mrf.mxu0
    %v830 = vadd.f32 %v413, %v829
    %831 = vdwg.mxu0
    %832 = vmatpush.msra.mxu0 %v309
    %833 = vmatpush.msra.mxu0 %v303
    %834 = vmatpush.msra.mxu0 %v297
    %835 = vmatpush.msra.mxu0 %v291
    %836 = vmatpush.msra.mxu0 %v285
    %837 = vmatpush.msra.mxu0 %v279
    %838 = vmatpush.msra.mxu0 %v273
    %839 = vmatpush.msra.mxu0 %v267
    %840 = vmatpush.msra.mxu0 %v261
    %841 = vmatpush.msra.mxu0 %v255
    %842 = vmatpush.msra.mxu0 %v249
    %843 = vmatpush.msra.mxu0 %v243
    %844 = vmatpush.msra.mxu0 %v237
    %845 = vmatpush.msra.mxu0 %v231
    %846 = vmatpush.msra.mxu0 %v225
    %847 = vmatpush.msra.mxu0 %v219
    %848 = vmatmul.f32.gmra.mxu0 %v97
    %v849 = vpop.f32.mrf.mxu0
    %v850 = vadd.f32 %v809, %v849
    %851 = vmatmul.f32.gmra.mxu0 %v100
    %v852 = vpop.f32.mrf.mxu0
    %v853 = vadd.f32 %v812, %v852
    %854 = vmatmul.f32.gmra.mxu0 %v103
    %v855 = vpop.f32.mrf.mxu0
    %v856 = vadd.f32 %v815, %v855
    %857 = vmatmul.f32.gmra.mxu0 %v106
    %v858 = vpop.f32.mrf.mxu0
    %v859 = vadd.f32 %v818, %v858
    %860 = vmatmul.f32.gmra.mxu0 %v109
    %v861 = vpop.f32.mrf.mxu0
    %v862 = vadd.f32 %v821, %v861
    %863 = vmatmul.f32.gmra.mxu0 %v112
    %v864 = vpop.f32.mrf.mxu0
    %v865 = vadd.f32 %v824, %v864
    %866 = vmatmul.f32.gmra.mxu0 %v115
    %v867 = vpop.f32.mrf.mxu0
    %v868 = vadd.f32 %v827, %v867
    %869 = vmatmul.f32.gmra.mxu0 %v118
    %v870 = vpop.f32.mrf.mxu0
    %v871 = vadd.f32 %v830, %v870
    %872 = vdwg.mxu0
    %873 = vmatpush.msra.mxu0 %v405
    %874 = vmatpush.msra.mxu0 %v399
    %875 = vmatpush.msra.mxu0 %v393
    %876 = vmatpush.msra.mxu0 %v387
    %877 = vmatpush.msra.mxu0 %v381
    %878 = vmatpush.msra.mxu0 %v375
    %879 = vmatpush.msra.mxu0 %v369
    %880 = vmatpush.msra.mxu0 %v363
    %881 = vmatpush.msra.mxu0 %v357
    %882 = vmatpush.msra.mxu0 %v351
    %883 = vmatpush.msra.mxu0 %v345
    %884 = vmatpush.msra.mxu0 %v339
    %885 = vmatpush.msra.mxu0 %v333
    %886 = vmatpush.msra.mxu0 %v327
    %887 = vmatpush.msra.mxu0 %v321
    %888 = vmatpush.msra.mxu0 %v315
    %889 = vmatmul.f32.gmra.mxu0 %v98
    %v890 = vpop.f32.mrf.mxu0
    %v891 = vadd.f32 %v850, %v890
    %892 = vmatmul.f32.gmra.mxu0 %v101
    %v893 = vpop.f32.mrf.mxu0
    %v894 = vadd.f32 %v853, %v893
    %895 = vmatmul.f32.gmra.mxu0 %v104
    %v896 = vpop.f32.mrf.mxu0
    %v897 = vadd.f32 %v856, %v896
    %898 = vmatmul.f32.gmra.mxu0 %v107
    %v899 = vpop.f32.mrf.mxu0
    %v900 = vadd.f32 %v859, %v899
    %901 = vmatmul.f32.gmra.mxu0 %v110
    %v902 = vpop.f32.mrf.mxu0
    %v903 = vadd.f32 %v862, %v902
    %904 = vmatmul.f32.gmra.mxu0 %v113
    %v905 = vpop.f32.mrf.mxu0
    %v906 = vadd.f32 %v865, %v905
    %907 = vmatmul.f32.gmra.mxu0 %v116
    %v908 = vpop.f32.mrf.mxu0
    %v909 = vadd.f32 %v868, %v908
    %910 = vmatmul.f32.gmra.mxu0 %v119
    %v911 = vpop.f32.mrf.mxu0
    %v912 = vadd.f32 %v871, %v911
    %913 = vdwg.mxu0
    %914 = vmatpush.msra.mxu0 %v214
    %915 = vmatpush.msra.mxu0 %v208
    %916 = vmatpush.msra.mxu0 %v202
    %917 = vmatpush.msra.mxu0 %v196
    %918 = vmatpush.msra.mxu0 %v190
    %919 = vmatpush.msra.mxu0 %v184
    %920 = vmatpush.msra.mxu0 %v178
    %921 = vmatpush.msra.mxu0 %v172
    %922 = vmatpush.msra.mxu0 %v166
    %923 = vmatpush.msra.mxu0 %v160
    %924 = vmatpush.msra.mxu0 %v154
    %925 = vmatpush.msra.mxu0 %v148
    %926 = vmatpush.msra.mxu0 %v142
    %927 = vmatpush.msra.mxu0 %v136
    %928 = vmatpush.msra.mxu0 %v130
    %929 = vmatpush.msra.mxu0 %v124
    %930 = vmatmul.f32.gmra.mxu0 %v96
    %v931 = vpop.f32.mrf.mxu0
    %v932 = vadd.f32 %v414, %v931
    %933 = vmatmul.f32.gmra.mxu0 %v99
    %v934 = vpop.f32.mrf.mxu0
    %v935 = vadd.f32 %v414, %v934
    %936 = vmatmul.f32.gmra.mxu0 %v102
    %v937 = vpop.f32.mrf.mxu0
    %v938 = vadd.f32 %v414, %v937
    %939 = vmatmul.f32.gmra.mxu0 %v105
    %v940 = vpop.f32.mrf.mxu0
    %v941 = vadd.f32 %v414, %v940
    %942 = vmatmul.f32.gmra.mxu0 %v108
    %v943 = vpop.f32.mrf.mxu0
    %v944 = vadd.f32 %v414, %v943
    %945 = vmatmul.f32.gmra.mxu0 %v111
    %v946 = vpop.f32.mrf.mxu0
    %v947 = vadd.f32 %v414, %v946
    %948 = vmatmul.f32.gmra.mxu0 %v114
    %v949 = vpop.f32.mrf.mxu0
    %v950 = vadd.f32 %v414, %v949
    %951 = vmatmul.f32.gmra.mxu0 %v117
    %v952 = vpop.f32.mrf.mxu0
    %v953 = vadd.f32 %v414, %v952
    %954 = vdwg.mxu0
    %955 = vmatpush.msra.mxu0 %v310
    %956 = vmatpush.msra.mxu0 %v304
    %957 = vmatpush.msra.mxu0 %v298
    %958 = vmatpush.msra.mxu0 %v292
    %959 = vmatpush.msra.mxu0 %v286
    %960 = vmatpush.msra.mxu0 %v280
    %961 = vmatpush.msra.mxu0 %v274
    %962 = vmatpush.msra.mxu0 %v268
    %963 = vmatpush.msra.mxu0 %v262
    %964 = vmatpush.msra.mxu0 %v256
    %965 = vmatpush.msra.mxu0 %v250
    %966 = vmatpush.msra.mxu0 %v244
    %967 = vmatpush.msra.mxu0 %v238
    %968 = vmatpush.msra.mxu0 %v232
    %969 = vmatpush.msra.mxu0 %v226
    %970 = vmatpush.msra.mxu0 %v220
    %971 = vmatmul.f32.gmra.mxu0 %v97
    %v972 = vpop.f32.mrf.mxu0
    %v973 = vadd.f32 %v932, %v972
    %974 = vmatmul.f32.gmra.mxu0 %v100
    %v975 = vpop.f32.mrf.mxu0
    %v976 = vadd.f32 %v935, %v975
    %977 = vmatmul.f32.gmra.mxu0 %v103
    %v978 = vpop.f32.mrf.mxu0
    %v979 = vadd.f32 %v938, %v978
    %980 = vmatmul.f32.gmra.mxu0 %v106
    %v981 = vpop.f32.mrf.mxu0
    %v982 = vadd.f32 %v941, %v981
    %983 = vmatmul.f32.gmra.mxu0 %v109
    %v984 = vpop.f32.mrf.mxu0
    %v985 = vadd.f32 %v944, %v984
    %986 = vmatmul.f32.gmra.mxu0 %v112
    %v987 = vpop.f32.mrf.mxu0
    %v988 = vadd.f32 %v947, %v987
    %989 = vmatmul.f32.gmra.mxu0 %v115
    %v990 = vpop.f32.mrf.mxu0
    %v991 = vadd.f32 %v950, %v990
    %992 = vmatmul.f32.gmra.mxu0 %v118
    %v993 = vpop.f32.mrf.mxu0
    %v994 = vadd.f32 %v953, %v993
    %995 = vdwg.mxu0
    %996 = vmatpush.msra.mxu0 %v406
    %997 = vmatpush.msra.mxu0 %v400
    %998 = vmatpush.msra.mxu0 %v394
    %999 = vmatpush.msra.mxu0 %v388
    %1000 = vmatpush.msra.mxu0 %v382
    %1001 = vmatpush.msra.mxu0 %v376
    %1002 = vmatpush.msra.mxu0 %v370
    %1003 = vmatpush.msra.mxu0 %v364
    %1004 = vmatpush.msra.mxu0 %v358
    %1005 = vmatpush.msra.mxu0 %v352
    %1006 = vmatpush.msra.mxu0 %v346
    %1007 = vmatpush.msra.mxu0 %v340
    %1008 = vmatpush.msra.mxu0 %v334
    %1009 = vmatpush.msra.mxu0 %v328
    %1010 = vmatpush.msra.mxu0 %v322
    %1011 = vmatpush.msra.mxu0 %v316
    %1012 = vmatmul.f32.gmra.mxu0 %v98
    %v1013 = vpop.f32.mrf.mxu0
    %v1014 = vadd.f32 %v973, %v1013
    %1015 = vmatmul.f32.gmra.mxu0 %v101
    %v1016 = vpop.f32.mrf.mxu0
    %v1017 = vadd.f32 %v976, %v1016
    %1018 = vmatmul.f32.gmra.mxu0 %v104
    %v1019 = vpop.f32.mrf.mxu0
    %v1020 = vadd.f32 %v979, %v1019
    %1021 = vmatmul.f32.gmra.mxu0 %v107
    %v1022 = vpop.f32.mrf.mxu0
    %v1023 = vadd.f32 %v982, %v1022
    %1024 = vmatmul.f32.gmra.mxu0 %v110
    %v1025 = vpop.f32.mrf.mxu0
    %v1026 = vadd.f32 %v985, %v1025
    %1027 = vmatmul.f32.gmra.mxu0 %v113
    %v1028 = vpop.f32.mrf.mxu0
    %v1029 = vadd.f32 %v988, %v1028
    %1030 = vmatmul.f32.gmra.mxu0 %v116
    %v1031 = vpop.f32.mrf.mxu0
    %v1032 = vadd.f32 %v991, %v1031
    %1033 = vmatmul.f32.gmra.mxu0 %v119
    %v1034 = vpop.f32.mrf.mxu0
    %v1035 = vadd.f32 %v994, %v1034
    %1036 = vdwg.mxu0
    %1037 = vmatpush.msra.mxu0 %v215
    %1038 = vmatpush.msra.mxu0 %v209
    %1039 = vmatpush.msra.mxu0 %v203
    %1040 = vmatpush.msra.mxu0 %v197
    %1041 = vmatpush.msra.mxu0 %v191
    %1042 = vmatpush.msra.mxu0 %v185
    %1043 = vmatpush.msra.mxu0 %v179
    %1044 = vmatpush.msra.mxu0 %v173
    %1045 = vmatpush.msra.mxu0 %v167
    %1046 = vmatpush.msra.mxu0 %v161
    %1047 = vmatpush.msra.mxu0 %v155
    %1048 = vmatpush.msra.mxu0 %v149
    %1049 = vmatpush.msra.mxu0 %v143
    %1050 = vmatpush.msra.mxu0 %v137
    %1051 = vmatpush.msra.mxu0 %v131
    %1052 = vmatpush.msra.mxu0 %v125
    %1053 = vmatmul.f32.gmra.mxu0 %v96
    %v1054 = vpop.f32.mrf.mxu0
    %v1055 = vadd.f32 %v415, %v1054
    %1056 = vmatmul.f32.gmra.mxu0 %v99
    %v1057 = vpop.f32.mrf.mxu0
    %v1058 = vadd.f32 %v415, %v1057
    %1059 = vmatmul.f32.gmra.mxu0 %v102
    %v1060 = vpop.f32.mrf.mxu0
    %v1061 = vadd.f32 %v415, %v1060
    %1062 = vmatmul.f32.gmra.mxu0 %v105
    %v1063 = vpop.f32.mrf.mxu0
    %v1064 = vadd.f32 %v415, %v1063
    %1065 = vmatmul.f32.gmra.mxu0 %v108
    %v1066 = vpop.f32.mrf.mxu0
    %v1067 = vadd.f32 %v415, %v1066
    %1068 = vmatmul.f32.gmra.mxu0 %v111
    %v1069 = vpop.f32.mrf.mxu0
    %v1070 = vadd.f32 %v415, %v1069
    %1071 = vmatmul.f32.gmra.mxu0 %v114
    %v1072 = vpop.f32.mrf.mxu0
    %v1073 = vadd.f32 %v415, %v1072
    %1074 = vmatmul.f32.gmra.mxu0 %v117
    %v1075 = vpop.f32.mrf.mxu0
    %v1076 = vadd.f32 %v415, %v1075
    %1077 = vdwg.mxu0
    %1078 = vmatpush.msra.mxu0 %v311
    %1079 = vmatpush.msra.mxu0 %v305
    %1080 = vmatpush.msra.mxu0 %v299
    %1081 = vmatpush.msra.mxu0 %v293
    %1082 = vmatpush.msra.mxu0 %v287
    %1083 = vmatpush.msra.mxu0 %v281
    %1084 = vmatpush.msra.mxu0 %v275
    %1085 = vmatpush.msra.mxu0 %v269
    %1086 = vmatpush.msra.mxu0 %v263
    %1087 = vmatpush.msra.mxu0 %v257
    %1088 = vmatpush.msra.mxu0 %v251
    %1089 = vmatpush.msra.mxu0 %v245
    %1090 = vmatpush.msra.mxu0 %v239
    %1091 = vmatpush.msra.mxu0 %v233
    %1092 = vmatpush.msra.mxu0 %v227
    %1093 = vmatpush.msra.mxu0 %v221
    %1094 = vmatmul.f32.gmra.mxu0 %v97
    %v1095 = vpop.f32.mrf.mxu0
    %v1096 = vadd.f32 %v1055, %v1095
    %1097 = vmatmul.f32.gmra.mxu0 %v100
    %v1098 = vpop.f32.mrf.mxu0
    %v1099 = vadd.f32 %v1058, %v1098
    %1100 = vmatmul.f32.gmra.mxu0 %v103
    %v1101 = vpop.f32.mrf.mxu0
    %v1102 = vadd.f32 %v1061, %v1101
    %1103 = vmatmul.f32.gmra.mxu0 %v106
    %v1104 = vpop.f32.mrf.mxu0
    %v1105 = vadd.f32 %v1064, %v1104
    %1106 = vmatmul.f32.gmra.mxu0 %v109
    %v1107 = vpop.f32.mrf.mxu0
    %v1108 = vadd.f32 %v1067, %v1107
    %1109 = vmatmul.f32.gmra.mxu0 %v112
    %v1110 = vpop.f32.mrf.mxu0
    %v1111 = vadd.f32 %v1070, %v1110
    %1112 = vmatmul.f32.gmra.mxu0 %v115
    %v1113 = vpop.f32.mrf.mxu0
    %v1114 = vadd.f32 %v1073, %v1113
    %1115 = vmatmul.f32.gmra.mxu0 %v118
    %v1116 = vpop.f32.mrf.mxu0
    %v1117 = vadd.f32 %v1076, %v1116
    %1118 = vdwg.mxu0
    %1119 = vmatpush.msra.mxu0 %v407
    %1120 = vmatpush.msra.mxu0 %v401
    %1121 = vmatpush.msra.mxu0 %v395
    %1122 = vmatpush.msra.mxu0 %v389
    %1123 = vmatpush.msra.mxu0 %v383
    %1124 = vmatpush.msra.mxu0 %v377
    %1125 = vmatpush.msra.mxu0 %v371
    %1126 = vmatpush.msra.mxu0 %v365
    %1127 = vmatpush.msra.mxu0 %v359
    %1128 = vmatpush.msra.mxu0 %v353
    %1129 = vmatpush.msra.mxu0 %v347
    %1130 = vmatpush.msra.mxu0 %v341
    %1131 = vmatpush.msra.mxu0 %v335
    %1132 = vmatpush.msra.mxu0 %v329
    %1133 = vmatpush.msra.mxu0 %v323
    %1134 = vmatpush.msra.mxu0 %v317
    %1135 = vmatmul.f32.gmra.mxu0 %v98
    %v1136 = vpop.f32.mrf.mxu0
    %v1137 = vadd.f32 %v1096, %v1136
    %1138 = vmatmul.f32.gmra.mxu0 %v101
    %v1139 = vpop.f32.mrf.mxu0
    %v1140 = vadd.f32 %v1099, %v1139
    %1141 = vmatmul.f32.gmra.mxu0 %v104
    %v1142 = vpop.f32.mrf.mxu0
    %v1143 = vadd.f32 %v1102, %v1142
    %1144 = vmatmul.f32.gmra.mxu0 %v107
    %v1145 = vpop.f32.mrf.mxu0
    %v1146 = vadd.f32 %v1105, %v1145
    %1147 = vmatmul.f32.gmra.mxu0 %v110
    %v1148 = vpop.f32.mrf.mxu0
    %v1149 = vadd.f32 %v1108, %v1148
    %1150 = vmatmul.f32.gmra.mxu0 %v113
    %v1151 = vpop.f32.mrf.mxu0
    %v1152 = vadd.f32 %v1111, %v1151
    %1153 = vmatmul.f32.gmra.mxu0 %v116
    %v1154 = vpop.f32.mrf.mxu0
    %v1155 = vadd.f32 %v1114, %v1154
    %1156 = vmatmul.f32.gmra.mxu0 %v119
    %v1157 = vpop.f32.mrf.mxu0
    %v1158 = vadd.f32 %v1117, %v1157
    %1159 = vdwg.mxu0
    %v1160 = vld [vmem:[#allocation10] sm:$0x7]
    %v1162 = vperm.slane %v1160, 0
    %v1163 = vperm.slane %v1160, 1
    %v1164 = vperm.slane %v1160, 2
    %s1168 = scalar_lea.vmem [#allocation10], 3
    %v1169 = vld [vmem:[%s1168] sm:$0x7]
    %v1171 = vperm.slane %v1169, 0
    %v1172 = vperm.slane %v1169, 1
    %v1173 = vperm.slane %v1169, 2
    %s1177 = smul.u32 8, 2
    %s1178 = smul.u32 %s1177, 16
    %s1179 = smul.u32 %s1178, 3
    %s1180 = sshll.u32 %s1179, 4
    %1181 = dma.done [#allocation3], %s1180
    %v1182 = vld [vmem:[#allocation2] sm:$0xff]
    %v1183 = vld [vmem:[#allocation2 + $0x8] sm:$0xff]
    %v1184 = vld [vmem:[#allocation2 + $0x10] sm:$0xff]
    %v1185 = vld [vmem:[#allocation2 + $0x18] sm:$0xff]
    %v1186 = vld [vmem:[#allocation2 + $0x20] sm:$0xff]
    %v1187 = vld [vmem:[#allocation2 + $0x28] sm:$0xff]
    %v1188 = vld [vmem:[#allocation2 + $0x30] sm:$0xff]
    %v1189 = vld [vmem:[#allocation2 + $0x38] sm:$0xff]
    %v1190 = vld [vmem:[#allocation2 + $0x40] sm:$0xff]
    %v1191 = vld [vmem:[#allocation2 + $0x48] sm:$0xff]
    %v1192 = vld [vmem:[#allocation2 + $0x50] sm:$0xff]
    %v1193 = vld [vmem:[#allocation2 + $0x58] sm:$0xff]
    %v1194 = vld [vmem:[#allocation2 + $0x60] sm:$0xff]
    %v1195 = vld [vmem:[#allocation2 + $0x68] sm:$0xff]
    %v1196 = vld [vmem:[#allocation2 + $0x70] sm:$0xff]
    %v1197 = vld [vmem:[#allocation2 + $0x78] sm:$0xff]
    %v1198 = vld [vmem:[#allocation2 + $0x80] sm:$0xff]
    %v1199 = vld [vmem:[#allocation2 + $0x88] sm:$0xff]
    %v1200 = vld [vmem:[#allocation2 + $0x90] sm:$0xff]
    %v1201 = vld [vmem:[#allocation2 + $0x98] sm:$0xff]
    %v1202 = vld [vmem:[#allocation2 + $0xa0] sm:$0xff]
    %v1203 = vld [vmem:[#allocation2 + $0xa8] sm:$0xff]
    %v1204 = vld [vmem:[#allocation2 + $0xb0] sm:$0xff]
    %v1205 = vld [vmem:[#allocation2 + $0xb8] sm:$0xff]
    %v1206 = vld [vmem:[#allocation2 + $0xc0] sm:$0xff]
    %v1207 = vld [vmem:[#allocation2 + $0xc8] sm:$0xff]
    %v1208 = vld [vmem:[#allocation2 + $0xd0] sm:$0xff]
    %v1209 = vld [vmem:[#allocation2 + $0xd8] sm:$0xff]
    %v1210 = vld [vmem:[#allocation2 + $0xe0] sm:$0xff]
    %v1211 = vld [vmem:[#allocation2 + $0xe8] sm:$0xff]
    %v1212 = vld [vmem:[#allocation2 + $0xf0] sm:$0xff]
    %v1213 = vld [vmem:[#allocation2 + $0xf8] sm:$0xff]
    %v1214 = vld [vmem:[#allocation2 + $0x100] sm:$0xff]
    %v1215 = vld [vmem:[#allocation2 + $0x108] sm:$0xff]
    %v1216 = vld [vmem:[#allocation2 + $0x110] sm:$0xff]
    %v1217 = vld [vmem:[#allocation2 + $0x118] sm:$0xff]
    %v1218 = vld [vmem:[#allocation2 + $0x120] sm:$0xff]
    %v1219 = vld [vmem:[#allocation2 + $0x128] sm:$0xff]
    %v1220 = vld [vmem:[#allocation2 + $0x130] sm:$0xff]
    %v1221 = vld [vmem:[#allocation2 + $0x138] sm:$0xff]
    %v1222 = vld [vmem:[#allocation2 + $0x140] sm:$0xff]
    %v1223 = vld [vmem:[#allocation2 + $0x148] sm:$0xff]
    %v1224 = vld [vmem:[#allocation2 + $0x150] sm:$0xff]
    %v1225 = vld [vmem:[#allocation2 + $0x158] sm:$0xff]
    %v1226 = vld [vmem:[#allocation2 + $0x160] sm:$0xff]
    %v1227 = vld [vmem:[#allocation2 + $0x168] sm:$0xff]
    %v1228 = vld [vmem:[#allocation2 + $0x170] sm:$0xff]
    %v1229 = vld [vmem:[#allocation2 + $0x178] sm:$0xff]
    %s1230 = scalar_lea.vmem [#allocation2], 384
    %v1231 = vld [vmem:[%s1230] sm:$0xff]
    %v1232 = vld [vmem:[%s1230 + $0x8] sm:$0xff]
    %v1233 = vld [vmem:[%s1230 + $0x10] sm:$0xff]
    %v1234 = vld [vmem:[%s1230 + $0x18] sm:$0xff]
    %v1235 = vld [vmem:[%s1230 + $0x20] sm:$0xff]
    %v1236 = vld [vmem:[%s1230 + $0x28] sm:$0xff]
    %v1237 = vld [vmem:[%s1230 + $0x30] sm:$0xff]
    %v1238 = vld [vmem:[%s1230 + $0x38] sm:$0xff]
    %v1239 = vld [vmem:[%s1230 + $0x40] sm:$0xff]
    %v1240 = vld [vmem:[%s1230 + $0x48] sm:$0xff]
    %v1241 = vld [vmem:[%s1230 + $0x50] sm:$0xff]
    %v1242 = vld [vmem:[%s1230 + $0x58] sm:$0xff]
    %v1243 = vld [vmem:[%s1230 + $0x60] sm:$0xff]
    %v1244 = vld [vmem:[%s1230 + $0x68] sm:$0xff]
    %v1245 = vld [vmem:[%s1230 + $0x70] sm:$0xff]
    %v1246 = vld [vmem:[%s1230 + $0x78] sm:$0xff]
    %v1247 = vld [vmem:[%s1230 + $0x80] sm:$0xff]
    %v1248 = vld [vmem:[%s1230 + $0x88] sm:$0xff]
    %v1249 = vld [vmem:[%s1230 + $0x90] sm:$0xff]
    %v1250 = vld [vmem:[%s1230 + $0x98] sm:$0xff]
    %v1251 = vld [vmem:[%s1230 + $0xa0] sm:$0xff]
    %v1252 = vld [vmem:[%s1230 + $0xa8] sm:$0xff]
    %v1253 = vld [vmem:[%s1230 + $0xb0] sm:$0xff]
    %v1254 = vld [vmem:[%s1230 + $0xb8] sm:$0xff]
    %v1255 = vld [vmem:[%s1230 + $0xc0] sm:$0xff]
    %v1256 = vld [vmem:[%s1230 + $0xc8] sm:$0xff]
    %v1257 = vld [vmem:[%s1230 + $0xd0] sm:$0xff]
    %v1258 = vld [vmem:[%s1230 + $0xd8] sm:$0xff]
    %v1259 = vld [vmem:[%s1230 + $0xe0] sm:$0xff]
    %v1260 = vld [vmem:[%s1230 + $0xe8] sm:$0xff]
    %v1261 = vld [vmem:[%s1230 + $0xf0] sm:$0xff]
    %v1262 = vld [vmem:[%s1230 + $0xf8] sm:$0xff]
    %v1263 = vld [vmem:[%s1230 + $0x100] sm:$0xff]
    %v1264 = vld [vmem:[%s1230 + $0x108] sm:$0xff]
    %v1265 = vld [vmem:[%s1230 + $0x110] sm:$0xff]
    %v1266 = vld [vmem:[%s1230 + $0x118] sm:$0xff]
    %v1267 = vld [vmem:[%s1230 + $0x120] sm:$0xff]
    %v1268 = vld [vmem:[%s1230 + $0x128] sm:$0xff]
    %v1269 = vld [vmem:[%s1230 + $0x130] sm:$0xff]
    %v1270 = vld [vmem:[%s1230 + $0x138] sm:$0xff]
    %v1271 = vld [vmem:[%s1230 + $0x140] sm:$0xff]
    %v1272 = vld [vmem:[%s1230 + $0x148] sm:$0xff]
    %v1273 = vld [vmem:[%s1230 + $0x150] sm:$0xff]
    %v1274 = vld [vmem:[%s1230 + $0x158] sm:$0xff]
    %v1275 = vld [vmem:[%s1230 + $0x160] sm:$0xff]
    %v1276 = vld [vmem:[%s1230 + $0x168] sm:$0xff]
    %v1277 = vld [vmem:[%s1230 + $0x170] sm:$0xff]
    %v1278 = vld [vmem:[%s1230 + $0x178] sm:$0xff]
    %1279 = vmatpush.msra.mxu0 %v1227
    %1280 = vmatpush.msra.mxu0 %v1224
    %1281 = vmatpush.msra.mxu0 %v1221
    %1282 = vmatpush.msra.mxu0 %v1218
    %1283 = vmatpush.msra.mxu0 %v1215
    %1284 = vmatpush.msra.mxu0 %v1212
    %1285 = vmatpush.msra.mxu0 %v1209
    %1286 = vmatpush.msra.mxu0 %v1206
    %1287 = vmatpush.msra.mxu0 %v1203
    %1288 = vmatpush.msra.mxu0 %v1200
    %1289 = vmatpush.msra.mxu0 %v1197
    %1290 = vmatpush.msra.mxu0 %v1194
    %1291 = vmatpush.msra.mxu0 %v1191
    %1292 = vmatpush.msra.mxu0 %v1188
    %1293 = vmatpush.msra.mxu0 %v1185
    %1294 = vmatpush.msra.mxu0 %v1182
    %1295 = vmatmul.f32.gmra.mxu0 0.0
    %v1296 = vpop.f32.mrf.mxu0
    %v1297 = vadd.f32 %v1162, %v1296
    %1298 = vdwg.mxu0
    %1299 = vmatpush.msra.mxu0 %v1228
    %1300 = vmatpush.msra.mxu0 %v1225
    %1301 = vmatpush.msra.mxu0 %v1222
    %1302 = vmatpush.msra.mxu0 %v1219
    %1303 = vmatpush.msra.mxu0 %v1216
    %1304 = vmatpush.msra.mxu0 %v1213
    %1305 = vmatpush.msra.mxu0 %v1210
    %1306 = vmatpush.msra.mxu0 %v1207
    %1307 = vmatpush.msra.mxu0 %v1204
    %1308 = vmatpush.msra.mxu0 %v1201
    %1309 = vmatpush.msra.mxu0 %v1198
    %1310 = vmatpush.msra.mxu0 %v1195
    %1311 = vmatpush.msra.mxu0 %v1192
    %1312 = vmatpush.msra.mxu0 %v1189
    %1313 = vmatpush.msra.mxu0 %v1186
    %1314 = vmatpush.msra.mxu0 %v1183
    %1315 = vmatmul.f32.gmra.mxu0 0.0
    %v1316 = vpop.f32.mrf.mxu0
    %v1317 = vadd.f32 %v1163, %v1316
    %1318 = vdwg.mxu0
    %1319 = vmatpush.msra.mxu0 %v1229
    %1320 = vmatpush.msra.mxu0 %v1226
    %1321 = vmatpush.msra.mxu0 %v1223
    %1322 = vmatpush.msra.mxu0 %v1220
    %1323 = vmatpush.msra.mxu0 %v1217
    %1324 = vmatpush.msra.mxu0 %v1214
    %1325 = vmatpush.msra.mxu0 %v1211
    %1326 = vmatpush.msra.mxu0 %v1208
    %1327 = vmatpush.msra.mxu0 %v1205
    %1328 = vmatpush.msra.mxu0 %v1202
    %1329 = vmatpush.msra.mxu0 %v1199
    %1330 = vmatpush.msra.mxu0 %v1196
    %1331 = vmatpush.msra.mxu0 %v1193
    %1332 = vmatpush.msra.mxu0 %v1190
    %1333 = vmatpush.msra.mxu0 %v1187
    %1334 = vmatpush.msra.mxu0 %v1184
    %1335 = vmatmul.f32.gmra.mxu0 0.0
    %v1336 = vpop.f32.mrf.mxu0
    %v1337 = vadd.f32 %v1164, %v1336
    %1338 = vdwg.mxu0
    %v1339 = vadd.f32 %v522, %v1297
    %v1340 = vxor.u32 %v1339, 2147483648
    %v1341 = vmul.f32 %v1340, 1.442695
    %v1342 = vpow.pop %v1341
    %v1343 = vadd.f32 %v1342, 1.0
    %v1344 = vrcp.pop %v1343
    %v1345 = vmul.f32 %v1343, %v1344
    %v1346 = vsub.f32 1.0, %v1345
    %v1347 = vmul.f32 %v1344, %v1346
    %v1348 = vadd.f32 %v1344, %v1347
    %vm1349 = vweird.f32 %v1343
    %vm1350 = vweird.f32 %v1344
    %vm1351 = vmor %vm1349, %vm1350
    %v1352 = vsel %vm1351, %v1344, %v1348
    %v1353 = vand.u32 2147483647, %v1343
    %vm1354 = vcmp.eq.f32.partialorder %v1353, 8.507059e+37
    %v1355 = vand.u32 %v1343, 2147483648
    %v1356 = vor.u32 1.1754944e-38, %v1355
    %v1357 = vsel %vm1354, %v1356, %v1352
    %v1358 = vmul.f32 1.0, %v1357
    %v1359 = vadd.f32 %v645, %v1317
    %v1360 = vxor.u32 %v1359, 2147483648
    %v1361 = vmul.f32 %v1360, 1.442695
    %v1362 = vpow.pop %v1361
    %v1363 = vadd.f32 %v1362, 1.0
    %v1364 = vrcp.pop %v1363
    %v1365 = vmul.f32 %v1363, %v1364
    %v1366 = vsub.f32 1.0, %v1365
    %v1367 = vmul.f32 %v1364, %v1366
    %v1368 = vadd.f32 %v1364, %v1367
    %vm1369 = vweird.f32 %v1363
    %vm1370 = vweird.f32 %v1364
    %vm1371 = vmor %vm1369, %vm1370
    %v1372 = vsel %vm1371, %v1364, %v1368
    %v1373 = vand.u32 2147483647, %v1363
    %vm1374 = vcmp.eq.f32.partialorder %v1373, 8.507059e+37
    %v1375 = vand.u32 %v1363, 2147483648
    %v1376 = vor.u32 1.1754944e-38, %v1375
    %v1377 = vsel %vm1374, %v1376, %v1372
    %v1378 = vmul.f32 1.0, %v1377
    %v1379 = vmul.f32 %v1358, %v1337
    %v1380 = vadd.f32 %v768, %v1379
    %v1381 = vtanh.pop %v1380
    %v1382 = vsub.f32 1.0, %v1378
    %v1383 = vmul.f32 %v1382, %v1381
    %v1384 = vmul.f32 %v1378, 0.0
    %v1385 = vadd.f32 %v1383, %v1384
    %1386 = vmatpush.msra.mxu0 %v1276
    %1387 = vmatpush.msra.mxu0 %v1273
    %1388 = vmatpush.msra.mxu0 %v1270
    %1389 = vmatpush.msra.mxu0 %v1267
    %1390 = vmatpush.msra.mxu0 %v1264
    %1391 = vmatpush.msra.mxu0 %v1261
    %1392 = vmatpush.msra.mxu0 %v1258
    %1393 = vmatpush.msra.mxu0 %v1255
    %1394 = vmatpush.msra.mxu0 %v1252
    %1395 = vmatpush.msra.mxu0 %v1249
    %1396 = vmatpush.msra.mxu0 %v1246
    %1397 = vmatpush.msra.mxu0 %v1243
    %1398 = vmatpush.msra.mxu0 %v1240
    %1399 = vmatpush.msra.mxu0 %v1237
    %1400 = vmatpush.msra.mxu0 %v1234
    %1401 = vmatpush.msra.mxu0 %v1231
    %1402 = vmatmul.f32.gmra.mxu0 0.0
    %v1403 = vpop.f32.mrf.mxu0
    %v1404 = vadd.f32 %v1171, %v1403
    %1405 = vdwg.mxu0
    %1406 = vmatpush.msra.mxu0 %v1277
    %1407 = vmatpush.msra.mxu0 %v1274
    %1408 = vmatpush.msra.mxu0 %v1271
    %1409 = vmatpush.msra.mxu0 %v1268
    %1410 = vmatpush.msra.mxu0 %v1265
    %1411 = vmatpush.msra.mxu0 %v1262
    %1412 = vmatpush.msra.mxu0 %v1259
    %1413 = vmatpush.msra.mxu0 %v1256
    %1414 = vmatpush.msra.mxu0 %v1253
    %1415 = vmatpush.msra.mxu0 %v1250
    %1416 = vmatpush.msra.mxu0 %v1247
    %1417 = vmatpush.msra.mxu0 %v1244
    %1418 = vmatpush.msra.mxu0 %v1241
    %1419 = vmatpush.msra.mxu0 %v1238
    %1420 = vmatpush.msra.mxu0 %v1235
    %1421 = vmatpush.msra.mxu0 %v1232
    %1422 = vmatmul.f32.gmra.mxu0 0.0
    %v1423 = vpop.f32.mrf.mxu0
    %v1424 = vadd.f32 %v1172, %v1423
    %1425 = vdwg.mxu0
    %1426 = vmatpush.msra.mxu0 %v1278
    %1427 = vmatpush.msra.mxu0 %v1275
    %1428 = vmatpush.msra.mxu0 %v1272
    %1429 = vmatpush.msra.mxu0 %v1269
    %1430 = vmatpush.msra.mxu0 %v1266
    %1431 = vmatpush.msra.mxu0 %v1263
    %1432 = vmatpush.msra.mxu0 %v1260
    %1433 = vmatpush.msra.mxu0 %v1257
    %1434 = vmatpush.msra.mxu0 %v1254
    %1435 = vmatpush.msra.mxu0 %v1251
    %1436 = vmatpush.msra.mxu0 %v1248
    %1437 = vmatpush.msra.mxu0 %v1245
    %1438 = vmatpush.msra.mxu0 %v1242
    %1439 = vmatpush.msra.mxu0 %v1239
    %1440 = vmatpush.msra.mxu0 %v1236
    %1441 = vmatpush.msra.mxu0 %v1233
    %1442 = vmatmul.f32.gmra.mxu0 0.0
    %v1443 = vpop.f32.mrf.mxu0
    %v1444 = vadd.f32 %v1173, %v1443
    %1445 = vdwg.mxu0
    %v1446 = vadd.f32 %v912, %v1404
    %v1447 = vxor.u32 %v1446, 2147483648
    %v1448 = vmul.f32 %v1447, 1.442695
    %v1449 = vpow.pop %v1448
    %v1450 = vadd.f32 %v1449, 1.0
    %v1451 = vrcp.pop %v1450
    %v1452 = vmul.f32 %v1450, %v1451
    %v1453 = vsub.f32 1.0, %v1452
    %v1454 = vmul.f32 %v1451, %v1453
    %v1455 = vadd.f32 %v1451, %v1454
    %vm1456 = vweird.f32 %v1450
    %vm1457 = vweird.f32 %v1451
    %vm1458 = vmor %vm1456, %vm1457
    %v1459 = vsel %vm1458, %v1451, %v1455
    %v1460 = vand.u32 2147483647, %v1450
    %vm1461 = vcmp.eq.f32.partialorder %v1460, 8.507059e+37
    %v1462 = vand.u32 %v1450, 2147483648
    %v1463 = vor.u32 1.1754944e-38, %v1462
    %v1464 = vsel %vm1461, %v1463, %v1459
    %v1465 = vmul.f32 1.0, %v1464
    %v1466 = vadd.f32 %v1035, %v1424
    %v1467 = vxor.u32 %v1466, 2147483648
    %v1468 = vmul.f32 %v1467, 1.442695
    %v1469 = vpow.pop %v1468
    %v1470 = vadd.f32 %v1469, 1.0
    %v1471 = vrcp.pop %v1470
    %v1472 = vmul.f32 %v1470, %v1471
    %v1473 = vsub.f32 1.0, %v1472
    %v1474 = vmul.f32 %v1471, %v1473
    %v1475 = vadd.f32 %v1471, %v1474
    %vm1476 = vweird.f32 %v1470
    %vm1477 = vweird.f32 %v1471
    %vm1478 = vmor %vm1476, %vm1477
    %v1479 = vsel %vm1478, %v1471, %v1475
    %v1480 = vand.u32 2147483647, %v1470
    %vm1481 = vcmp.eq.f32.partialorder %v1480, 8.507059e+37
    %v1482 = vand.u32 %v1470, 2147483648
    %v1483 = vor.u32 1.1754944e-38, %v1482
    %v1484 = vsel %vm1481, %v1483, %v1479
    %v1485 = vmul.f32 1.0, %v1484
    %v1486 = vmul.f32 %v1465, %v1444
    %v1487 = vadd.f32 %v1158, %v1486
    %v1488 = vtanh.pop %v1487
    %v1489 = vsub.f32 1.0, %v1485
    %v1490 = vmul.f32 %v1489, %v1488
    %v1491 = vmul.f32 %v1485, 0.0
    %v1492 = vadd.f32 %v1490, %v1491
    %1493 = vst [vmem:[#allocation12] sm:$0xff] %v1385
    %s1494 = scalar_lea.vmem [#allocation12], 112
    %1495 = vst [vmem:[%s1494 + $0x8] sm:$0xff] %v1492
    %1496 = vmatpush.msra.mxu0 %v1227
    %1497 = vmatpush.msra.mxu0 %v1224
    %1498 = vmatpush.msra.mxu0 %v1221
    %1499 = vmatpush.msra.mxu0 %v1218
    %1500 = vmatpush.msra.mxu0 %v1215
    %1501 = vmatpush.msra.mxu0 %v1212
    %1502 = vmatpush.msra.mxu0 %v1209
    %1503 = vmatpush.msra.mxu0 %v1206
    %1504 = vmatpush.msra.mxu0 %v1203
    %1505 = vmatpush.msra.mxu0 %v1200
    %1506 = vmatpush.msra.mxu0 %v1197
    %1507 = vmatpush.msra.mxu0 %v1194
    %1508 = vmatpush.msra.mxu0 %v1191
    %1509 = vmatpush.msra.mxu0 %v1188
    %1510 = vmatpush.msra.mxu0 %v1185
    %1511 = vmatpush.msra.mxu0 %v1182
    %1512 = vmatmul.f32.gmra.mxu0 %v1385
    %v1513 = vpop.f32.mrf.mxu0
    %v1514 = vadd.f32 %v1162, %v1513
    %1515 = vdwg.mxu0
    %1516 = vmatpush.msra.mxu0 %v1228
    %1517 = vmatpush.msra.mxu0 %v1225
    %1518 = vmatpush.msra.mxu0 %v1222
    %1519 = vmatpush.msra.mxu0 %v1219
    %1520 = vmatpush.msra.mxu0 %v1216
    %1521 = vmatpush.msra.mxu0 %v1213
    %1522 = vmatpush.msra.mxu0 %v1210
    %1523 = vmatpush.msra.mxu0 %v1207
    %1524 = vmatpush.msra.mxu0 %v1204
    %1525 = vmatpush.msra.mxu0 %v1201
    %1526 = vmatpush.msra.mxu0 %v1198
    %1527 = vmatpush.msra.mxu0 %v1195
    %1528 = vmatpush.msra.mxu0 %v1192
    %1529 = vmatpush.msra.mxu0 %v1189
    %1530 = vmatpush.msra.mxu0 %v1186
    %1531 = vmatpush.msra.mxu0 %v1183
    %1532 = vmatmul.f32.gmra.mxu0 %v1385
    %v1533 = vpop.f32.mrf.mxu0
    %v1534 = vadd.f32 %v1163, %v1533
    %1535 = vdwg.mxu0
    %1536 = vmatpush.msra.mxu0 %v1229
    %1537 = vmatpush.msra.mxu0 %v1226
    %1538 = vmatpush.msra.mxu0 %v1223
    %1539 = vmatpush.msra.mxu0 %v1220
    %1540 = vmatpush.msra.mxu0 %v1217
    %1541 = vmatpush.msra.mxu0 %v1214
    %1542 = vmatpush.msra.mxu0 %v1211
    %1543 = vmatpush.msra.mxu0 %v1208
    %1544 = vmatpush.msra.mxu0 %v1205
    %1545 = vmatpush.msra.mxu0 %v1202
    %1546 = vmatpush.msra.mxu0 %v1199
    %1547 = vmatpush.msra.mxu0 %v1196
    %1548 = vmatpush.msra.mxu0 %v1193
    %1549 = vmatpush.msra.mxu0 %v1190
    %1550 = vmatpush.msra.mxu0 %v1187
    %1551 = vmatpush.msra.mxu0 %v1184
    %1552 = vmatmul.f32.gmra.mxu0 %v1385
    %v1553 = vpop.f32.mrf.mxu0
    %v1554 = vadd.f32 %v1164, %v1553
    %1555 = vdwg.mxu0
    %v1556 = vadd.f32 %v525, %v1514
    %v1557 = vxor.u32 %v1556, 2147483648
    %v1558 = vmul.f32 %v1557, 1.442695
    %v1559 = vpow.pop %v1558
    %v1560 = vadd.f32 %v1559, 1.0
    %v1561 = vrcp.pop %v1560
    %v1562 = vmul.f32 %v1560, %v1561
    %v1563 = vsub.f32 1.0, %v1562
    %v1564 = vmul.f32 %v1561, %v1563
    %v1565 = vadd.f32 %v1561, %v1564
    %vm1566 = vweird.f32 %v1560
    %vm1567 = vweird.f32 %v1561
    %vm1568 = vmor %vm1566, %vm1567
    %v1569 = vsel %vm1568, %v1561, %v1565
    %v1570 = vand.u32 2147483647, %v1560
    %vm1571 = vcmp.eq.f32.partialorder %v1570, 8.507059e+37
    %v1572 = vand.u32 %v1560, 2147483648
    %v1573 = vor.u32 1.1754944e-38, %v1572
    %v1574 = vsel %vm1571, %v1573, %v1569
    %v1575 = vmul.f32 1.0, %v1574
    %v1576 = vadd.f32 %v648, %v1534
    %v1577 = vxor.u32 %v1576, 2147483648
    %v1578 = vmul.f32 %v1577, 1.442695
    %v1579 = vpow.pop %v1578
    %v1580 = vadd.f32 %v1579, 1.0
    %v1581 = vrcp.pop %v1580
    %v1582 = vmul.f32 %v1580, %v1581
    %v1583 = vsub.f32 1.0, %v1582
    %v1584 = vmul.f32 %v1581, %v1583
    %v1585 = vadd.f32 %v1581, %v1584
    %vm1586 = vweird.f32 %v1580
    %vm1587 = vweird.f32 %v1581
    %vm1588 = vmor %vm1586, %vm1587
    %v1589 = vsel %vm1588, %v1581, %v1585
    %v1590 = vand.u32 2147483647, %v1580
    %vm1591 = vcmp.eq.f32.partialorder %v1590, 8.507059e+37
    %v1592 = vand.u32 %v1580, 2147483648
    %v1593 = vor.u32 1.1754944e-38, %v1592
    %v1594 = vsel %vm1591, %v1593, %v1589
    %v1595 = vmul.f32 1.0, %v1594
    %v1596 = vmul.f32 %v1575, %v1554
    %v1597 = vadd.f32 %v771, %v1596
    %v1598 = vtanh.pop %v1597
    %v1599 = vsub.f32 1.0, %v1595
    %v1600 = vmul.f32 %v1599, %v1598
    %v1601 = vmul.f32 %v1595, %v1385
    %v1602 = vadd.f32 %v1600, %v1601
    %1603 = vmatpush.msra.mxu0 %v1276
    %1604 = vmatpush.msra.mxu0 %v1273
    %1605 = vmatpush.msra.mxu0 %v1270
    %1606 = vmatpush.msra.mxu0 %v1267
    %1607 = vmatpush.msra.mxu0 %v1264
    %1608 = vmatpush.msra.mxu0 %v1261
    %1609 = vmatpush.msra.mxu0 %v1258
    %1610 = vmatpush.msra.mxu0 %v1255
    %1611 = vmatpush.msra.mxu0 %v1252
    %1612 = vmatpush.msra.mxu0 %v1249
    %1613 = vmatpush.msra.mxu0 %v1246
    %1614 = vmatpush.msra.mxu0 %v1243
    %1615 = vmatpush.msra.mxu0 %v1240
    %1616 = vmatpush.msra.mxu0 %v1237
    %1617 = vmatpush.msra.mxu0 %v1234
    %1618 = vmatpush.msra.mxu0 %v1231
    %1619 = vmatmul.f32.gmra.mxu0 %v1492
    %v1620 = vpop.f32.mrf.mxu0
    %v1621 = vadd.f32 %v1171, %v1620
    %1622 = vdwg.mxu0
    %1623 = vmatpush.msra.mxu0 %v1277
    %1624 = vmatpush.msra.mxu0 %v1274
    %1625 = vmatpush.msra.mxu0 %v1271
    %1626 = vmatpush.msra.mxu0 %v1268
    %1627 = vmatpush.msra.mxu0 %v1265
    %1628 = vmatpush.msra.mxu0 %v1262
    %1629 = vmatpush.msra.mxu0 %v1259
    %1630 = vmatpush.msra.mxu0 %v1256
    %1631 = vmatpush.msra.mxu0 %v1253
    %1632 = vmatpush.msra.mxu0 %v1250
    %1633 = vmatpush.msra.mxu0 %v1247
    %1634 = vmatpush.msra.mxu0 %v1244
    %1635 = vmatpush.msra.mxu0 %v1241
    %1636 = vmatpush.msra.mxu0 %v1238
    %1637 = vmatpush.msra.mxu0 %v1235
    %1638 = vmatpush.msra.mxu0 %v1232
    %1639 = vmatmul.f32.gmra.mxu0 %v1492
    %v1640 = vpop.f32.mrf.mxu0
    %v1641 = vadd.f32 %v1172, %v1640
    %1642 = vdwg.mxu0
    %1643 = vmatpush.msra.mxu0 %v1278
    %1644 = vmatpush.msra.mxu0 %v1275
    %1645 = vmatpush.msra.mxu0 %v1272
    %1646 = vmatpush.msra.mxu0 %v1269
    %1647 = vmatpush.msra.mxu0 %v1266
    %1648 = vmatpush.msra.mxu0 %v1263
    %1649 = vmatpush.msra.mxu0 %v1260
    %1650 = vmatpush.msra.mxu0 %v1257
    %1651 = vmatpush.msra.mxu0 %v1254
    %1652 = vmatpush.msra.mxu0 %v1251
    %1653 = vmatpush.msra.mxu0 %v1248
    %1654 = vmatpush.msra.mxu0 %v1245
    %1655 = vmatpush.msra.mxu0 %v1242
    %1656 = vmatpush.msra.mxu0 %v1239
    %1657 = vmatpush.msra.mxu0 %v1236
    %1658 = vmatpush.msra.mxu0 %v1233
    %1659 = vmatmul.f32.gmra.mxu0 %v1492
    %v1660 = vpop.f32.mrf.mxu0
    %v1661 = vadd.f32 %v1173, %v1660
    %1662 = vdwg.mxu0
    %v1663 = vadd.f32 %v909, %v1621
    %v1664 = vxor.u32 %v1663, 2147483648
    %v1665 = vmul.f32 %v1664, 1.442695
    %v1666 = vpow.pop %v1665
    %v1667 = vadd.f32 %v1666, 1.0
    %v1668 = vrcp.pop %v1667
    %v1669 = vmul.f32 %v1667, %v1668
    %v1670 = vsub.f32 1.0, %v1669
    %v1671 = vmul.f32 %v1668, %v1670
    %v1672 = vadd.f32 %v1668, %v1671
    %vm1673 = vweird.f32 %v1667
    %vm1674 = vweird.f32 %v1668
    %vm1675 = vmor %vm1673, %vm1674
    %v1676 = vsel %vm1675, %v1668, %v1672
    %v1677 = vand.u32 2147483647, %v1667
    %vm1678 = vcmp.eq.f32.partialorder %v1677, 8.507059e+37
    %v1679 = vand.u32 %v1667, 2147483648
    %v1680 = vor.u32 1.1754944e-38, %v1679
    %v1681 = vsel %vm1678, %v1680, %v1676
    %v1682 = vmul.f32 1.0, %v1681
    %v1683 = vadd.f32 %v1032, %v1641
    %v1684 = vxor.u32 %v1683, 2147483648
    %v1685 = vmul.f32 %v1684, 1.442695
    %v1686 = vpow.pop %v1685
    %v1687 = vadd.f32 %v1686, 1.0
    %v1688 = vrcp.pop %v1687
    %v1689 = vmul.f32 %v1687, %v1688
    %v1690 = vsub.f32 1.0, %v1689
    %v1691 = vmul.f32 %v1688, %v1690
    %v1692 = vadd.f32 %v1688, %v1691
    %vm1693 = vweird.f32 %v1687
    %vm1694 = vweird.f32 %v1688
    %vm1695 = vmor %vm1693, %vm1694
    %v1696 = vsel %vm1695, %v1688, %v1692
    %v1697 = vand.u32 2147483647, %v1687
    %vm1698 = vcmp.eq.f32.partialorder %v1697, 8.507059e+37
    %v1699 = vand.u32 %v1687, 2147483648
    %v1700 = vor.u32 1.1754944e-38, %v1699
    %v1701 = vsel %vm1698, %v1700, %v1696
    %v1702 = vmul.f32 1.0, %v1701
    %v1703 = vmul.f32 %v1682, %v1661
    %v1704 = vadd.f32 %v1155, %v1703
    %v1705 = vtanh.pop %v1704
    %v1706 = vsub.f32 1.0, %v1702
    %v1707 = vmul.f32 %v1706, %v1705
    %v1708 = vmul.f32 %v1702, %v1492
    %v1709 = vadd.f32 %v1707, %v1708
    %s1710 = scalar_lea.vmem [#allocation12], 16
    %1711 = vst [vmem:[%s1710] sm:$0xff] %v1602
    %s1712 = scalar_lea.vmem [#allocation12], 96
    %1713 = vst [vmem:[%s1712 + $0x8] sm:$0xff] %v1709
    %1714 = vmatpush.msra.mxu0 %v1227
    %1715 = vmatpush.msra.mxu0 %v1224
    %1716 = vmatpush.msra.mxu0 %v1221
    %1717 = vmatpush.msra.mxu0 %v1218
    %1718 = vmatpush.msra.mxu0 %v1215
    %1719 = vmatpush.msra.mxu0 %v1212
    %1720 = vmatpush.msra.mxu0 %v1209
    %1721 = vmatpush.msra.mxu0 %v1206
    %1722 = vmatpush.msra.mxu0 %v1203
    %1723 = vmatpush.msra.mxu0 %v1200
    %1724 = vmatpush.msra.mxu0 %v1197
    %1725 = vmatpush.msra.mxu0 %v1194
    %1726 = vmatpush.msra.mxu0 %v1191
    %1727 = vmatpush.msra.mxu0 %v1188
    %1728 = vmatpush.msra.mxu0 %v1185
    %1729 = vmatpush.msra.mxu0 %v1182
    %1730 = vmatmul.f32.gmra.mxu0 %v1602
    %v1731 = vpop.f32.mrf.mxu0
    %v1732 = vadd.f32 %v1162, %v1731
    %1733 = vdwg.mxu0
    %1734 = vmatpush.msra.mxu0 %v1228
    %1735 = vmatpush.msra.mxu0 %v1225
    %1736 = vmatpush.msra.mxu0 %v1222
    %1737 = vmatpush.msra.mxu0 %v1219
    %1738 = vmatpush.msra.mxu0 %v1216
    %1739 = vmatpush.msra.mxu0 %v1213
    %1740 = vmatpush.msra.mxu0 %v1210
    %1741 = vmatpush.msra.mxu0 %v1207
    %1742 = vmatpush.msra.mxu0 %v1204
    %1743 = vmatpush.msra.mxu0 %v1201
    %1744 = vmatpush.msra.mxu0 %v1198
    %1745 = vmatpush.msra.mxu0 %v1195
    %1746 = vmatpush.msra.mxu0 %v1192
    %1747 = vmatpush.msra.mxu0 %v1189
    %1748 = vmatpush.msra.mxu0 %v1186
    %1749 = vmatpush.msra.mxu0 %v1183
    %1750 = vmatmul.f32.gmra.mxu0 %v1602
    %v1751 = vpop.f32.mrf.mxu0
    %v1752 = vadd.f32 %v1163, %v1751
    %1753 = vdwg.mxu0
    %1754 = vmatpush.msra.mxu0 %v1229
    %1755 = vmatpush.msra.mxu0 %v1226
    %1756 = vmatpush.msra.mxu0 %v1223
    %1757 = vmatpush.msra.mxu0 %v1220
    %1758 = vmatpush.msra.mxu0 %v1217
    %1759 = vmatpush.msra.mxu0 %v1214
    %1760 = vmatpush.msra.mxu0 %v1211
    %1761 = vmatpush.msra.mxu0 %v1208
    %1762 = vmatpush.msra.mxu0 %v1205
    %1763 = vmatpush.msra.mxu0 %v1202
    %1764 = vmatpush.msra.mxu0 %v1199
    %1765 = vmatpush.msra.mxu0 %v1196
    %1766 = vmatpush.msra.mxu0 %v1193
    %1767 = vmatpush.msra.mxu0 %v1190
    %1768 = vmatpush.msra.mxu0 %v1187
    %1769 = vmatpush.msra.mxu0 %v1184
    %1770 = vmatmul.f32.gmra.mxu0 %v1602
    %v1771 = vpop.f32.mrf.mxu0
    %v1772 = vadd.f32 %v1164, %v1771
    %1773 = vdwg.mxu0
    %v1774 = vadd.f32 %v528, %v1732
    %v1775 = vxor.u32 %v1774, 2147483648
    %v1776 = vmul.f32 %v1775, 1.442695
    %v1777 = vpow.pop %v1776
    %v1778 = vadd.f32 %v1777, 1.0
    %v1779 = vrcp.pop %v1778
    %v1780 = vmul.f32 %v1778, %v1779
    %v1781 = vsub.f32 1.0, %v1780
    %v1782 = vmul.f32 %v1779, %v1781
    %v1783 = vadd.f32 %v1779, %v1782
    %vm1784 = vweird.f32 %v1778
    %vm1785 = vweird.f32 %v1779
    %vm1786 = vmor %vm1784, %vm1785
    %v1787 = vsel %vm1786, %v1779, %v1783
    %v1788 = vand.u32 2147483647, %v1778
    %vm1789 = vcmp.eq.f32.partialorder %v1788, 8.507059e+37
    %v1790 = vand.u32 %v1778, 2147483648
    %v1791 = vor.u32 1.1754944e-38, %v1790
    %v1792 = vsel %vm1789, %v1791, %v1787
    %v1793 = vmul.f32 1.0, %v1792
    %v1794 = vadd.f32 %v651, %v1752
    %v1795 = vxor.u32 %v1794, 2147483648
    %v1796 = vmul.f32 %v1795, 1.442695
    %v1797 = vpow.pop %v1796
    %v1798 = vadd.f32 %v1797, 1.0
    %v1799 = vrcp.pop %v1798
    %v1800 = vmul.f32 %v1798, %v1799
    %v1801 = vsub.f32 1.0, %v1800
    %v1802 = vmul.f32 %v1799, %v1801
    %v1803 = vadd.f32 %v1799, %v1802
    %vm1804 = vweird.f32 %v1798
    %vm1805 = vweird.f32 %v1799
    %vm1806 = vmor %vm1804, %vm1805
    %v1807 = vsel %vm1806, %v1799, %v1803
    %v1808 = vand.u32 2147483647, %v1798
    %vm1809 = vcmp.eq.f32.partialorder %v1808, 8.507059e+37
    %v1810 = vand.u32 %v1798, 2147483648
    %v1811 = vor.u32 1.1754944e-38, %v1810
    %v1812 = vsel %vm1809, %v1811, %v1807
    %v1813 = vmul.f32 1.0, %v1812
    %v1814 = vmul.f32 %v1793, %v1772
    %v1815 = vadd.f32 %v774, %v1814
    %v1816 = vtanh.pop %v1815
    %v1817 = vsub.f32 1.0, %v1813
    %v1818 = vmul.f32 %v1817, %v1816
    %v1819 = vmul.f32 %v1813, %v1602
    %v1820 = vadd.f32 %v1818, %v1819
    %1821 = vmatpush.msra.mxu0 %v1276
    %1822 = vmatpush.msra.mxu0 %v1273
    %1823 = vmatpush.msra.mxu0 %v1270
    %1824 = vmatpush.msra.mxu0 %v1267
    %1825 = vmatpush.msra.mxu0 %v1264
    %1826 = vmatpush.msra.mxu0 %v1261
    %1827 = vmatpush.msra.mxu0 %v1258
    %1828 = vmatpush.msra.mxu0 %v1255
    %1829 = vmatpush.msra.mxu0 %v1252
    %1830 = vmatpush.msra.mxu0 %v1249
    %1831 = vmatpush.msra.mxu0 %v1246
    %1832 = vmatpush.msra.mxu0 %v1243
    %1833 = vmatpush.msra.mxu0 %v1240
    %1834 = vmatpush.msra.mxu0 %v1237
    %1835 = vmatpush.msra.mxu0 %v1234
    %1836 = vmatpush.msra.mxu0 %v1231
    %1837 = vmatmul.f32.gmra.mxu0 %v1709
    %v1838 = vpop.f32.mrf.mxu0
    %v1839 = vadd.f32 %v1171, %v1838
    %1840 = vdwg.mxu0
    %1841 = vmatpush.msra.mxu0 %v1277
    %1842 = vmatpush.msra.mxu0 %v1274
    %1843 = vmatpush.msra.mxu0 %v1271
    %1844 = vmatpush.msra.mxu0 %v1268
    %1845 = vmatpush.msra.mxu0 %v1265
    %1846 = vmatpush.msra.mxu0 %v1262
    %1847 = vmatpush.msra.mxu0 %v1259
    %1848 = vmatpush.msra.mxu0 %v1256
    %1849 = vmatpush.msra.mxu0 %v1253
    %1850 = vmatpush.msra.mxu0 %v1250
    %1851 = vmatpush.msra.mxu0 %v1247
    %1852 = vmatpush.msra.mxu0 %v1244
    %1853 = vmatpush.msra.mxu0 %v1241
    %1854 = vmatpush.msra.mxu0 %v1238
    %1855 = vmatpush.msra.mxu0 %v1235
    %1856 = vmatpush.msra.mxu0 %v1232
    %1857 = vmatmul.f32.gmra.mxu0 %v1709
    %v1858 = vpop.f32.mrf.mxu0
    %v1859 = vadd.f32 %v1172, %v1858
    %1860 = vdwg.mxu0
    %1861 = vmatpush.msra.mxu0 %v1278
    %1862 = vmatpush.msra.mxu0 %v1275
    %1863 = vmatpush.msra.mxu0 %v1272
    %1864 = vmatpush.msra.mxu0 %v1269
    %1865 = vmatpush.msra.mxu0 %v1266
    %1866 = vmatpush.msra.mxu0 %v1263
    %1867 = vmatpush.msra.mxu0 %v1260
    %1868 = vmatpush.msra.mxu0 %v1257
    %1869 = vmatpush.msra.mxu0 %v1254
    %1870 = vmatpush.msra.mxu0 %v1251
    %1871 = vmatpush.msra.mxu0 %v1248
    %1872 = vmatpush.msra.mxu0 %v1245
    %1873 = vmatpush.msra.mxu0 %v1242
    %1874 = vmatpush.msra.mxu0 %v1239
    %1875 = vmatpush.msra.mxu0 %v1236
    %1876 = vmatpush.msra.mxu0 %v1233
    %1877 = vmatmul.f32.gmra.mxu0 %v1709
    %v1878 = vpop.f32.mrf.mxu0
    %v1879 = vadd.f32 %v1173, %v1878
    %1880 = vdwg.mxu0
    %v1881 = vadd.f32 %v906, %v1839
    %v1882 = vxor.u32 %v1881, 2147483648
    %v1883 = vmul.f32 %v1882, 1.442695
    %v1884 = vpow.pop %v1883
    %v1885 = vadd.f32 %v1884, 1.0
    %v1886 = vrcp.pop %v1885
    %v1887 = vmul.f32 %v1885, %v1886
    %v1888 = vsub.f32 1.0, %v1887
    %v1889 = vmul.f32 %v1886, %v1888
    %v1890 = vadd.f32 %v1886, %v1889
    %vm1891 = vweird.f32 %v1885
    %vm1892 = vweird.f32 %v1886
    %vm1893 = vmor %vm1891, %vm1892
    %v1894 = vsel %vm1893, %v1886, %v1890
    %v1895 = vand.u32 2147483647, %v1885
    %vm1896 = vcmp.eq.f32.partialorder %v1895, 8.507059e+37
    %v1897 = vand.u32 %v1885, 2147483648
    %v1898 = vor.u32 1.1754944e-38, %v1897
    %v1899 = vsel %vm1896, %v1898, %v1894
    %v1900 = vmul.f32 1.0, %v1899
    %v1901 = vadd.f32 %v1029, %v1859
    %v1902 = vxor.u32 %v1901, 2147483648
    %v1903 = vmul.f32 %v1902, 1.442695
    %v1904 = vpow.pop %v1903
    %v1905 = vadd.f32 %v1904, 1.0
    %v1906 = vrcp.pop %v1905
    %v1907 = vmul.f32 %v1905, %v1906
    %v1908 = vsub.f32 1.0, %v1907
    %v1909 = vmul.f32 %v1906, %v1908
    %v1910 = vadd.f32 %v1906, %v1909
    %vm1911 = vweird.f32 %v1905
    %vm1912 = vweird.f32 %v1906
    %vm1913 = vmor %vm1911, %vm1912
    %v1914 = vsel %vm1913, %v1906, %v1910
    %v1915 = vand.u32 2147483647, %v1905
    %vm1916 = vcmp.eq.f32.partialorder %v1915, 8.507059e+37
    %v1917 = vand.u32 %v1905, 2147483648
    %v1918 = vor.u32 1.1754944e-38, %v1917
    %v1919 = vsel %vm1916, %v1918, %v1914
    %v1920 = vmul.f32 1.0, %v1919
    %v1921 = vmul.f32 %v1900, %v1879
    %v1922 = vadd.f32 %v1152, %v1921
    %v1923 = vtanh.pop %v1922
    %v1924 = vsub.f32 1.0, %v1920
    %v1925 = vmul.f32 %v1924, %v1923
    %v1926 = vmul.f32 %v1920, %v1709
    %v1927 = vadd.f32 %v1925, %v1926
    %s1928 = scalar_lea.vmem [#allocation12], 32
    %1929 = vst [vmem:[%s1928] sm:$0xff] %v1820
    %s1930 = scalar_lea.vmem [#allocation12], 80
    %1931 = vst [vmem:[%s1930 + $0x8] sm:$0xff] %v1927
    %1932 = vmatpush.msra.mxu0 %v1227
    %1933 = vmatpush.msra.mxu0 %v1224
    %1934 = vmatpush.msra.mxu0 %v1221
    %1935 = vmatpush.msra.mxu0 %v1218
    %1936 = vmatpush.msra.mxu0 %v1215
    %1937 = vmatpush.msra.mxu0 %v1212
    %1938 = vmatpush.msra.mxu0 %v1209
    %1939 = vmatpush.msra.mxu0 %v1206
    %1940 = vmatpush.msra.mxu0 %v1203
    %1941 = vmatpush.msra.mxu0 %v1200
    %1942 = vmatpush.msra.mxu0 %v1197
    %1943 = vmatpush.msra.mxu0 %v1194
    %1944 = vmatpush.msra.mxu0 %v1191
    %1945 = vmatpush.msra.mxu0 %v1188
    %1946 = vmatpush.msra.mxu0 %v1185
    %1947 = vmatpush.msra.mxu0 %v1182
    %1948 = vmatmul.f32.gmra.mxu0 %v1820
    %v1949 = vpop.f32.mrf.mxu0
    %v1950 = vadd.f32 %v1162, %v1949
    %1951 = vdwg.mxu0
    %1952 = vmatpush.msra.mxu0 %v1228
    %1953 = vmatpush.msra.mxu0 %v1225
    %1954 = vmatpush.msra.mxu0 %v1222
    %1955 = vmatpush.msra.mxu0 %v1219
    %1956 = vmatpush.msra.mxu0 %v1216
    %1957 = vmatpush.msra.mxu0 %v1213
    %1958 = vmatpush.msra.mxu0 %v1210
    %1959 = vmatpush.msra.mxu0 %v1207
    %1960 = vmatpush.msra.mxu0 %v1204
    %1961 = vmatpush.msra.mxu0 %v1201
    %1962 = vmatpush.msra.mxu0 %v1198
    %1963 = vmatpush.msra.mxu0 %v1195
    %1964 = vmatpush.msra.mxu0 %v1192
    %1965 = vmatpush.msra.mxu0 %v1189
    %1966 = vmatpush.msra.mxu0 %v1186
    %1967 = vmatpush.msra.mxu0 %v1183
    %1968 = vmatmul.f32.gmra.mxu0 %v1820
    %v1969 = vpop.f32.mrf.mxu0
    %v1970 = vadd.f32 %v1163, %v1969
    %1971 = vdwg.mxu0
    %1972 = vmatpush.msra.mxu0 %v1229
    %1973 = vmatpush.msra.mxu0 %v1226
    %1974 = vmatpush.msra.mxu0 %v1223
    %1975 = vmatpush.msra.mxu0 %v1220
    %1976 = vmatpush.msra.mxu0 %v1217
    %1977 = vmatpush.msra.mxu0 %v1214
    %1978 = vmatpush.msra.mxu0 %v1211
    %1979 = vmatpush.msra.mxu0 %v1208
    %1980 = vmatpush.msra.mxu0 %v1205
    %1981 = vmatpush.msra.mxu0 %v1202
    %1982 = vmatpush.msra.mxu0 %v1199
    %1983 = vmatpush.msra.mxu0 %v1196
    %1984 = vmatpush.msra.mxu0 %v1193
    %1985 = vmatpush.msra.mxu0 %v1190
    %1986 = vmatpush.msra.mxu0 %v1187
    %1987 = vmatpush.msra.mxu0 %v1184
    %1988 = vmatmul.f32.gmra.mxu0 %v1820
    %v1989 = vpop.f32.mrf.mxu0
    %v1990 = vadd.f32 %v1164, %v1989
    %1991 = vdwg.mxu0
    %v1992 = vadd.f32 %v531, %v1950
    %v1993 = vxor.u32 %v1992, 2147483648
    %v1994 = vmul.f32 %v1993, 1.442695
    %v1995 = vpow.pop %v1994
    %v1996 = vadd.f32 %v1995, 1.0
    %v1997 = vrcp.pop %v1996
    %v1998 = vmul.f32 %v1996, %v1997
    %v1999 = vsub.f32 1.0, %v1998
    %v2000 = vmul.f32 %v1997, %v1999
    %v2001 = vadd.f32 %v1997, %v2000
    %vm2002 = vweird.f32 %v1996
    %vm2003 = vweird.f32 %v1997
    %vm2004 = vmor %vm2002, %vm2003
    %v2005 = vsel %vm2004, %v1997, %v2001
    %v2006 = vand.u32 2147483647, %v1996
    %vm2007 = vcmp.eq.f32.partialorder %v2006, 8.507059e+37
    %v2008 = vand.u32 %v1996, 2147483648
    %v2009 = vor.u32 1.1754944e-38, %v2008
    %v2010 = vsel %vm2007, %v2009, %v2005
    %v2011 = vmul.f32 1.0, %v2010
    %v2012 = vadd.f32 %v654, %v1970
    %v2013 = vxor.u32 %v2012, 2147483648
    %v2014 = vmul.f32 %v2013, 1.442695
    %v2015 = vpow.pop %v2014
    %v2016 = vadd.f32 %v2015, 1.0
    %v2017 = vrcp.pop %v2016
    %v2018 = vmul.f32 %v2016, %v2017
    %v2019 = vsub.f32 1.0, %v2018
    %v2020 = vmul.f32 %v2017, %v2019
    %v2021 = vadd.f32 %v2017, %v2020
    %vm2022 = vweird.f32 %v2016
    %vm2023 = vweird.f32 %v2017
    %vm2024 = vmor %vm2022, %vm2023
    %v2025 = vsel %vm2024, %v2017, %v2021
    %v2026 = vand.u32 2147483647, %v2016
    %vm2027 = vcmp.eq.f32.partialorder %v2026, 8.507059e+37
    %v2028 = vand.u32 %v2016, 2147483648
    %v2029 = vor.u32 1.1754944e-38, %v2028
    %v2030 = vsel %vm2027, %v2029, %v2025
    %v2031 = vmul.f32 1.0, %v2030
    %v2032 = vmul.f32 %v2011, %v1990
    %v2033 = vadd.f32 %v777, %v2032
    %v2034 = vtanh.pop %v2033
    %v2035 = vsub.f32 1.0, %v2031
    %v2036 = vmul.f32 %v2035, %v2034
    %v2037 = vmul.f32 %v2031, %v1820
    %v2038 = vadd.f32 %v2036, %v2037
    %2039 = vmatpush.msra.mxu0 %v1276
    %2040 = vmatpush.msra.mxu0 %v1273
    %2041 = vmatpush.msra.mxu0 %v1270
    %2042 = vmatpush.msra.mxu0 %v1267
    %2043 = vmatpush.msra.mxu0 %v1264
    %2044 = vmatpush.msra.mxu0 %v1261
    %2045 = vmatpush.msra.mxu0 %v1258
    %2046 = vmatpush.msra.mxu0 %v1255
    %2047 = vmatpush.msra.mxu0 %v1252
    %2048 = vmatpush.msra.mxu0 %v1249
    %2049 = vmatpush.msra.mxu0 %v1246
    %2050 = vmatpush.msra.mxu0 %v1243
    %2051 = vmatpush.msra.mxu0 %v1240
    %2052 = vmatpush.msra.mxu0 %v1237
    %2053 = vmatpush.msra.mxu0 %v1234
    %2054 = vmatpush.msra.mxu0 %v1231
    %2055 = vmatmul.f32.gmra.mxu0 %v1927
    %v2056 = vpop.f32.mrf.mxu0
    %v2057 = vadd.f32 %v1171, %v2056
    %2058 = vdwg.mxu0
    %2059 = vmatpush.msra.mxu0 %v1277
    %2060 = vmatpush.msra.mxu0 %v1274
    %2061 = vmatpush.msra.mxu0 %v1271
    %2062 = vmatpush.msra.mxu0 %v1268
    %2063 = vmatpush.msra.mxu0 %v1265
    %2064 = vmatpush.msra.mxu0 %v1262
    %2065 = vmatpush.msra.mxu0 %v1259
    %2066 = vmatpush.msra.mxu0 %v1256
    %2067 = vmatpush.msra.mxu0 %v1253
    %2068 = vmatpush.msra.mxu0 %v1250
    %2069 = vmatpush.msra.mxu0 %v1247
    %2070 = vmatpush.msra.mxu0 %v1244
    %2071 = vmatpush.msra.mxu0 %v1241
    %2072 = vmatpush.msra.mxu0 %v1238
    %2073 = vmatpush.msra.mxu0 %v1235
    %2074 = vmatpush.msra.mxu0 %v1232
    %2075 = vmatmul.f32.gmra.mxu0 %v1927
    %v2076 = vpop.f32.mrf.mxu0
    %v2077 = vadd.f32 %v1172, %v2076
    %2078 = vdwg.mxu0
    %2079 = vmatpush.msra.mxu0 %v1278
    %2080 = vmatpush.msra.mxu0 %v1275
    %2081 = vmatpush.msra.mxu0 %v1272
    %2082 = vmatpush.msra.mxu0 %v1269
    %2083 = vmatpush.msra.mxu0 %v1266
    %2084 = vmatpush.msra.mxu0 %v1263
    %2085 = vmatpush.msra.mxu0 %v1260
    %2086 = vmatpush.msra.mxu0 %v1257
    %2087 = vmatpush.msra.mxu0 %v1254
    %2088 = vmatpush.msra.mxu0 %v1251
    %2089 = vmatpush.msra.mxu0 %v1248
    %2090 = vmatpush.msra.mxu0 %v1245
    %2091 = vmatpush.msra.mxu0 %v1242
    %2092 = vmatpush.msra.mxu0 %v1239
    %2093 = vmatpush.msra.mxu0 %v1236
    %2094 = vmatpush.msra.mxu0 %v1233
    %2095 = vmatmul.f32.gmra.mxu0 %v1927
    %v2096 = vpop.f32.mrf.mxu0
    %v2097 = vadd.f32 %v1173, %v2096
    %2098 = vdwg.mxu0
    %v2099 = vadd.f32 %v903, %v2057
    %v2100 = vxor.u32 %v2099, 2147483648
    %v2101 = vmul.f32 %v2100, 1.442695
    %v2102 = vpow.pop %v2101
    %v2103 = vadd.f32 %v2102, 1.0
    %v2104 = vrcp.pop %v2103
    %v2105 = vmul.f32 %v2103, %v2104
    %v2106 = vsub.f32 1.0, %v2105
    %v2107 = vmul.f32 %v2104, %v2106
    %v2108 = vadd.f32 %v2104, %v2107
    %vm2109 = vweird.f32 %v2103
    %vm2110 = vweird.f32 %v2104
    %vm2111 = vmor %vm2109, %vm2110
    %v2112 = vsel %vm2111, %v2104, %v2108
    %v2113 = vand.u32 2147483647, %v2103
    %vm2114 = vcmp.eq.f32.partialorder %v2113, 8.507059e+37
    %v2115 = vand.u32 %v2103, 2147483648
    %v2116 = vor.u32 1.1754944e-38, %v2115
    %v2117 = vsel %vm2114, %v2116, %v2112
    %v2118 = vmul.f32 1.0, %v2117
    %v2119 = vadd.f32 %v1026, %v2077
    %v2120 = vxor.u32 %v2119, 2147483648
    %v2121 = vmul.f32 %v2120, 1.442695
    %v2122 = vpow.pop %v2121
    %v2123 = vadd.f32 %v2122, 1.0
    %v2124 = vrcp.pop %v2123
    %v2125 = vmul.f32 %v2123, %v2124
    %v2126 = vsub.f32 1.0, %v2125
    %v2127 = vmul.f32 %v2124, %v2126
    %v2128 = vadd.f32 %v2124, %v2127
    %vm2129 = vweird.f32 %v2123
    %vm2130 = vweird.f32 %v2124
    %vm2131 = vmor %vm2129, %vm2130
    %v2132 = vsel %vm2131, %v2124, %v2128
    %v2133 = vand.u32 2147483647, %v2123
    %vm2134 = vcmp.eq.f32.partialorder %v2133, 8.507059e+37
    %v2135 = vand.u32 %v2123, 2147483648
    %v2136 = vor.u32 1.1754944e-38, %v2135
    %v2137 = vsel %vm2134, %v2136, %v2132
    %v2138 = vmul.f32 1.0, %v2137
    %v2139 = vmul.f32 %v2118, %v2097
    %v2140 = vadd.f32 %v1149, %v2139
    %v2141 = vtanh.pop %v2140
    %v2142 = vsub.f32 1.0, %v2138
    %v2143 = vmul.f32 %v2142, %v2141
    %v2144 = vmul.f32 %v2138, %v1927
    %v2145 = vadd.f32 %v2143, %v2144
    %s2146 = scalar_lea.vmem [#allocation12], 48
    %2147 = vst [vmem:[%s2146] sm:$0xff] %v2038
    %s2148 = scalar_lea.vmem [#allocation12], 64
    %2149 = vst [vmem:[%s2148 + $0x8] sm:$0xff] %v2145
    %2150 = vmatpush.msra.mxu0 %v1227
    %2151 = vmatpush.msra.mxu0 %v1224
    %2152 = vmatpush.msra.mxu0 %v1221
    %2153 = vmatpush.msra.mxu0 %v1218
    %2154 = vmatpush.msra.mxu0 %v1215
    %2155 = vmatpush.msra.mxu0 %v1212
    %2156 = vmatpush.msra.mxu0 %v1209
    %2157 = vmatpush.msra.mxu0 %v1206
    %2158 = vmatpush.msra.mxu0 %v1203
    %2159 = vmatpush.msra.mxu0 %v1200
    %2160 = vmatpush.msra.mxu0 %v1197
    %2161 = vmatpush.msra.mxu0 %v1194
    %2162 = vmatpush.msra.mxu0 %v1191
    %2163 = vmatpush.msra.mxu0 %v1188
    %2164 = vmatpush.msra.mxu0 %v1185
    %2165 = vmatpush.msra.mxu0 %v1182
    %2166 = vmatmul.f32.gmra.mxu0 %v2038
    %v2167 = vpop.f32.mrf.mxu0
    %v2168 = vadd.f32 %v1162, %v2167
    %2169 = vdwg.mxu0
    %2170 = vmatpush.msra.mxu0 %v1228
    %2171 = vmatpush.msra.mxu0 %v1225
    %2172 = vmatpush.msra.mxu0 %v1222
    %2173 = vmatpush.msra.mxu0 %v1219
    %2174 = vmatpush.msra.mxu0 %v1216
    %2175 = vmatpush.msra.mxu0 %v1213
    %2176 = vmatpush.msra.mxu0 %v1210
    %2177 = vmatpush.msra.mxu0 %v1207
    %2178 = vmatpush.msra.mxu0 %v1204
    %2179 = vmatpush.msra.mxu0 %v1201
    %2180 = vmatpush.msra.mxu0 %v1198
    %2181 = vmatpush.msra.mxu0 %v1195
    %2182 = vmatpush.msra.mxu0 %v1192
    %2183 = vmatpush.msra.mxu0 %v1189
    %2184 = vmatpush.msra.mxu0 %v1186
    %2185 = vmatpush.msra.mxu0 %v1183
    %2186 = vmatmul.f32.gmra.mxu0 %v2038
    %v2187 = vpop.f32.mrf.mxu0
    %v2188 = vadd.f32 %v1163, %v2187
    %2189 = vdwg.mxu0
    %2190 = vmatpush.msra.mxu0 %v1229
    %2191 = vmatpush.msra.mxu0 %v1226
    %2192 = vmatpush.msra.mxu0 %v1223
    %2193 = vmatpush.msra.mxu0 %v1220
    %2194 = vmatpush.msra.mxu0 %v1217
    %2195 = vmatpush.msra.mxu0 %v1214
    %2196 = vmatpush.msra.mxu0 %v1211
    %2197 = vmatpush.msra.mxu0 %v1208
    %2198 = vmatpush.msra.mxu0 %v1205
    %2199 = vmatpush.msra.mxu0 %v1202
    %2200 = vmatpush.msra.mxu0 %v1199
    %2201 = vmatpush.msra.mxu0 %v1196
    %2202 = vmatpush.msra.mxu0 %v1193
    %2203 = vmatpush.msra.mxu0 %v1190
    %2204 = vmatpush.msra.mxu0 %v1187
    %2205 = vmatpush.msra.mxu0 %v1184
    %2206 = vmatmul.f32.gmra.mxu0 %v2038
    %v2207 = vpop.f32.mrf.mxu0
    %v2208 = vadd.f32 %v1164, %v2207
    %2209 = vdwg.mxu0
    %v2210 = vadd.f32 %v534, %v2168
    %v2211 = vxor.u32 %v2210, 2147483648
    %v2212 = vmul.f32 %v2211, 1.442695
    %v2213 = vpow.pop %v2212
    %v2214 = vadd.f32 %v2213, 1.0
    %v2215 = vrcp.pop %v2214
    %v2216 = vmul.f32 %v2214, %v2215
    %v2217 = vsub.f32 1.0, %v2216
    %v2218 = vmul.f32 %v2215, %v2217
    %v2219 = vadd.f32 %v2215, %v2218
    %vm2220 = vweird.f32 %v2214
    %vm2221 = vweird.f32 %v2215
    %vm2222 = vmor %vm2220, %vm2221
    %v2223 = vsel %vm2222, %v2215, %v2219
    %v2224 = vand.u32 2147483647, %v2214
    %vm2225 = vcmp.eq.f32.partialorder %v2224, 8.507059e+37
    %v2226 = vand.u32 %v2214, 2147483648
    %v2227 = vor.u32 1.1754944e-38, %v2226
    %v2228 = vsel %vm2225, %v2227, %v2223
    %v2229 = vmul.f32 1.0, %v2228
    %v2230 = vadd.f32 %v657, %v2188
    %v2231 = vxor.u32 %v2230, 2147483648
    %v2232 = vmul.f32 %v2231, 1.442695
    %v2233 = vpow.pop %v2232
    %v2234 = vadd.f32 %v2233, 1.0
    %v2235 = vrcp.pop %v2234
    %v2236 = vmul.f32 %v2234, %v2235
    %v2237 = vsub.f32 1.0, %v2236
    %v2238 = vmul.f32 %v2235, %v2237
    %v2239 = vadd.f32 %v2235, %v2238
    %vm2240 = vweird.f32 %v2234
    %vm2241 = vweird.f32 %v2235
    %vm2242 = vmor %vm2240, %vm2241
    %v2243 = vsel %vm2242, %v2235, %v2239
    %v2244 = vand.u32 2147483647, %v2234
    %vm2245 = vcmp.eq.f32.partialorder %v2244, 8.507059e+37
    %v2246 = vand.u32 %v2234, 2147483648
    %v2247 = vor.u32 1.1754944e-38, %v2246
    %v2248 = vsel %vm2245, %v2247, %v2243
    %v2249 = vmul.f32 1.0, %v2248
    %v2250 = vmul.f32 %v2229, %v2208
    %v2251 = vadd.f32 %v780, %v2250
    %v2252 = vtanh.pop %v2251
    %v2253 = vsub.f32 1.0, %v2249
    %v2254 = vmul.f32 %v2253, %v2252
    %v2255 = vmul.f32 %v2249, %v2038
    %v2256 = vadd.f32 %v2254, %v2255
    %2257 = vmatpush.msra.mxu0 %v1276
    %2258 = vmatpush.msra.mxu0 %v1273
    %2259 = vmatpush.msra.mxu0 %v1270
    %2260 = vmatpush.msra.mxu0 %v1267
    %2261 = vmatpush.msra.mxu0 %v1264
    %2262 = vmatpush.msra.mxu0 %v1261
    %2263 = vmatpush.msra.mxu0 %v1258
    %2264 = vmatpush.msra.mxu0 %v1255
    %2265 = vmatpush.msra.mxu0 %v1252
    %2266 = vmatpush.msra.mxu0 %v1249
    %2267 = vmatpush.msra.mxu0 %v1246
    %2268 = vmatpush.msra.mxu0 %v1243
    %2269 = vmatpush.msra.mxu0 %v1240
    %2270 = vmatpush.msra.mxu0 %v1237
    %2271 = vmatpush.msra.mxu0 %v1234
    %2272 = vmatpush.msra.mxu0 %v1231
    %2273 = vmatmul.f32.gmra.mxu0 %v2145
    %v2274 = vpop.f32.mrf.mxu0
    %v2275 = vadd.f32 %v1171, %v2274
    %2276 = vdwg.mxu0
    %2277 = vmatpush.msra.mxu0 %v1277
    %2278 = vmatpush.msra.mxu0 %v1274
    %2279 = vmatpush.msra.mxu0 %v1271
    %2280 = vmatpush.msra.mxu0 %v1268
    %2281 = vmatpush.msra.mxu0 %v1265
    %2282 = vmatpush.msra.mxu0 %v1262
    %2283 = vmatpush.msra.mxu0 %v1259
    %2284 = vmatpush.msra.mxu0 %v1256
    %2285 = vmatpush.msra.mxu0 %v1253
    %2286 = vmatpush.msra.mxu0 %v1250
    %2287 = vmatpush.msra.mxu0 %v1247
    %2288 = vmatpush.msra.mxu0 %v1244
    %2289 = vmatpush.msra.mxu0 %v1241
    %2290 = vmatpush.msra.mxu0 %v1238
    %2291 = vmatpush.msra.mxu0 %v1235
    %2292 = vmatpush.msra.mxu0 %v1232
    %2293 = vmatmul.f32.gmra.mxu0 %v2145
    %v2294 = vpop.f32.mrf.mxu0
    %v2295 = vadd.f32 %v1172, %v2294
    %2296 = vdwg.mxu0
    %2297 = vmatpush.msra.mxu0 %v1278
    %2298 = vmatpush.msra.mxu0 %v1275
    %2299 = vmatpush.msra.mxu0 %v1272
    %2300 = vmatpush.msra.mxu0 %v1269
    %2301 = vmatpush.msra.mxu0 %v1266
    %2302 = vmatpush.msra.mxu0 %v1263
    %2303 = vmatpush.msra.mxu0 %v1260
    %2304 = vmatpush.msra.mxu0 %v1257
    %2305 = vmatpush.msra.mxu0 %v1254
    %2306 = vmatpush.msra.mxu0 %v1251
    %2307 = vmatpush.msra.mxu0 %v1248
    %2308 = vmatpush.msra.mxu0 %v1245
    %2309 = vmatpush.msra.mxu0 %v1242
    %2310 = vmatpush.msra.mxu0 %v1239
    %2311 = vmatpush.msra.mxu0 %v1236
    %2312 = vmatpush.msra.mxu0 %v1233
    %2313 = vmatmul.f32.gmra.mxu0 %v2145
    %v2314 = vpop.f32.mrf.mxu0
    %v2315 = vadd.f32 %v1173, %v2314
    %2316 = vdwg.mxu0
    %v2317 = vadd.f32 %v900, %v2275
    %v2318 = vxor.u32 %v2317, 2147483648
    %v2319 = vmul.f32 %v2318, 1.442695
    %v2320 = vpow.pop %v2319
    %v2321 = vadd.f32 %v2320, 1.0
    %v2322 = vrcp.pop %v2321
    %v2323 = vmul.f32 %v2321, %v2322
    %v2324 = vsub.f32 1.0, %v2323
    %v2325 = vmul.f32 %v2322, %v2324
    %v2326 = vadd.f32 %v2322, %v2325
    %vm2327 = vweird.f32 %v2321
    %vm2328 = vweird.f32 %v2322
    %vm2329 = vmor %vm2327, %vm2328
    %v2330 = vsel %vm2329, %v2322, %v2326
    %v2331 = vand.u32 2147483647, %v2321
    %vm2332 = vcmp.eq.f32.partialorder %v2331, 8.507059e+37
    %v2333 = vand.u32 %v2321, 2147483648
    %v2334 = vor.u32 1.1754944e-38, %v2333
    %v2335 = vsel %vm2332, %v2334, %v2330
    %v2336 = vmul.f32 1.0, %v2335
    %v2337 = vadd.f32 %v1023, %v2295
    %v2338 = vxor.u32 %v2337, 2147483648
    %v2339 = vmul.f32 %v2338, 1.442695
    %v2340 = vpow.pop %v2339
    %v2341 = vadd.f32 %v2340, 1.0
    %v2342 = vrcp.pop %v2341
    %v2343 = vmul.f32 %v2341, %v2342
    %v2344 = vsub.f32 1.0, %v2343
    %v2345 = vmul.f32 %v2342, %v2344
    %v2346 = vadd.f32 %v2342, %v2345
    %vm2347 = vweird.f32 %v2341
    %vm2348 = vweird.f32 %v2342
    %vm2349 = vmor %vm2347, %vm2348
    %v2350 = vsel %vm2349, %v2342, %v2346
    %v2351 = vand.u32 2147483647, %v2341
    %vm2352 = vcmp.eq.f32.partialorder %v2351, 8.507059e+37
    %v2353 = vand.u32 %v2341, 2147483648
    %v2354 = vor.u32 1.1754944e-38, %v2353
    %v2355 = vsel %vm2352, %v2354, %v2350
    %v2356 = vmul.f32 1.0, %v2355
    %v2357 = vmul.f32 %v2336, %v2315
    %v2358 = vadd.f32 %v1146, %v2357
    %v2359 = vtanh.pop %v2358
    %v2360 = vsub.f32 1.0, %v2356
    %v2361 = vmul.f32 %v2360, %v2359
    %v2362 = vmul.f32 %v2356, %v2145
    %v2363 = vadd.f32 %v2361, %v2362
    %2364 = vst [vmem:[%s2148] sm:$0xff] %v2256
    %2365 = vst [vmem:[%s2146 + $0x8] sm:$0xff] %v2363
    %2366 = vmatpush.msra.mxu0 %v1227
    %2367 = vmatpush.msra.mxu0 %v1224
    %2368 = vmatpush.msra.mxu0 %v1221
    %2369 = vmatpush.msra.mxu0 %v1218
    %2370 = vmatpush.msra.mxu0 %v1215
    %2371 = vmatpush.msra.mxu0 %v1212
    %2372 = vmatpush.msra.mxu0 %v1209
    %2373 = vmatpush.msra.mxu0 %v1206
    %2374 = vmatpush.msra.mxu0 %v1203
    %2375 = vmatpush.msra.mxu0 %v1200
    %2376 = vmatpush.msra.mxu0 %v1197
    %2377 = vmatpush.msra.mxu0 %v1194
    %2378 = vmatpush.msra.mxu0 %v1191
    %2379 = vmatpush.msra.mxu0 %v1188
    %2380 = vmatpush.msra.mxu0 %v1185
    %2381 = vmatpush.msra.mxu0 %v1182
    %2382 = vmatmul.f32.gmra.mxu0 %v2256
    %v2383 = vpop.f32.mrf.mxu0
    %v2384 = vadd.f32 %v1162, %v2383
    %2385 = vdwg.mxu0
    %2386 = vmatpush.msra.mxu0 %v1228
    %2387 = vmatpush.msra.mxu0 %v1225
    %2388 = vmatpush.msra.mxu0 %v1222
    %2389 = vmatpush.msra.mxu0 %v1219
    %2390 = vmatpush.msra.mxu0 %v1216
    %2391 = vmatpush.msra.mxu0 %v1213
    %2392 = vmatpush.msra.mxu0 %v1210
    %2393 = vmatpush.msra.mxu0 %v1207
    %2394 = vmatpush.msra.mxu0 %v1204
    %2395 = vmatpush.msra.mxu0 %v1201
    %2396 = vmatpush.msra.mxu0 %v1198
    %2397 = vmatpush.msra.mxu0 %v1195
    %2398 = vmatpush.msra.mxu0 %v1192
    %2399 = vmatpush.msra.mxu0 %v1189
    %2400 = vmatpush.msra.mxu0 %v1186
    %2401 = vmatpush.msra.mxu0 %v1183
    %2402 = vmatmul.f32.gmra.mxu0 %v2256
    %v2403 = vpop.f32.mrf.mxu0
    %v2404 = vadd.f32 %v1163, %v2403
    %2405 = vdwg.mxu0
    %2406 = vmatpush.msra.mxu0 %v1229
    %2407 = vmatpush.msra.mxu0 %v1226
    %2408 = vmatpush.msra.mxu0 %v1223
    %2409 = vmatpush.msra.mxu0 %v1220
    %2410 = vmatpush.msra.mxu0 %v1217
    %2411 = vmatpush.msra.mxu0 %v1214
    %2412 = vmatpush.msra.mxu0 %v1211
    %2413 = vmatpush.msra.mxu0 %v1208
    %2414 = vmatpush.msra.mxu0 %v1205
    %2415 = vmatpush.msra.mxu0 %v1202
    %2416 = vmatpush.msra.mxu0 %v1199
    %2417 = vmatpush.msra.mxu0 %v1196
    %2418 = vmatpush.msra.mxu0 %v1193
    %2419 = vmatpush.msra.mxu0 %v1190
    %2420 = vmatpush.msra.mxu0 %v1187
    %2421 = vmatpush.msra.mxu0 %v1184
    %2422 = vmatmul.f32.gmra.mxu0 %v2256
    %v2423 = vpop.f32.mrf.mxu0
    %v2424 = vadd.f32 %v1164, %v2423
    %2425 = vdwg.mxu0
    %v2426 = vadd.f32 %v537, %v2384
    %v2427 = vxor.u32 %v2426, 2147483648
    %v2428 = vmul.f32 %v2427, 1.442695
    %v2429 = vpow.pop %v2428
    %v2430 = vadd.f32 %v2429, 1.0
    %v2431 = vrcp.pop %v2430
    %v2432 = vmul.f32 %v2430, %v2431
    %v2433 = vsub.f32 1.0, %v2432
    %v2434 = vmul.f32 %v2431, %v2433
    %v2435 = vadd.f32 %v2431, %v2434
    %vm2436 = vweird.f32 %v2430
    %vm2437 = vweird.f32 %v2431
    %vm2438 = vmor %vm2436, %vm2437
    %v2439 = vsel %vm2438, %v2431, %v2435
    %v2440 = vand.u32 2147483647, %v2430
    %vm2441 = vcmp.eq.f32.partialorder %v2440, 8.507059e+37
    %v2442 = vand.u32 %v2430, 2147483648
    %v2443 = vor.u32 1.1754944e-38, %v2442
    %v2444 = vsel %vm2441, %v2443, %v2439
    %v2445 = vmul.f32 1.0, %v2444
    %v2446 = vadd.f32 %v660, %v2404
    %v2447 = vxor.u32 %v2446, 2147483648
    %v2448 = vmul.f32 %v2447, 1.442695
    %v2449 = vpow.pop %v2448
    %v2450 = vadd.f32 %v2449, 1.0
    %v2451 = vrcp.pop %v2450
    %v2452 = vmul.f32 %v2450, %v2451
    %v2453 = vsub.f32 1.0, %v2452
    %v2454 = vmul.f32 %v2451, %v2453
    %v2455 = vadd.f32 %v2451, %v2454
    %vm2456 = vweird.f32 %v2450
    %vm2457 = vweird.f32 %v2451
    %vm2458 = vmor %vm2456, %vm2457
    %v2459 = vsel %vm2458, %v2451, %v2455
    %v2460 = vand.u32 2147483647, %v2450
    %vm2461 = vcmp.eq.f32.partialorder %v2460, 8.507059e+37
    %v2462 = vand.u32 %v2450, 2147483648
    %v2463 = vor.u32 1.1754944e-38, %v2462
    %v2464 = vsel %vm2461, %v2463, %v2459
    %v2465 = vmul.f32 1.0, %v2464
    %v2466 = vmul.f32 %v2445, %v2424
    %v2467 = vadd.f32 %v783, %v2466
    %v2468 = vtanh.pop %v2467
    %v2469 = vsub.f32 1.0, %v2465
    %v2470 = vmul.f32 %v2469, %v2468
    %v2471 = vmul.f32 %v2465, %v2256
    %v2472 = vadd.f32 %v2470, %v2471
    %2473 = vmatpush.msra.mxu0 %v1276
    %2474 = vmatpush.msra.mxu0 %v1273
    %2475 = vmatpush.msra.mxu0 %v1270
    %2476 = vmatpush.msra.mxu0 %v1267
    %2477 = vmatpush.msra.mxu0 %v1264
    %2478 = vmatpush.msra.mxu0 %v1261
    %2479 = vmatpush.msra.mxu0 %v1258
    %2480 = vmatpush.msra.mxu0 %v1255
    %2481 = vmatpush.msra.mxu0 %v1252
    %2482 = vmatpush.msra.mxu0 %v1249
    %2483 = vmatpush.msra.mxu0 %v1246
    %2484 = vmatpush.msra.mxu0 %v1243
    %2485 = vmatpush.msra.mxu0 %v1240
    %2486 = vmatpush.msra.mxu0 %v1237
    %2487 = vmatpush.msra.mxu0 %v1234
    %2488 = vmatpush.msra.mxu0 %v1231
    %2489 = vmatmul.f32.gmra.mxu0 %v2363
    %v2490 = vpop.f32.mrf.mxu0
    %v2491 = vadd.f32 %v1171, %v2490
    %2492 = vdwg.mxu0
    %2493 = vmatpush.msra.mxu0 %v1277
    %2494 = vmatpush.msra.mxu0 %v1274
    %2495 = vmatpush.msra.mxu0 %v1271
    %2496 = vmatpush.msra.mxu0 %v1268
    %2497 = vmatpush.msra.mxu0 %v1265
    %2498 = vmatpush.msra.mxu0 %v1262
    %2499 = vmatpush.msra.mxu0 %v1259
    %2500 = vmatpush.msra.mxu0 %v1256
    %2501 = vmatpush.msra.mxu0 %v1253
    %2502 = vmatpush.msra.mxu0 %v1250
    %2503 = vmatpush.msra.mxu0 %v1247
    %2504 = vmatpush.msra.mxu0 %v1244
    %2505 = vmatpush.msra.mxu0 %v1241
    %2506 = vmatpush.msra.mxu0 %v1238
    %2507 = vmatpush.msra.mxu0 %v1235
    %2508 = vmatpush.msra.mxu0 %v1232
    %2509 = vmatmul.f32.gmra.mxu0 %v2363
    %v2510 = vpop.f32.mrf.mxu0
    %v2511 = vadd.f32 %v1172, %v2510
    %2512 = vdwg.mxu0
    %2513 = vmatpush.msra.mxu0 %v1278
    %2514 = vmatpush.msra.mxu0 %v1275
    %2515 = vmatpush.msra.mxu0 %v1272
    %2516 = vmatpush.msra.mxu0 %v1269
    %2517 = vmatpush.msra.mxu0 %v1266
    %2518 = vmatpush.msra.mxu0 %v1263
    %2519 = vmatpush.msra.mxu0 %v1260
    %2520 = vmatpush.msra.mxu0 %v1257
    %2521 = vmatpush.msra.mxu0 %v1254
    %2522 = vmatpush.msra.mxu0 %v1251
    %2523 = vmatpush.msra.mxu0 %v1248
    %2524 = vmatpush.msra.mxu0 %v1245
    %2525 = vmatpush.msra.mxu0 %v1242
    %2526 = vmatpush.msra.mxu0 %v1239
    %2527 = vmatpush.msra.mxu0 %v1236
    %2528 = vmatpush.msra.mxu0 %v1233
    %2529 = vmatmul.f32.gmra.mxu0 %v2363
    %v2530 = vpop.f32.mrf.mxu0
    %v2531 = vadd.f32 %v1173, %v2530
    %2532 = vdwg.mxu0
    %v2533 = vadd.f32 %v897, %v2491
    %v2534 = vxor.u32 %v2533, 2147483648
    %v2535 = vmul.f32 %v2534, 1.442695
    %v2536 = vpow.pop %v2535
    %v2537 = vadd.f32 %v2536, 1.0
    %v2538 = vrcp.pop %v2537
    %v2539 = vmul.f32 %v2537, %v2538
    %v2540 = vsub.f32 1.0, %v2539
    %v2541 = vmul.f32 %v2538, %v2540
    %v2542 = vadd.f32 %v2538, %v2541
    %vm2543 = vweird.f32 %v2537
    %vm2544 = vweird.f32 %v2538
    %vm2545 = vmor %vm2543, %vm2544
    %v2546 = vsel %vm2545, %v2538, %v2542
    %v2547 = vand.u32 2147483647, %v2537
    %vm2548 = vcmp.eq.f32.partialorder %v2547, 8.507059e+37
    %v2549 = vand.u32 %v2537, 2147483648
    %v2550 = vor.u32 1.1754944e-38, %v2549
    %v2551 = vsel %vm2548, %v2550, %v2546
    %v2552 = vmul.f32 1.0, %v2551
    %v2553 = vadd.f32 %v1020, %v2511
    %v2554 = vxor.u32 %v2553, 2147483648
    %v2555 = vmul.f32 %v2554, 1.442695
    %v2556 = vpow.pop %v2555
    %v2557 = vadd.f32 %v2556, 1.0
    %v2558 = vrcp.pop %v2557
    %v2559 = vmul.f32 %v2557, %v2558
    %v2560 = vsub.f32 1.0, %v2559
    %v2561 = vmul.f32 %v2558, %v2560
    %v2562 = vadd.f32 %v2558, %v2561
    %vm2563 = vweird.f32 %v2557
    %vm2564 = vweird.f32 %v2558
    %vm2565 = vmor %vm2563, %vm2564
    %v2566 = vsel %vm2565, %v2558, %v2562
    %v2567 = vand.u32 2147483647, %v2557
    %vm2568 = vcmp.eq.f32.partialorder %v2567, 8.507059e+37
    %v2569 = vand.u32 %v2557, 2147483648
    %v2570 = vor.u32 1.1754944e-38, %v2569
    %v2571 = vsel %vm2568, %v2570, %v2566
    %v2572 = vmul.f32 1.0, %v2571
    %v2573 = vmul.f32 %v2552, %v2531
    %v2574 = vadd.f32 %v1143, %v2573
    %v2575 = vtanh.pop %v2574
    %v2576 = vsub.f32 1.0, %v2572
    %v2577 = vmul.f32 %v2576, %v2575
    %v2578 = vmul.f32 %v2572, %v2363
    %v2579 = vadd.f32 %v2577, %v2578
    %2580 = vst [vmem:[%s1930] sm:$0xff] %v2472
    %2581 = vst [vmem:[%s1928 + $0x8] sm:$0xff] %v2579
    %2582 = vmatpush.msra.mxu0 %v1227
    %2583 = vmatpush.msra.mxu0 %v1224
    %2584 = vmatpush.msra.mxu0 %v1221
    %2585 = vmatpush.msra.mxu0 %v1218
    %2586 = vmatpush.msra.mxu0 %v1215
    %2587 = vmatpush.msra.mxu0 %v1212
    %2588 = vmatpush.msra.mxu0 %v1209
    %2589 = vmatpush.msra.mxu0 %v1206
    %2590 = vmatpush.msra.mxu0 %v1203
    %2591 = vmatpush.msra.mxu0 %v1200
    %2592 = vmatpush.msra.mxu0 %v1197
    %2593 = vmatpush.msra.mxu0 %v1194
    %2594 = vmatpush.msra.mxu0 %v1191
    %2595 = vmatpush.msra.mxu0 %v1188
    %2596 = vmatpush.msra.mxu0 %v1185
    %2597 = vmatpush.msra.mxu0 %v1182
    %2598 = vmatmul.f32.gmra.mxu0 %v2472
    %v2599 = vpop.f32.mrf.mxu0
    %v2600 = vadd.f32 %v1162, %v2599
    %2601 = vdwg.mxu0
    %2602 = vmatpush.msra.mxu0 %v1228
    %2603 = vmatpush.msra.mxu0 %v1225
    %2604 = vmatpush.msra.mxu0 %v1222
    %2605 = vmatpush.msra.mxu0 %v1219
    %2606 = vmatpush.msra.mxu0 %v1216
    %2607 = vmatpush.msra.mxu0 %v1213
    %2608 = vmatpush.msra.mxu0 %v1210
    %2609 = vmatpush.msra.mxu0 %v1207
    %2610 = vmatpush.msra.mxu0 %v1204
    %2611 = vmatpush.msra.mxu0 %v1201
    %2612 = vmatpush.msra.mxu0 %v1198
    %2613 = vmatpush.msra.mxu0 %v1195
    %2614 = vmatpush.msra.mxu0 %v1192
    %2615 = vmatpush.msra.mxu0 %v1189
    %2616 = vmatpush.msra.mxu0 %v1186
    %2617 = vmatpush.msra.mxu0 %v1183
    %2618 = vmatmul.f32.gmra.mxu0 %v2472
    %v2619 = vpop.f32.mrf.mxu0
    %v2620 = vadd.f32 %v1163, %v2619
    %2621 = vdwg.mxu0
    %2622 = vmatpush.msra.mxu0 %v1229
    %2623 = vmatpush.msra.mxu0 %v1226
    %2624 = vmatpush.msra.mxu0 %v1223
    %2625 = vmatpush.msra.mxu0 %v1220
    %2626 = vmatpush.msra.mxu0 %v1217
    %2627 = vmatpush.msra.mxu0 %v1214
    %2628 = vmatpush.msra.mxu0 %v1211
    %2629 = vmatpush.msra.mxu0 %v1208
    %2630 = vmatpush.msra.mxu0 %v1205
    %2631 = vmatpush.msra.mxu0 %v1202
    %2632 = vmatpush.msra.mxu0 %v1199
    %2633 = vmatpush.msra.mxu0 %v1196
    %2634 = vmatpush.msra.mxu0 %v1193
    %2635 = vmatpush.msra.mxu0 %v1190
    %2636 = vmatpush.msra.mxu0 %v1187
    %2637 = vmatpush.msra.mxu0 %v1184
    %2638 = vmatmul.f32.gmra.mxu0 %v2472
    %v2639 = vpop.f32.mrf.mxu0
    %v2640 = vadd.f32 %v1164, %v2639
    %2641 = vdwg.mxu0
    %v2642 = vadd.f32 %v540, %v2600
    %v2643 = vxor.u32 %v2642, 2147483648
    %v2644 = vmul.f32 %v2643, 1.442695
    %v2645 = vpow.pop %v2644
    %v2646 = vadd.f32 %v2645, 1.0
    %v2647 = vrcp.pop %v2646
    %v2648 = vmul.f32 %v2646, %v2647
    %v2649 = vsub.f32 1.0, %v2648
    %v2650 = vmul.f32 %v2647, %v2649
    %v2651 = vadd.f32 %v2647, %v2650
    %vm2652 = vweird.f32 %v2646
    %vm2653 = vweird.f32 %v2647
    %vm2654 = vmor %vm2652, %vm2653
    %v2655 = vsel %vm2654, %v2647, %v2651
    %v2656 = vand.u32 2147483647, %v2646
    %vm2657 = vcmp.eq.f32.partialorder %v2656, 8.507059e+37
    %v2658 = vand.u32 %v2646, 2147483648
    %v2659 = vor.u32 1.1754944e-38, %v2658
    %v2660 = vsel %vm2657, %v2659, %v2655
    %v2661 = vmul.f32 1.0, %v2660
    %v2662 = vadd.f32 %v663, %v2620
    %v2663 = vxor.u32 %v2662, 2147483648
    %v2664 = vmul.f32 %v2663, 1.442695
    %v2665 = vpow.pop %v2664
    %v2666 = vadd.f32 %v2665, 1.0
    %v2667 = vrcp.pop %v2666
    %v2668 = vmul.f32 %v2666, %v2667
    %v2669 = vsub.f32 1.0, %v2668
    %v2670 = vmul.f32 %v2667, %v2669
    %v2671 = vadd.f32 %v2667, %v2670
    %vm2672 = vweird.f32 %v2666
    %vm2673 = vweird.f32 %v2667
    %vm2674 = vmor %vm2672, %vm2673
    %v2675 = vsel %vm2674, %v2667, %v2671
    %v2676 = vand.u32 2147483647, %v2666
    %vm2677 = vcmp.eq.f32.partialorder %v2676, 8.507059e+37
    %v2678 = vand.u32 %v2666, 2147483648
    %v2679 = vor.u32 1.1754944e-38, %v2678
    %v2680 = vsel %vm2677, %v2679, %v2675
    %v2681 = vmul.f32 1.0, %v2680
    %v2682 = vmul.f32 %v2661, %v2640
    %v2683 = vadd.f32 %v786, %v2682
    %v2684 = vtanh.pop %v2683
    %v2685 = vsub.f32 1.0, %v2681
    %v2686 = vmul.f32 %v2685, %v2684
    %v2687 = vmul.f32 %v2681, %v2472
    %v2688 = vadd.f32 %v2686, %v2687
    %2689 = vmatpush.msra.mxu0 %v1276
    %2690 = vmatpush.msra.mxu0 %v1273
    %2691 = vmatpush.msra.mxu0 %v1270
    %2692 = vmatpush.msra.mxu0 %v1267
    %2693 = vmatpush.msra.mxu0 %v1264
    %2694 = vmatpush.msra.mxu0 %v1261
    %2695 = vmatpush.msra.mxu0 %v1258
    %2696 = vmatpush.msra.mxu0 %v1255
    %2697 = vmatpush.msra.mxu0 %v1252
    %2698 = vmatpush.msra.mxu0 %v1249
    %2699 = vmatpush.msra.mxu0 %v1246
    %2700 = vmatpush.msra.mxu0 %v1243
    %2701 = vmatpush.msra.mxu0 %v1240
    %2702 = vmatpush.msra.mxu0 %v1237
    %2703 = vmatpush.msra.mxu0 %v1234
    %2704 = vmatpush.msra.mxu0 %v1231
    %2705 = vmatmul.f32.gmra.mxu0 %v2579
    %v2706 = vpop.f32.mrf.mxu0
    %v2707 = vadd.f32 %v1171, %v2706
    %2708 = vdwg.mxu0
    %2709 = vmatpush.msra.mxu0 %v1277
    %2710 = vmatpush.msra.mxu0 %v1274
    %2711 = vmatpush.msra.mxu0 %v1271
    %2712 = vmatpush.msra.mxu0 %v1268
    %2713 = vmatpush.msra.mxu0 %v1265
    %2714 = vmatpush.msra.mxu0 %v1262
    %2715 = vmatpush.msra.mxu0 %v1259
    %2716 = vmatpush.msra.mxu0 %v1256
    %2717 = vmatpush.msra.mxu0 %v1253
    %2718 = vmatpush.msra.mxu0 %v1250
    %2719 = vmatpush.msra.mxu0 %v1247
    %2720 = vmatpush.msra.mxu0 %v1244
    %2721 = vmatpush.msra.mxu0 %v1241
    %2722 = vmatpush.msra.mxu0 %v1238
    %2723 = vmatpush.msra.mxu0 %v1235
    %2724 = vmatpush.msra.mxu0 %v1232
    %2725 = vmatmul.f32.gmra.mxu0 %v2579
    %v2726 = vpop.f32.mrf.mxu0
    %v2727 = vadd.f32 %v1172, %v2726
    %2728 = vdwg.mxu0
    %2729 = vmatpush.msra.mxu0 %v1278
    %2730 = vmatpush.msra.mxu0 %v1275
    %2731 = vmatpush.msra.mxu0 %v1272
    %2732 = vmatpush.msra.mxu0 %v1269
    %2733 = vmatpush.msra.mxu0 %v1266
    %2734 = vmatpush.msra.mxu0 %v1263
    %2735 = vmatpush.msra.mxu0 %v1260
    %2736 = vmatpush.msra.mxu0 %v1257
    %2737 = vmatpush.msra.mxu0 %v1254
    %2738 = vmatpush.msra.mxu0 %v1251
    %2739 = vmatpush.msra.mxu0 %v1248
    %2740 = vmatpush.msra.mxu0 %v1245
    %2741 = vmatpush.msra.mxu0 %v1242
    %2742 = vmatpush.msra.mxu0 %v1239
    %2743 = vmatpush.msra.mxu0 %v1236
    %2744 = vmatpush.msra.mxu0 %v1233
    %2745 = vmatmul.f32.gmra.mxu0 %v2579
    %v2746 = vpop.f32.mrf.mxu0
    %v2747 = vadd.f32 %v1173, %v2746
    %2748 = vdwg.mxu0
    %v2749 = vadd.f32 %v894, %v2707
    %v2750 = vxor.u32 %v2749, 2147483648
    %v2751 = vmul.f32 %v2750, 1.442695
    %v2752 = vpow.pop %v2751
    %v2753 = vadd.f32 %v2752, 1.0
    %v2754 = vrcp.pop %v2753
    %v2755 = vmul.f32 %v2753, %v2754
    %v2756 = vsub.f32 1.0, %v2755
    %v2757 = vmul.f32 %v2754, %v2756
    %v2758 = vadd.f32 %v2754, %v2757
    %vm2759 = vweird.f32 %v2753
    %vm2760 = vweird.f32 %v2754
    %vm2761 = vmor %vm2759, %vm2760
    %v2762 = vsel %vm2761, %v2754, %v2758
    %v2763 = vand.u32 2147483647, %v2753
    %vm2764 = vcmp.eq.f32.partialorder %v2763, 8.507059e+37
    %v2765 = vand.u32 %v2753, 2147483648
    %v2766 = vor.u32 1.1754944e-38, %v2765
    %v2767 = vsel %vm2764, %v2766, %v2762
    %v2768 = vmul.f32 1.0, %v2767
    %v2769 = vadd.f32 %v1017, %v2727
    %v2770 = vxor.u32 %v2769, 2147483648
    %v2771 = vmul.f32 %v2770, 1.442695
    %v2772 = vpow.pop %v2771
    %v2773 = vadd.f32 %v2772, 1.0
    %v2774 = vrcp.pop %v2773
    %v2775 = vmul.f32 %v2773, %v2774
    %v2776 = vsub.f32 1.0, %v2775
    %v2777 = vmul.f32 %v2774, %v2776
    %v2778 = vadd.f32 %v2774, %v2777
    %vm2779 = vweird.f32 %v2773
    %vm2780 = vweird.f32 %v2774
    %vm2781 = vmor %vm2779, %vm2780
    %v2782 = vsel %vm2781, %v2774, %v2778
    %v2783 = vand.u32 2147483647, %v2773
    %vm2784 = vcmp.eq.f32.partialorder %v2783, 8.507059e+37
    %v2785 = vand.u32 %v2773, 2147483648
    %v2786 = vor.u32 1.1754944e-38, %v2785
    %v2787 = vsel %vm2784, %v2786, %v2782
    %v2788 = vmul.f32 1.0, %v2787
    %v2789 = vmul.f32 %v2768, %v2747
    %v2790 = vadd.f32 %v1140, %v2789
    %v2791 = vtanh.pop %v2790
    %v2792 = vsub.f32 1.0, %v2788
    %v2793 = vmul.f32 %v2792, %v2791
    %v2794 = vmul.f32 %v2788, %v2579
    %v2795 = vadd.f32 %v2793, %v2794
    %2796 = vst [vmem:[%s1712] sm:$0xff] %v2688
    %2797 = vst [vmem:[%s1710 + $0x8] sm:$0xff] %v2795
    %2798 = vmatpush.msra.mxu0 %v1227
    %2799 = vmatpush.msra.mxu0 %v1224
    %2800 = vmatpush.msra.mxu0 %v1221
    %2801 = vmatpush.msra.mxu0 %v1218
    %2802 = vmatpush.msra.mxu0 %v1215
    %2803 = vmatpush.msra.mxu0 %v1212
    %2804 = vmatpush.msra.mxu0 %v1209
    %2805 = vmatpush.msra.mxu0 %v1206
    %2806 = vmatpush.msra.mxu0 %v1203
    %2807 = vmatpush.msra.mxu0 %v1200
    %2808 = vmatpush.msra.mxu0 %v1197
    %2809 = vmatpush.msra.mxu0 %v1194
    %2810 = vmatpush.msra.mxu0 %v1191
    %2811 = vmatpush.msra.mxu0 %v1188
    %2812 = vmatpush.msra.mxu0 %v1185
    %2813 = vmatpush.msra.mxu0 %v1182
    %2814 = vmatmul.f32.gmra.mxu0 %v2688
    %v2815 = vpop.f32.mrf.mxu0
    %v2816 = vadd.f32 %v1162, %v2815
    %2817 = vdwg.mxu0
    %2818 = vmatpush.msra.mxu0 %v1228
    %2819 = vmatpush.msra.mxu0 %v1225
    %2820 = vmatpush.msra.mxu0 %v1222
    %2821 = vmatpush.msra.mxu0 %v1219
    %2822 = vmatpush.msra.mxu0 %v1216
    %2823 = vmatpush.msra.mxu0 %v1213
    %2824 = vmatpush.msra.mxu0 %v1210
    %2825 = vmatpush.msra.mxu0 %v1207
    %2826 = vmatpush.msra.mxu0 %v1204
    %2827 = vmatpush.msra.mxu0 %v1201
    %2828 = vmatpush.msra.mxu0 %v1198
    %2829 = vmatpush.msra.mxu0 %v1195
    %2830 = vmatpush.msra.mxu0 %v1192
    %2831 = vmatpush.msra.mxu0 %v1189
    %2832 = vmatpush.msra.mxu0 %v1186
    %2833 = vmatpush.msra.mxu0 %v1183
    %2834 = vmatmul.f32.gmra.mxu0 %v2688
    %v2835 = vpop.f32.mrf.mxu0
    %v2836 = vadd.f32 %v1163, %v2835
    %2837 = vdwg.mxu0
    %2838 = vmatpush.msra.mxu0 %v1229
    %2839 = vmatpush.msra.mxu0 %v1226
    %2840 = vmatpush.msra.mxu0 %v1223
    %2841 = vmatpush.msra.mxu0 %v1220
    %2842 = vmatpush.msra.mxu0 %v1217
    %2843 = vmatpush.msra.mxu0 %v1214
    %2844 = vmatpush.msra.mxu0 %v1211
    %2845 = vmatpush.msra.mxu0 %v1208
    %2846 = vmatpush.msra.mxu0 %v1205
    %2847 = vmatpush.msra.mxu0 %v1202
    %2848 = vmatpush.msra.mxu0 %v1199
    %2849 = vmatpush.msra.mxu0 %v1196
    %2850 = vmatpush.msra.mxu0 %v1193
    %2851 = vmatpush.msra.mxu0 %v1190
    %2852 = vmatpush.msra.mxu0 %v1187
    %2853 = vmatpush.msra.mxu0 %v1184
    %2854 = vmatmul.f32.gmra.mxu0 %v2688
    %v2855 = vpop.f32.mrf.mxu0
    %v2856 = vadd.f32 %v1164, %v2855
    %2857 = vdwg.mxu0
    %v2858 = vadd.f32 %v543, %v2816
    %v2859 = vxor.u32 %v2858, 2147483648
    %v2860 = vmul.f32 %v2859, 1.442695
    %v2861 = vpow.pop %v2860
    %v2862 = vadd.f32 %v2861, 1.0
    %v2863 = vrcp.pop %v2862
    %v2864 = vmul.f32 %v2862, %v2863
    %v2865 = vsub.f32 1.0, %v2864
    %v2866 = vmul.f32 %v2863, %v2865
    %v2867 = vadd.f32 %v2863, %v2866
    %vm2868 = vweird.f32 %v2862
    %vm2869 = vweird.f32 %v2863
    %vm2870 = vmor %vm2868, %vm2869
    %v2871 = vsel %vm2870, %v2863, %v2867
    %v2872 = vand.u32 2147483647, %v2862
    %vm2873 = vcmp.eq.f32.partialorder %v2872, 8.507059e+37
    %v2874 = vand.u32 %v2862, 2147483648
    %v2875 = vor.u32 1.1754944e-38, %v2874
    %v2876 = vsel %vm2873, %v2875, %v2871
    %v2877 = vmul.f32 1.0, %v2876
    %v2878 = vadd.f32 %v666, %v2836
    %v2879 = vxor.u32 %v2878, 2147483648
    %v2880 = vmul.f32 %v2879, 1.442695
    %v2881 = vpow.pop %v2880
    %v2882 = vadd.f32 %v2881, 1.0
    %v2883 = vrcp.pop %v2882
    %v2884 = vmul.f32 %v2882, %v2883
    %v2885 = vsub.f32 1.0, %v2884
    %v2886 = vmul.f32 %v2883, %v2885
    %v2887 = vadd.f32 %v2883, %v2886
    %vm2888 = vweird.f32 %v2882
    %vm2889 = vweird.f32 %v2883
    %vm2890 = vmor %vm2888, %vm2889
    %v2891 = vsel %vm2890, %v2883, %v2887
    %v2892 = vand.u32 2147483647, %v2882
    %vm2893 = vcmp.eq.f32.partialorder %v2892, 8.507059e+37
    %v2894 = vand.u32 %v2882, 2147483648
    %v2895 = vor.u32 1.1754944e-38, %v2894
    %v2896 = vsel %vm2893, %v2895, %v2891
    %v2897 = vmul.f32 1.0, %v2896
    %v2898 = vmul.f32 %v2877, %v2856
    %v2899 = vadd.f32 %v789, %v2898
    %v2900 = vtanh.pop %v2899
    %v2901 = vsub.f32 1.0, %v2897
    %v2902 = vmul.f32 %v2901, %v2900
    %v2903 = vmul.f32 %v2897, %v2688
    %v2904 = vadd.f32 %v2902, %v2903
    %2905 = vmatpush.msra.mxu0 %v1276
    %2906 = vmatpush.msra.mxu0 %v1273
    %2907 = vmatpush.msra.mxu0 %v1270
    %2908 = vmatpush.msra.mxu0 %v1267
    %2909 = vmatpush.msra.mxu0 %v1264
    %2910 = vmatpush.msra.mxu0 %v1261
    %2911 = vmatpush.msra.mxu0 %v1258
    %2912 = vmatpush.msra.mxu0 %v1255
    %2913 = vmatpush.msra.mxu0 %v1252
    %2914 = vmatpush.msra.mxu0 %v1249
    %2915 = vmatpush.msra.mxu0 %v1246
    %2916 = vmatpush.msra.mxu0 %v1243
    %2917 = vmatpush.msra.mxu0 %v1240
    %2918 = vmatpush.msra.mxu0 %v1237
    %2919 = vmatpush.msra.mxu0 %v1234
    %2920 = vmatpush.msra.mxu0 %v1231
    %2921 = vmatmul.f32.gmra.mxu0 %v2795
    %v2922 = vpop.f32.mrf.mxu0
    %v2923 = vadd.f32 %v1171, %v2922
    %2924 = vdwg.mxu0
    %2925 = vmatpush.msra.mxu0 %v1277
    %2926 = vmatpush.msra.mxu0 %v1274
    %2927 = vmatpush.msra.mxu0 %v1271
    %2928 = vmatpush.msra.mxu0 %v1268
    %2929 = vmatpush.msra.mxu0 %v1265
    %2930 = vmatpush.msra.mxu0 %v1262
    %2931 = vmatpush.msra.mxu0 %v1259
    %2932 = vmatpush.msra.mxu0 %v1256
    %2933 = vmatpush.msra.mxu0 %v1253
    %2934 = vmatpush.msra.mxu0 %v1250
    %2935 = vmatpush.msra.mxu0 %v1247
    %2936 = vmatpush.msra.mxu0 %v1244
    %2937 = vmatpush.msra.mxu0 %v1241
    %2938 = vmatpush.msra.mxu0 %v1238
    %2939 = vmatpush.msra.mxu0 %v1235
    %2940 = vmatpush.msra.mxu0 %v1232
    %2941 = vmatmul.f32.gmra.mxu0 %v2795
    %v2942 = vpop.f32.mrf.mxu0
    %v2943 = vadd.f32 %v1172, %v2942
    %2944 = vdwg.mxu0
    %2945 = vmatpush.msra.mxu0 %v1278
    %2946 = vmatpush.msra.mxu0 %v1275
    %2947 = vmatpush.msra.mxu0 %v1272
    %2948 = vmatpush.msra.mxu0 %v1269
    %2949 = vmatpush.msra.mxu0 %v1266
    %2950 = vmatpush.msra.mxu0 %v1263
    %2951 = vmatpush.msra.mxu0 %v1260
    %2952 = vmatpush.msra.mxu0 %v1257
    %2953 = vmatpush.msra.mxu0 %v1254
    %2954 = vmatpush.msra.mxu0 %v1251
    %2955 = vmatpush.msra.mxu0 %v1248
    %2956 = vmatpush.msra.mxu0 %v1245
    %2957 = vmatpush.msra.mxu0 %v1242
    %2958 = vmatpush.msra.mxu0 %v1239
    %2959 = vmatpush.msra.mxu0 %v1236
    %2960 = vmatpush.msra.mxu0 %v1233
    %2961 = vmatmul.f32.gmra.mxu0 %v2795
    %v2962 = vpop.f32.mrf.mxu0
    %v2963 = vadd.f32 %v1173, %v2962
    %2964 = vdwg.mxu0
    %v2965 = vadd.f32 %v891, %v2923
    %v2966 = vxor.u32 %v2965, 2147483648
    %v2967 = vmul.f32 %v2966, 1.442695
    %v2968 = vpow.pop %v2967
    %v2969 = vadd.f32 %v2968, 1.0
    %v2970 = vrcp.pop %v2969
    %v2971 = vmul.f32 %v2969, %v2970
    %v2972 = vsub.f32 1.0, %v2971
    %v2973 = vmul.f32 %v2970, %v2972
    %v2974 = vadd.f32 %v2970, %v2973
    %vm2975 = vweird.f32 %v2969
    %vm2976 = vweird.f32 %v2970
    %vm2977 = vmor %vm2975, %vm2976
    %v2978 = vsel %vm2977, %v2970, %v2974
    %v2979 = vand.u32 2147483647, %v2969
    %vm2980 = vcmp.eq.f32.partialorder %v2979, 8.507059e+37
    %v2981 = vand.u32 %v2969, 2147483648
    %v2982 = vor.u32 1.1754944e-38, %v2981
    %v2983 = vsel %vm2980, %v2982, %v2978
    %v2984 = vmul.f32 1.0, %v2983
    %v2985 = vadd.f32 %v1014, %v2943
    %v2986 = vxor.u32 %v2985, 2147483648
    %v2987 = vmul.f32 %v2986, 1.442695
    %v2988 = vpow.pop %v2987
    %v2989 = vadd.f32 %v2988, 1.0
    %v2990 = vrcp.pop %v2989
    %v2991 = vmul.f32 %v2989, %v2990
    %v2992 = vsub.f32 1.0, %v2991
    %v2993 = vmul.f32 %v2990, %v2992
    %v2994 = vadd.f32 %v2990, %v2993
    %vm2995 = vweird.f32 %v2989
    %vm2996 = vweird.f32 %v2990
    %vm2997 = vmor %vm2995, %vm2996
    %v2998 = vsel %vm2997, %v2990, %v2994
    %v2999 = vand.u32 2147483647, %v2989
    %vm3000 = vcmp.eq.f32.partialorder %v2999, 8.507059e+37
    %v3001 = vand.u32 %v2989, 2147483648
    %v3002 = vor.u32 1.1754944e-38, %v3001
    %v3003 = vsel %vm3000, %v3002, %v2998
    %v3004 = vmul.f32 1.0, %v3003
    %v3005 = vmul.f32 %v2984, %v2963
    %v3006 = vadd.f32 %v1137, %v3005
    %v3007 = vtanh.pop %v3006
    %v3008 = vsub.f32 1.0, %v3004
    %v3009 = vmul.f32 %v3008, %v3007
    %v3010 = vmul.f32 %v3004, %v2795
    %v3011 = vadd.f32 %v3009, %v3010
    %3012 = vst [vmem:[%s1494] sm:$0xff] %v2904
    %3013 = vst [vmem:[#allocation12 + $0x8] sm:$0xff] %v3011
    %3014 = vst [vmem:[#allocation13] sm:$0xff] %v2904
    %s3015 = scalar_lea.vmem [#allocation13], 8
    %3016 = vst [vmem:[%s3015] sm:$0xff] %v3011
    // Predicated region
    $region38: #{tpu_custom_call.1} parent=1 // pred_check
      _
    $region39: #{tpu_custom_call.1} parent=1 // pred_check_branch
      %3018 = sbr.rel (0) target = $region41
    $region40: #{tpu_custom_call.1} parent=1 // pred_region
      %3020 = vsyncadd [#allocation6], 0
      %s3021 = sshll.u32 [#allocation12], 4
      %s3022 = int_to_ptr.vmem [resolvable:$true] %s3021
      %s3023 = sshll.u32 %s5, 4
      %s3024 = int_to_ptr.hbm [resolvable:$true] %s3023
      %3029 = dma.vmem_to_hbm [thread:$0]  %s3022, 2048, %s3024, [#allocation6], 256, 256, 16
    $region41: #{tpu_custom_call.1} parent=1 // pred_fallthru
      _
    // Predicated region
    $region42: #{tpu_custom_call.1} parent=1 // pred_check
      _
    $region43: #{tpu_custom_call.1} parent=1 // pred_check_branch
      %3031 = sbr.rel (0) target = $region45
    $region44: #{tpu_custom_call.1} parent=1 // pred_region
      %3033 = vsyncadd [#allocation14], 0
      %s3034 = sshll.u32 [#allocation13], 4
      %s3035 = int_to_ptr.vmem [resolvable:$true] %s3034
      %s3036 = sshll.u32 %s6, 4
      %s3037 = int_to_ptr.hbm [resolvable:$true] %s3036
      %3042 = dma.vmem_to_hbm [thread:$0]  %s3035, 256, %s3037, [#allocation14], 128, 128, 8
    $region45: #{tpu_custom_call.1} parent=1 // pred_fallthru
      _
    // Predicated region
    $region46: #{tpu_custom_call.1} parent=1 // pred_check
      _
    $region47: #{tpu_custom_call.1} parent=1 // pred_check_branch
      %3044 = sbr.rel (0) target = $region49
    $region48: #{tpu_custom_call.1} parent=1 // pred_region
      %3046 = dma.done [#allocation6], 2048
    $region49: #{tpu_custom_call.1} parent=1 // pred_fallthru
      _
    // Predicated region
    $region50: #{tpu_custom_call.1} parent=1 // pred_check
      _
    $region51: #{tpu_custom_call.1} parent=1 // pred_check_branch
      %3048 = sbr.rel (0) target = $region53
    $region52: #{tpu_custom_call.1} parent=1 // pred_region
      %3050 = dma.done [#allocation14], 256
    $region53: #{tpu_custom_call.1} parent=1 // pred_fallthru
      _
    %3051 = vsyncpa [#allocation5], 1
    %3052 = vsyncpa [#allocation8], 1
    %3053 = vsyncpa [#allocation11], 1
    %3054 = vsyncpa [#allocation6], 1
    %3055 = vsyncpa [#allocation14], 1
  %3056 = vsyncmov [#allocation3]
  %s3057 = vpop.sfrf %3056
  %p3058 = scmp.eq.s32.totalorder %s3057, 0
  %p3059 = pneg %p3058
  %3061 = shalt.err (%p3059)

</llo_original>
